<compile_context>
chip_gen: v6e
topology: v6e:2x2x1
jax: 0.10.0
libtpu: 0.0.40
codegen_flags: <defaults>
</compile_context>

<pallas_src>
import functools

import jax
import jax.numpy as jnp
from jax.experimental import pallas as pl
from jax.experimental.pallas import tpu as pltpu


# ------------------------------ Pallas kernel -----------------------------
def _siglip_attn_kernel(x_ref, wqkv_ref, bqkv_ref, wo_ref, bo_ref, *rest,
                        num_heads, head_dim, with_attw):
    """One batch block per grid step.

    x_ref    : (Bt, S, D)       input hidden states
    wqkv_ref : (D, 3D)          fused q/k/v weights (q part pre-scaled)
    bqkv_ref : (1, 3D)          fused q/k/v bias (q part pre-scaled)
    wo_ref   : (D, D)           output projection weight (in, out)
    bo_ref   : (1, D)           output projection bias
    out_ref  : (Bt, S, D)       attention output
    attw_ref : (Bt, H, S, S)    softmax attention weights (optional)
    qkvh_scr : (3, Bt*H, S, hd) head-batched q/k/v staging (VMEM)
    o_scr    : (Bt*S, D)        merged per-head context (VMEM)
    """
    if with_attw:
        out_ref, attw_ref, qkvh_scr, o_scr = rest
    else:
        out_ref, qkvh_scr, o_scr = rest
        attw_ref = None

    Bt, S, D = x_ref.shape
    H, hd = num_heads, head_dim

    # ---- fused QKV projection: one wide MXU matmul (Bt*S, D) @ (D, 3D) ----
    x2 = x_ref[...].reshape(Bt * S, D)                         # leading-dim merge (free)
    qkv = jnp.dot(x2, wqkv_ref[...],
                  preferred_element_type=jnp.float32) + bqkv_ref[...]   # (Bt*S, 3D)

    # ---- head split: pure VMEM relayout with static slices.  All matmuls and ----
    # ---- the softmax below are batched over the Bt*H head axis (no per-head  ----
    # ---- matmuls, no XLU transposes, no concatenate).                        ----
    for b in range(Bt):
        rows = slice(b * S, (b + 1) * S)
        for h in range(H):
            g = b * H + h
            c = h * hd
            qkvh_scr[0, g] = qkv[rows, c:c + hd]               # q  (scale already folded)
            qkvh_scr[1, g] = qkv[rows, D + c:D + c + hd]       # k
            qkvh_scr[2, g] = qkv[rows, 2 * D + c:2 * D + c + hd]  # v

    qh = qkvh_scr[0]                                           # (Bt*H, S, hd)
    kh = qkvh_scr[1]
    vh = qkvh_scr[2]

    # ---- scores: batched QK^T, contracting the last dims (no explicit kh.T) ----
    scores = jnp.einsum('gqd,gkd->gqk', qh, kh,
                        preferred_element_type=jnp.float32)    # (Bt*H, S, S)

    # ---- softmax in float32 (matches torch softmax(dtype=float32)) ----
    m = jnp.max(scores, axis=-1, keepdims=True)
    e = jnp.exp(scores - m)
    denom = jnp.sum(e, axis=-1, keepdims=True)
    # approx=True would push the divide onto the EUP slot but adds ~1e-4 relative
    # error; kept exact to preserve 1e-5 parity with the f32 reference.
    w = e * pl.reciprocal(denom, approx=False)                 # (Bt*H, S, S)

    if attw_ref is not None:
        attw_ref[...] = w.reshape(Bt, H, S, S).astype(attw_ref.dtype)

    # TODO(synk): dropout during training would need pltpu.prng_* masking here;
    # attention_dropout = 0.0 / eval mode makes it a no-op.

    # ---- context: batched P @ V ----
    ctx = jnp.einsum('gqk,gkd->gqd', w, vh,
                     preferred_element_type=jnp.float32)       # (Bt*H, S, hd)

    # ---- head merge into (Bt*S, D) scratch so out_proj is one wide matmul ----
    for b in range(Bt):
        for h in range(H):
            o_scr[b * S:(b + 1) * S, h * hd:(h + 1) * hd] = ctx[b * H + h]

    out = jnp.dot(o_scr[...], wo_ref[...],
                  preferred_element_type=jnp.float32) + bo_ref[...]     # (Bt*S, D)
    out_ref[...] = out.reshape(Bt, S, D).astype(out_ref.dtype)


# ------------------------------ host wrapper ------------------------------
def siglip_attention(x, wq, bq, wk, bk, wv, bv, wo, bo, *, num_heads,
                     block_b=None, return_attn_weights=True):
    """x: (B, S, D).  w*: (D, D) torch-style (out, in).  b*: (D,)."""
    B, S, D = x.shape
    H = num_heads
    hd = D // H
    scale = hd ** (-0.5)

    # Pre-transpose to (in, out); fuse q/k/v into one (D, 3D) weight and fold the
    # softmax scale into the Q part (removes the per-head "* scale" in the kernel).
    wq_t, wk_t, wv_t, wo_t = (jnp.transpose(w) for w in (wq, wk, wv, wo))
    wqkv = jnp.concatenate([wq_t * scale, wk_t, wv_t], axis=1)          # (D, 3D)
    bqkv = jnp.concatenate([bq * scale, bk, bv]).reshape(1, 3 * D)      # (1, 3D)
    bo2 = bo.reshape(1, D)

    # Batch tiling: process several batch rows per grid step.  For the toy shape
    # (B=2) the whole problem is one grid step; for larger B, block_b=8 keeps
    # several independent "parallel" steps for megacore (v7x: 2 TCs).
    if block_b is None:
        block_b = next(bb for bb in (8, 4, 2, 1) if B % bb == 0)
    assert B % block_b == 0, "batch must be divisible by block_b"
    grid = (B // block_b,)

    kernel = functools.partial(_siglip_attn_kernel, num_heads=H, head_dim=hd,
                               with_attw=return_attn_weights)

    out_shapes = [jax.ShapeDtypeStruct((B, S, D), x.dtype)]
    out_specs = [pl.BlockSpec((block_b, S, D), lambda i: (i, 0, 0))]
    if return_attn_weights:
        out_shapes.append(jax.ShapeDtypeStruct((B, H, S, S), x.dtype))
        out_specs.append(pl.BlockSpec((block_b, H, S, S), lambda i: (i, 0, 0, 0)))

    scratch_shapes = [
        pltpu.VMEM((3, block_b * H, S, hd), jnp.float32),   # head-batched q/k/v
        pltpu.VMEM((block_b * S, D), jnp.float32),          # merged head context
    ]

    def run(single_buffer_weights):
        # Constant-index weight/bias blocks never re-DMA across grid steps;
        # single-buffer them to reclaim VMEM (matters at real SigLIP sizes).
        mode = pl.Buffered(1) if single_buffer_weights else None

        def const_spec(shape):
            if mode is None:
                return pl.BlockSpec(shape, lambda i: (0,) * len(shape))
            return pl.BlockSpec(shape, lambda i: (0,) * len(shape),
                                pipeline_mode=mode)

        grid_spec = pltpu.PrefetchScalarGridSpec(
            num_scalar_prefetch=0,
            grid=grid,
            in_specs=[
                pl.BlockSpec((block_b, S, D), lambda i: (i, 0, 0)),     # x
                const_spec((D, 3 * D)),                                 # wqkv
                const_spec((1, 3 * D)),                                 # bqkv
                const_spec((D, D)),                                     # wo
                const_spec((1, D)),                                     # bo
            ],
            out_specs=tuple(out_specs),
            scratch_shapes=scratch_shapes,
        )
        return pl.pallas_call(
            kernel,
            out_shape=tuple(out_shapes),
            grid_spec=grid_spec,
            compiler_params=pltpu.CompilerParams(
                dimension_semantics=("parallel",),
                vmem_limit_bytes=32 * 1024 * 1024,
            ),
        )(x, wqkv, bqkv, wo_t, bo2)

    try:
        res = run(True)
    except Exception:
        # TODO(synk): pl.Buffered(1) rejected by this jax build; fall back to the
        # default double-buffered weight blocks (correctness unchanged).
        res = run(False)

    attn_out = res[0]
    attn_w = res[1] if return_attn_weights else None
    return attn_out, attn_w


# --------------------------- pure-JAX reference ---------------------------
def siglip_attention_ref(x, wq, bq, wk, bk, wv, bv, wo, bo, *, num_heads):
    B, S, D = x.shape
    hd = D // num_heads
    scale = hd ** (-0.5)

    def proj(w, b):
        return jnp.einsum('bsd,ed->bse', x, w) + b  # torch Linear: x @ W.T + b

    def to_heads(t):
        return t.reshape(B, S, num_heads, hd).transpose(0, 2, 1, 3)

    q, k, v = to_heads(proj(wq, bq)), to_heads(proj(wk, bk)), to_heads(proj(wv, bv))
    scores = jnp.einsum('bhqd,bhkd->bhqk', q, k) * scale
    w = jax.nn.softmax(scores.astype(jnp.float32), axis=-1).astype(x.dtype)
    o = jnp.einsum('bhqk,bhkd->bhqd', w, v)
    o = o.transpose(0, 2, 1, 3).reshape(B, S, D)
    out = jnp.einsum('bsd,ed->bse', o, wo) + bo
    return out, w


# --------------------------------- main -----------------------------------
if __name__ == "__main__":
    # Toy SiglipConfig: hidden_size=32, num_attention_heads=4, dropout=0.0.
    B, S, D, H = 2, 8, 32, 4

    key = jax.random.PRNGKey(0)
    keys = jax.random.split(key, 9)
    x = jax.random.normal(keys[0], (B, S, D), dtype=jnp.float32)

    # Deterministic parameter init (torch Linear stores weight as (out, in)).
    init = 0.05
    wq = init * jax.random.normal(keys[1], (D, D), dtype=jnp.float32)
    wk = init * jax.random.normal(keys[2], (D, D), dtype=jnp.float32)
    wv = init * jax.random.normal(keys[3], (D, D), dtype=jnp.float32)
    wo = init * jax.random.normal(keys[4], (D, D), dtype=jnp.float32)
    bq = init * jax.random.normal(keys[5], (D,), dtype=jnp.float32)
    bk = init * jax.random.normal(keys[6], (D,), dtype=jnp.float32)
    bv = init * jax.random.normal(keys[7], (D,), dtype=jnp.float32)
    bo = init * jax.random.normal(keys[8], (D,), dtype=jnp.float32)

    out, attw = siglip_attention(x, wq, bq, wk, bk, wv, bv, wo, bo, num_heads=H)
    out, attw = jax.block_until_ready((out, attw))

    ref_out, ref_w = siglip_attention_ref(
        x, wq, bq, wk, bk, wv, bv, wo, bo, num_heads=H)

    assert out.shape == (B, S, D) and attw.shape == (B, H, S, S)
    assert jnp.allclose(out, ref_out, atol=1e-5, rtol=1e-5)
    assert jnp.allclose(attw, ref_w, atol=1e-5, rtol=1e-5)

    # Fast path: skip the attention-weights writeback entirely.
    out_only, no_w = siglip_attention(x, wq, bq, wk, bk, wv, bv, wo, bo,
                                      num_heads=H, return_attn_weights=False)
    out_only = jax.block_until_ready(out_only)
    assert no_w is None
    assert jnp.allclose(out_only, ref_out, atol=1e-5, rtol=1e-5)

    print("KERNEL_OK")
</pallas_src>

<mosaic_0001>
module attributes {stable_mosaic.version = 11 : i64} {
  func.func @_siglip_attn_kernel(%arg0: i32, %arg1: memref<2x8x32xf32, #tpu.memory_space<vmem>>, %arg2: memref<32x96xf32, #tpu.memory_space<vmem>>, %arg3: memref<1x96xf32, #tpu.memory_space<vmem>>, %arg4: memref<32x32xf32, #tpu.memory_space<vmem>>, %arg5: memref<1x32xf32, #tpu.memory_space<vmem>>, %arg6: memref<2x8x32xf32, #tpu.memory_space<vmem>>, %arg7: memref<2x4x8x8xf32, #tpu.memory_space<vmem>>, %arg8: memref<3x8x8x8xf32, #tpu.memory_space<vmem>>, %arg9: memref<16x32xf32, #tpu.memory_space<vmem>>) attributes {dimension_semantics = [#tpu.dimension_semantics<parallel>], iteration_bounds = array<i64: 1>, scalar_prefetch = 0 : i64, scratch_operands = 2 : i64, tpu.core_type = #tpu.core_type<tc>, window_params = [{transform_indices = @transform_0, window_bounds = array<i64: 2, 8, 32>}, {pipeline_mode = #tpu.pipeline_mode<synchronous>, transform_indices = @transform_1, window_bounds = array<i64: 32, 96>}, {pipeline_mode = #tpu.pipeline_mode<synchronous>, transform_indices = @transform_2, window_bounds = array<i64: 1, 96>}, {pipeline_mode = #tpu.pipeline_mode<synchronous>, transform_indices = @transform_3, window_bounds = array<i64: 32, 32>}, {pipeline_mode = #tpu.pipeline_mode<synchronous>, transform_indices = @transform_4, window_bounds = array<i64: 1, 32>}, {transform_indices = @transform_5, window_bounds = array<i64: 2, 8, 32>}, {transform_indices = @transform_6, window_bounds = array<i64: 2, 4, 8, 8>}]} {
    %c0 = arith.constant 0 : index
    %c0_0 = arith.constant 0 : index
    %c0_1 = arith.constant 0 : index
    %0 = vector.load %arg1[%c0, %c0_0, %c0_1] : memref<2x8x32xf32, #tpu.memory_space<vmem>>, vector<2x8x32xf32>
    %1 = vector.shape_cast %0 : vector<2x8x32xf32> to vector<16x32xf32>
    %c0_2 = arith.constant 0 : index
    %c0_3 = arith.constant 0 : index
    %2 = vector.load %arg2[%c0_2, %c0_3] : memref<32x96xf32, #tpu.memory_space<vmem>>, vector<32x96xf32>
    %cst = arith.constant dense<0.000000e+00> : vector<16x96xf32>
    %3 = tpu.matmul %1, %2, %cst {dimension_numbers = #tpu.dot_dimension_numbers<[1], [0], [0], [1], [0, 0, 1, 1], [], []>} : vector<16x32xf32>, vector<32x96xf32>, vector<16x96xf32> -> vector<16x96xf32>
    %c0_4 = arith.constant 0 : index
    %c0_5 = arith.constant 0 : index
    %4 = vector.load %arg3[%c0_4, %c0_5] : memref<1x96xf32, #tpu.memory_space<vmem>>, vector<1x96xf32>
    %5 = vector.broadcast %4 : vector<1x96xf32> to vector<16x96xf32>
    %6 = arith.addf %3, %5 : vector<16x96xf32>
    %7 = vector.extract_strided_slice %6 {offsets = [0, 0], sizes = [8, 8], strides = [1, 1]} : vector<16x96xf32> to vector<8x8xf32>
    %c0_6 = arith.constant 0 : index
    %c0_7 = arith.constant 0 : index
    %c0_8 = arith.constant 0 : index
    %c0_9 = arith.constant 0 : index
    %8 = vector.load %arg8[%c0_6, %c0_7, %c0_8, %c0_9] : memref<3x8x8x8xf32, #tpu.memory_space<vmem>>, vector<1x1x8x8xf32>
    %9 = vector.shape_cast %8 : vector<1x1x8x8xf32> to vector<8x8xf32>
    %10 = vector.shape_cast %7 : vector<8x8xf32> to vector<1x1x8x8xf32>
    tpu.vector_store %arg8[%c0_6, %c0_7, %c0_8, %c0_9], %10 {strides = array<i32>} : memref<3x8x8x8xf32, #tpu.memory_space<vmem>>, vector<1x1x8x8xf32>,
    %11 = vector.extract_strided_slice %6 {offsets = [0, 32], sizes = [8, 8], strides = [1, 1]} : vector<16x96xf32> to vector<8x8xf32>
    %c1 = arith.constant 1 : index
    %c0_10 = arith.constant 0 : index
    %c0_11 = arith.constant 0 : index
    %c0_12 = arith.constant 0 : index
    %12 = vector.load %arg8[%c1, %c0_10, %c0_11, %c0_12] : memref<3x8x8x8xf32, #tpu.memory_space<vmem>>, vector<1x1x8x8xf32>
    %13 = vector.shape_cast %12 : vector<1x1x8x8xf32> to vector<8x8xf32>
    %14 = vector.shape_cast %11 : vector<8x8xf32> to vector<1x1x8x8xf32>
    tpu.vector_store %arg8[%c1, %c0_10, %c0_11, %c0_12], %14 {strides = array<i32>} : memref<3x8x8x8xf32, #tpu.memory_space<vmem>>, vector<1x1x8x8xf32>,
    %15 = vector.extract_strided_slice %6 {offsets = [0, 64], sizes = [8, 8], strides = [1, 1]} : vector<16x96xf32> to vector<8x8xf32>
    %c2 = arith.constant 2 : index
    %c0_13 = arith.constant 0 : index
    %c0_14 = arith.constant 0 : index
    %c0_15 = arith.constant 0 : index
    %16 = vector.load %arg8[%c2, %c0_13, %c0_14, %c0_15] : memref<3x8x8x8xf32, #tpu.memory_space<vmem>>, vector<1x1x8x8xf32>
    %17 = vector.shape_cast %16 : vector<1x1x8x8xf32> to vector<8x8xf32>
    %18 = vector.shape_cast %15 : vector<8x8xf32> to vector<1x1x8x8xf32>
    tpu.vector_store %arg8[%c2, %c0_13, %c0_14, %c0_15], %18 {strides = array<i32>} : memref<3x8x8x8xf32, #tpu.memory_space<vmem>>, vector<1x1x8x8xf32>,
    %19 = vector.extract_strided_slice %6 {offsets = [0, 8], sizes = [8, 8], strides = [1, 1]} : vector<16x96xf32> to vector<8x8xf32>
    %c0_16 = arith.constant 0 : index
    %c1_17 = arith.constant 1 : index
    %c0_18 = arith.constant 0 : index
    %c0_19 = arith.constant 0 : index
    %20 = vector.load %arg8[%c0_16, %c1_17, %c0_18, %c0_19] : memref<3x8x8x8xf32, #tpu.memory_space<vmem>>, vector<1x1x8x8xf32>
    %21 = vector.shape_cast %20 : vector<1x1x8x8xf32> to vector<8x8xf32>
    %22 = vector.shape_cast %19 : vector<8x8xf32> to vector<1x1x8x8xf32>
    tpu.vector_store %arg8[%c0_16, %c1_17, %c0_18, %c0_19], %22 {strides = array<i32>} : memref<3x8x8x8xf32, #tpu.memory_space<vmem>>, vector<1x1x8x8xf32>,
    %23 = vector.extract_strided_slice %6 {offsets = [0, 40], sizes = [8, 8], strides = [1, 1]} : vector<16x96xf32> to vector<8x8xf32>
    %c1_20 = arith.constant 1 : index
    %c1_21 = arith.constant 1 : index
    %c0_22 = arith.constant 0 : index
    %c0_23 = arith.constant 0 : index
    %24 = vector.load %arg8[%c1_20, %c1_21, %c0_22, %c0_23] : memref<3x8x8x8xf32, #tpu.memory_space<vmem>>, vector<1x1x8x8xf32>
    %25 = vector.shape_cast %24 : vector<1x1x8x8xf32> to vector<8x8xf32>
    %26 = vector.shape_cast %23 : vector<8x8xf32> to vector<1x1x8x8xf32>
    tpu.vector_store %arg8[%c1_20, %c1_21, %c0_22, %c0_23], %26 {strides = array<i32>} : memref<3x8x8x8xf32, #tpu.memory_space<vmem>>, vector<1x1x8x8xf32>,
    %27 = vector.extract_strided_slice %6 {offsets = [0, 72], sizes = [8, 8], strides = [1, 1]} : vector<16x96xf32> to vector<8x8xf32>
    %c2_24 = arith.constant 2 : index
    %c1_25 = arith.constant 1 : index
    %c0_26 = arith.constant 0 : index
    %c0_27 = arith.constant 0 : index
    %28 = vector.load %arg8[%c2_24, %c1_25, %c0_26, %c0_27] : memref<3x8x8x8xf32, #tpu.memory_space<vmem>>, vector<1x1x8x8xf32>
    %29 = vector.shape_cast %28 : vector<1x1x8x8xf32> to vector<8x8xf32>
    %30 = vector.shape_cast %27 : vector<8x8xf32> to vector<1x1x8x8xf32>
    tpu.vector_store %arg8[%c2_24, %c1_25, %c0_26, %c0_27], %30 {strides = array<i32>} : memref<3x8x8x8xf32, #tpu.memory_space<vmem>>, vector<1x1x8x8xf32>,
    %31 = vector.extract_strided_slice %6 {offsets = [0, 16], sizes = [8, 8], strides = [1, 1]} : vector<16x96xf32> to vector<8x8xf32>
    %c0_28 = arith.constant 0 : index
    %c2_29 = arith.constant 2 : index
    %c0_30 = arith.constant 0 : index
    %c0_31 = arith.constant 0 : index
    %32 = vector.load %arg8[%c0_28, %c2_29, %c0_30, %c0_31] : memref<3x8x8x8xf32, #tpu.memory_space<vmem>>, vector<1x1x8x8xf32>
    %33 = vector.shape_cast %32 : vector<1x1x8x8xf32> to vector<8x8xf32>
    %34 = vector.shape_cast %31 : vector<8x8xf32> to vector<1x1x8x8xf32>
    tpu.vector_store %arg8[%c0_28, %c2_29, %c0_30, %c0_31], %34 {strides = array<i32>} : memref<3x8x8x8xf32, #tpu.memory_space<vmem>>, vector<1x1x8x8xf32>,
    %35 = vector.extract_strided_slice %6 {offsets = [0, 48], sizes = [8, 8], strides = [1, 1]} : vector<16x96xf32> to vector<8x8xf32>
    %c1_32 = arith.constant 1 : index
    %c2_33 = arith.constant 2 : index
    %c0_34 = arith.constant 0 : index
    %c0_35 = arith.constant 0 : index
    %36 = vector.load %arg8[%c1_32, %c2_33, %c0_34, %c0_35] : memref<3x8x8x8xf32, #tpu.memory_space<vmem>>, vector<1x1x8x8xf32>
    %37 = vector.shape_cast %36 : vector<1x1x8x8xf32> to vector<8x8xf32>
    %38 = vector.shape_cast %35 : vector<8x8xf32> to vector<1x1x8x8xf32>
    tpu.vector_store %arg8[%c1_32, %c2_33, %c0_34, %c0_35], %38 {strides = array<i32>} : memref<3x8x8x8xf32, #tpu.memory_space<vmem>>, vector<1x1x8x8xf32>,
    %39 = vector.extract_strided_slice %6 {offsets = [0, 80], sizes = [8, 8], strides = [1, 1]} : vector<16x96xf32> to vector<8x8xf32>
    %c2_36 = arith.constant 2 : index
    %c2_37 = arith.constant 2 : index
    %c0_38 = arith.constant 0 : index
    %c0_39 = arith.constant 0 : index
    %40 = vector.load %arg8[%c2_36, %c2_37, %c0_38, %c0_39] : memref<3x8x8x8xf32, #tpu.memory_space<vmem>>, vector<1x1x8x8xf32>
    %41 = vector.shape_cast %40 : vector<1x1x8x8xf32> to vector<8x8xf32>
    %42 = vector.shape_cast %39 : vector<8x8xf32> to vector<1x1x8x8xf32>
    tpu.vector_store %arg8[%c2_36, %c2_37, %c0_38, %c0_39], %42 {strides = array<i32>} : memref<3x8x8x8xf32, #tpu.memory_space<vmem>>, vector<1x1x8x8xf32>,
    %43 = vector.extract_strided_slice %6 {offsets = [0, 24], sizes = [8, 8], strides = [1, 1]} : vector<16x96xf32> to vector<8x8xf32>
    %c0_40 = arith.constant 0 : index
    %c3 = arith.constant 3 : index
    %c0_41 = arith.constant 0 : index
    %c0_42 = arith.constant 0 : index
    %44 = vector.load %arg8[%c0_40, %c3, %c0_41, %c0_42] : memref<3x8x8x8xf32, #tpu.memory_space<vmem>>, vector<1x1x8x8xf32>
    %45 = vector.shape_cast %44 : vector<1x1x8x8xf32> to vector<8x8xf32>
    %46 = vector.shape_cast %43 : vector<8x8xf32> to vector<1x1x8x8xf32>
    tpu.vector_store %arg8[%c0_40, %c3, %c0_41, %c0_42], %46 {strides = array<i32>} : memref<3x8x8x8xf32, #tpu.memory_space<vmem>>, vector<1x1x8x8xf32>,
    %47 = vector.extract_strided_slice %6 {offsets = [0, 56], sizes = [8, 8], strides = [1, 1]} : vector<16x96xf32> to vector<8x8xf32>
    %c1_43 = arith.constant 1 : index
    %c3_44 = arith.constant 3 : index
    %c0_45 = arith.constant 0 : index
    %c0_46 = arith.constant 0 : index
    %48 = vector.load %arg8[%c1_43, %c3_44, %c0_45, %c0_46] : memref<3x8x8x8xf32, #tpu.memory_space<vmem>>, vector<1x1x8x8xf32>
    %49 = vector.shape_cast %48 : vector<1x1x8x8xf32> to vector<8x8xf32>
    %50 = vector.shape_cast %47 : vector<8x8xf32> to vector<1x1x8x8xf32>
    tpu.vector_store %arg8[%c1_43, %c3_44, %c0_45, %c0_46], %50 {strides = array<i32>} : memref<3x8x8x8xf32, #tpu.memory_space<vmem>>, vector<1x1x8x8xf32>,
    %51 = vector.extract_strided_slice %6 {offsets = [0, 88], sizes = [8, 8], strides = [1, 1]} : vector<16x96xf32> to vector<8x8xf32>
    %c2_47 = arith.constant 2 : index
    %c3_48 = arith.constant 3 : index
    %c0_49 = arith.constant 0 : index
    %c0_50 = arith.constant 0 : index
    %52 = vector.load %arg8[%c2_47, %c3_48, %c0_49, %c0_50] : memref<3x8x8x8xf32, #tpu.memory_space<vmem>>, vector<1x1x8x8xf32>
    %53 = vector.shape_cast %52 : vector<1x1x8x8xf32> to vector<8x8xf32>
    %54 = vector.shape_cast %51 : vector<8x8xf32> to vector<1x1x8x8xf32>
    tpu.vector_store %arg8[%c2_47, %c3_48, %c0_49, %c0_50], %54 {strides = array<i32>} : memref<3x8x8x8xf32, #tpu.memory_space<vmem>>, vector<1x1x8x8xf32>,
    %55 = vector.extract_strided_slice %6 {offsets = [8, 0], sizes = [8, 8], strides = [1, 1]} : vector<16x96xf32> to vector<8x8xf32>
    %c0_51 = arith.constant 0 : index
    %c4 = arith.constant 4 : index
    %c0_52 = arith.constant 0 : index
    %c0_53 = arith.constant 0 : index
    %56 = vector.load %arg8[%c0_51, %c4, %c0_52, %c0_53] : memref<3x8x8x8xf32, #tpu.memory_space<vmem>>, vector<1x1x8x8xf32>
    %57 = vector.shape_cast %56 : vector<1x1x8x8xf32> to vector<8x8xf32>
    %58 = vector.shape_cast %55 : vector<8x8xf32> to vector<1x1x8x8xf32>
    tpu.vector_store %arg8[%c0_51, %c4, %c0_52, %c0_53], %58 {strides = array<i32>} : memref<3x8x8x8xf32, #tpu.memory_space<vmem>>, vector<1x1x8x8xf32>,
    %59 = vector.extract_strided_slice %6 {offsets = [8, 32], sizes = [8, 8], strides = [1, 1]} : vector<16x96xf32> to vector<8x8xf32>
    %c1_54 = arith.constant 1 : index
    %c4_55 = arith.constant 4 : index
    %c0_56 = arith.constant 0 : index
    %c0_57 = arith.constant 0 : index
    %60 = vector.load %arg8[%c1_54, %c4_55, %c0_56, %c0_57] : memref<3x8x8x8xf32, #tpu.memory_space<vmem>>, vector<1x1x8x8xf32>
    %61 = vector.shape_cast %60 : vector<1x1x8x8xf32> to vector<8x8xf32>
    %62 = vector.shape_cast %59 : vector<8x8xf32> to vector<1x1x8x8xf32>
    tpu.vector_store %arg8[%c1_54, %c4_55, %c0_56, %c0_57], %62 {strides = array<i32>} : memref<3x8x8x8xf32, #tpu.memory_space<vmem>>, vector<1x1x8x8xf32>,
    %63 = vector.extract_strided_slice %6 {offsets = [8, 64], sizes = [8, 8], strides = [1, 1]} : vector<16x96xf32> to vector<8x8xf32>
    %c2_58 = arith.constant 2 : index
    %c4_59 = arith.constant 4 : index
    %c0_60 = arith.constant 0 : index
    %c0_61 = arith.constant 0 : index
    %64 = vector.load %arg8[%c2_58, %c4_59, %c0_60, %c0_61] : memref<3x8x8x8xf32, #tpu.memory_space<vmem>>, vector<1x1x8x8xf32>
    %65 = vector.shape_cast %64 : vector<1x1x8x8xf32> to vector<8x8xf32>
    %66 = vector.shape_cast %63 : vector<8x8xf32> to vector<1x1x8x8xf32>
    tpu.vector_store %arg8[%c2_58, %c4_59, %c0_60, %c0_61], %66 {strides = array<i32>} : memref<3x8x8x8xf32, #tpu.memory_space<vmem>>, vector<1x1x8x8xf32>,
    %67 = vector.extract_strided_slice %6 {offsets = [8, 8], sizes = [8, 8], strides = [1, 1]} : vector<16x96xf32> to vector<8x8xf32>
    %c0_62 = arith.constant 0 : index
    %c5 = arith.constant 5 : index
    %c0_63 = arith.constant 0 : index
    %c0_64 = arith.constant 0 : index
    %68 = vector.load %arg8[%c0_62, %c5, %c0_63, %c0_64] : memref<3x8x8x8xf32, #tpu.memory_space<vmem>>, vector<1x1x8x8xf32>
    %69 = vector.shape_cast %68 : vector<1x1x8x8xf32> to vector<8x8xf32>
    %70 = vector.shape_cast %67 : vector<8x8xf32> to vector<1x1x8x8xf32>
    tpu.vector_store %arg8[%c0_62, %c5, %c0_63, %c0_64], %70 {strides = array<i32>} : memref<3x8x8x8xf32, #tpu.memory_space<vmem>>, vector<1x1x8x8xf32>,
    %71 = vector.extract_strided_slice %6 {offsets = [8, 40], sizes = [8, 8], strides = [1, 1]} : vector<16x96xf32> to vector<8x8xf32>
    %c1_65 = arith.constant 1 : index
    %c5_66 = arith.constant 5 : index
    %c0_67 = arith.constant 0 : index
    %c0_68 = arith.constant 0 : index
    %72 = vector.load %arg8[%c1_65, %c5_66, %c0_67, %c0_68] : memref<3x8x8x8xf32, #tpu.memory_space<vmem>>, vector<1x1x8x8xf32>
    %73 = vector.shape_cast %72 : vector<1x1x8x8xf32> to vector<8x8xf32>
    %74 = vector.shape_cast %71 : vector<8x8xf32> to vector<1x1x8x8xf32>
    tpu.vector_store %arg8[%c1_65, %c5_66, %c0_67, %c0_68], %74 {strides = array<i32>} : memref<3x8x8x8xf32, #tpu.memory_space<vmem>>, vector<1x1x8x8xf32>,
    %75 = vector.extract_strided_slice %6 {offsets = [8, 72], sizes = [8, 8], strides = [1, 1]} : vector<16x96xf32> to vector<8x8xf32>
    %c2_69 = arith.constant 2 : index
    %c5_70 = arith.constant 5 : index
    %c0_71 = arith.constant 0 : index
    %c0_72 = arith.constant 0 : index
    %76 = vector.load %arg8[%c2_69, %c5_70, %c0_71, %c0_72] : memref<3x8x8x8xf32, #tpu.memory_space<vmem>>, vector<1x1x8x8xf32>
    %77 = vector.shape_cast %76 : vector<1x1x8x8xf32> to vector<8x8xf32>
    %78 = vector.shape_cast %75 : vector<8x8xf32> to vector<1x1x8x8xf32>
    tpu.vector_store %arg8[%c2_69, %c5_70, %c0_71, %c0_72], %78 {strides = array<i32>} : memref<3x8x8x8xf32, #tpu.memory_space<vmem>>, vector<1x1x8x8xf32>,
    %79 = vector.extract_strided_slice %6 {offsets = [8, 16], sizes = [8, 8], strides = [1, 1]} : vector<16x96xf32> to vector<8x8xf32>
    %c0_73 = arith.constant 0 : index
    %c6 = arith.constant 6 : index
    %c0_74 = arith.constant 0 : index
    %c0_75 = arith.constant 0 : index
    %80 = vector.load %arg8[%c0_73, %c6, %c0_74, %c0_75] : memref<3x8x8x8xf32, #tpu.memory_space<vmem>>, vector<1x1x8x8xf32>
    %81 = vector.shape_cast %80 : vector<1x1x8x8xf32> to vector<8x8xf32>
    %82 = vector.shape_cast %79 : vector<8x8xf32> to vector<1x1x8x8xf32>
    tpu.vector_store %arg8[%c0_73, %c6, %c0_74, %c0_75], %82 {strides = array<i32>} : memref<3x8x8x8xf32, #tpu.memory_space<vmem>>, vector<1x1x8x8xf32>,
    %83 = vector.extract_strided_slice %6 {offsets = [8, 48], sizes = [8, 8], strides = [1, 1]} : vector<16x96xf32> to vector<8x8xf32>
    %c1_76 = arith.constant 1 : index
    %c6_77 = arith.constant 6 : index
    %c0_78 = arith.constant 0 : index
    %c0_79 = arith.constant 0 : index
    %84 = vector.load %arg8[%c1_76, %c6_77, %c0_78, %c0_79] : memref<3x8x8x8xf32, #tpu.memory_space<vmem>>, vector<1x1x8x8xf32>
    %85 = vector.shape_cast %84 : vector<1x1x8x8xf32> to vector<8x8xf32>
    %86 = vector.shape_cast %83 : vector<8x8xf32> to vector<1x1x8x8xf32>
    tpu.vector_store %arg8[%c1_76, %c6_77, %c0_78, %c0_79], %86 {strides = array<i32>} : memref<3x8x8x8xf32, #tpu.memory_space<vmem>>, vector<1x1x8x8xf32>,
    %87 = vector.extract_strided_slice %6 {offsets = [8, 80], sizes = [8, 8], strides = [1, 1]} : vector<16x96xf32> to vector<8x8xf32>
    %c2_80 = arith.constant 2 : index
    %c6_81 = arith.constant 6 : index
    %c0_82 = arith.constant 0 : index
    %c0_83 = arith.constant 0 : index
    %88 = vector.load %arg8[%c2_80, %c6_81, %c0_82, %c0_83] : memref<3x8x8x8xf32, #tpu.memory_space<vmem>>, vector<1x1x8x8xf32>
    %89 = vector.shape_cast %88 : vector<1x1x8x8xf32> to vector<8x8xf32>
    %90 = vector.shape_cast %87 : vector<8x8xf32> to vector<1x1x8x8xf32>
    tpu.vector_store %arg8[%c2_80, %c6_81, %c0_82, %c0_83], %90 {strides = array<i32>} : memref<3x8x8x8xf32, #tpu.memory_space<vmem>>, vector<1x1x8x8xf32>,
    %91 = vector.extract_strided_slice %6 {offsets = [8, 24], sizes = [8, 8], strides = [1, 1]} : vector<16x96xf32> to vector<8x8xf32>
    %c0_84 = arith.constant 0 : index
    %c7 = arith.constant 7 : index
    %c0_85 = arith.constant 0 : index
    %c0_86 = arith.constant 0 : index
    %92 = vector.load %arg8[%c0_84, %c7, %c0_85, %c0_86] : memref<3x8x8x8xf32, #tpu.memory_space<vmem>>, vector<1x1x8x8xf32>
    %93 = vector.shape_cast %92 : vector<1x1x8x8xf32> to vector<8x8xf32>
    %94 = vector.shape_cast %91 : vector<8x8xf32> to vector<1x1x8x8xf32>
    tpu.vector_store %arg8[%c0_84, %c7, %c0_85, %c0_86], %94 {strides = array<i32>} : memref<3x8x8x8xf32, #tpu.memory_space<vmem>>, vector<1x1x8x8xf32>,
    %95 = vector.extract_strided_slice %6 {offsets = [8, 56], sizes = [8, 8], strides = [1, 1]} : vector<16x96xf32> to vector<8x8xf32>
    %c1_87 = arith.constant 1 : index
    %c7_88 = arith.constant 7 : index
    %c0_89 = arith.constant 0 : index
    %c0_90 = arith.constant 0 : index
    %96 = vector.load %arg8[%c1_87, %c7_88, %c0_89, %c0_90] : memref<3x8x8x8xf32, #tpu.memory_space<vmem>>, vector<1x1x8x8xf32>
    %97 = vector.shape_cast %96 : vector<1x1x8x8xf32> to vector<8x8xf32>
    %98 = vector.shape_cast %95 : vector<8x8xf32> to vector<1x1x8x8xf32>
    tpu.vector_store %arg8[%c1_87, %c7_88, %c0_89, %c0_90], %98 {strides = array<i32>} : memref<3x8x8x8xf32, #tpu.memory_space<vmem>>, vector<1x1x8x8xf32>,
    %99 = vector.extract_strided_slice %6 {offsets = [8, 88], sizes = [8, 8], strides = [1, 1]} : vector<16x96xf32> to vector<8x8xf32>
    %c2_91 = arith.constant 2 : index
    %c7_92 = arith.constant 7 : index
    %c0_93 = arith.constant 0 : index
    %c0_94 = arith.constant 0 : index
    %100 = vector.load %arg8[%c2_91, %c7_92, %c0_93, %c0_94] : memref<3x8x8x8xf32, #tpu.memory_space<vmem>>, vector<1x1x8x8xf32>
    %101 = vector.shape_cast %100 : vector<1x1x8x8xf32> to vector<8x8xf32>
    %102 = vector.shape_cast %99 : vector<8x8xf32> to vector<1x1x8x8xf32>
    tpu.vector_store %arg8[%c2_91, %c7_92, %c0_93, %c0_94], %102 {strides = array<i32>} : memref<3x8x8x8xf32, #tpu.memory_space<vmem>>, vector<1x1x8x8xf32>,
    %c0_95 = arith.constant 0 : index
    %c0_96 = arith.constant 0 : index
    %c0_97 = arith.constant 0 : index
    %c0_98 = arith.constant 0 : index
    %103 = vector.load %arg8[%c0_95, %c0_96, %c0_97, %c0_98] : memref<3x8x8x8xf32, #tpu.memory_space<vmem>>, vector<1x8x8x8xf32>
    %104 = vector.shape_cast %103 : vector<1x8x8x8xf32> to vector<8x8x8xf32>
    %c1_99 = arith.constant 1 : index
    %c0_100 = arith.constant 0 : index
    %c0_101 = arith.constant 0 : index
    %c0_102 = arith.constant 0 : index
    %105 = vector.load %arg8[%c1_99, %c0_100, %c0_101, %c0_102] : memref<3x8x8x8xf32, #tpu.memory_space<vmem>>, vector<1x8x8x8xf32>
    %106 = vector.shape_cast %105 : vector<1x8x8x8xf32> to vector<8x8x8xf32>
    %c2_103 = arith.constant 2 : index
    %c0_104 = arith.constant 0 : index
    %c0_105 = arith.constant 0 : index
    %c0_106 = arith.constant 0 : index
    %107 = vector.load %arg8[%c2_103, %c0_104, %c0_105, %c0_106] : memref<3x8x8x8xf32, #tpu.memory_space<vmem>>, vector<1x8x8x8xf32>
    %108 = vector.shape_cast %107 : vector<1x8x8x8xf32> to vector<8x8x8xf32>
    "tpu.trace_start"() <{level = 10 : i32, message = "gqd,gkd->gqk"}> : () -> ()
    %cst_107 = arith.constant dense<0.000000e+00> : vector<8x8x8xf32>
    %109 = tpu.matmul %104, %106, %cst_107 {dimension_numbers = #tpu.dot_dimension_numbers<[2], [2], [1], [1], [0, 0, 0, 1, 1, 1], [0], [0]>} : vector<8x8x8xf32>, vector<8x8x8xf32>, vector<8x8x8xf32> -> vector<8x8x8xf32>
    "tpu.trace_stop"() : () -> ()
    %cst_108 = arith.constant dense<0xFF800000> : vector<8x8xf32>
    %110 = vector.multi_reduction <maximumf>, %109, %cst_108 [2] : vector<8x8x8xf32> to vector<8x8xf32>
    %111 = vector.shape_cast %110 : vector<8x8xf32> to vector<8x8x1xf32>
    %112 = vector.broadcast %111 : vector<8x8x1xf32> to vector<8x8x8xf32>
    %113 = arith.subf %109, %112 : vector<8x8x8xf32>
    %114 = math.exp %113 : vector<8x8x8xf32>
    %cst_109 = arith.constant dense<0.000000e+00> : vector<8x8xf32>
    %115 = vector.multi_reduction <add>, %114, %cst_109 [2] : vector<8x8x8xf32> to vector<8x8xf32>
    %116 = vector.shape_cast %115 : vector<8x8xf32> to vector<8x8x1xf32>
    %117 = tpu.reciprocal %116 : vector<8x8x1xf32> -> vector<8x8x1xf32>
    %118 = vector.broadcast %117 : vector<8x8x1xf32> to vector<8x8x8xf32>
    %119 = arith.mulf %114, %118 : vector<8x8x8xf32>
    %120 = vector.shape_cast %119 : vector<8x8x8xf32> to vector<2x4x8x8xf32>
    %c0_110 = arith.constant 0 : index
    %c0_111 = arith.constant 0 : index
    %c0_112 = arith.constant 0 : index
    %c0_113 = arith.constant 0 : index
    %121 = vector.load %arg7[%c0_110, %c0_111, %c0_112, %c0_113] : memref<2x4x8x8xf32, #tpu.memory_space<vmem>>, vector<2x4x8x8xf32>
    tpu.vector_store %arg7[%c0_110, %c0_111, %c0_112, %c0_113], %120 {strides = array<i32>} : memref<2x4x8x8xf32, #tpu.memory_space<vmem>>, vector<2x4x8x8xf32>,
    "tpu.trace_start"() <{level = 10 : i32, message = "gqk,gkd->gqd"}> : () -> ()
    %cst_114 = arith.constant dense<0.000000e+00> : vector<8x8x8xf32>
    %122 = tpu.matmul %119, %108, %cst_114 {dimension_numbers = #tpu.dot_dimension_numbers<[2], [1], [1], [2], [0, 0, 0, 1, 1, 2], [0], [0]>} : vector<8x8x8xf32>, vector<8x8x8xf32>, vector<8x8x8xf32> -> vector<8x8x8xf32>
    "tpu.trace_stop"() : () -> ()
    %123 = vector.extract_strided_slice %122 {offsets = [0, 0, 0], sizes = [1, 8, 8], strides = [1, 1, 1]} : vector<8x8x8xf32> to vector<1x8x8xf32>
    %124 = vector.shape_cast %123 : vector<1x8x8xf32> to vector<8x8xf32>
    %c0_115 = arith.constant 0 : index
    %c0_116 = arith.constant 0 : index
    %125 = vector.load %arg9[%c0_115, %c0_116] : memref<16x32xf32, #tpu.memory_space<vmem>>, vector<8x8xf32>
    tpu.vector_store %arg9[%c0_115, %c0_116], %124 {strides = array<i32>} : memref<16x32xf32, #tpu.memory_space<vmem>>, vector<8x8xf32>,
    %126 = vector.extract_strided_slice %122 {offsets = [1, 0, 0], sizes = [1, 8, 8], strides = [1, 1, 1]} : vector<8x8x8xf32> to vector<1x8x8xf32>
    %127 = vector.shape_cast %126 : vector<1x8x8xf32> to vector<8x8xf32>
    %c0_117 = arith.constant 0 : index
    %c8 = arith.constant 8 : index
    %128 = vector.load %arg9[%c0_117, %c8] : memref<16x32xf32, #tpu.memory_space<vmem>>, vector<8x8xf32>
    tpu.vector_store %arg9[%c0_117, %c8], %127 {strides = array<i32>} : memref<16x32xf32, #tpu.memory_space<vmem>>, vector<8x8xf32>,
    %129 = vector.extract_strided_slice %122 {offsets = [2, 0, 0], sizes = [1, 8, 8], strides = [1, 1, 1]} : vector<8x8x8xf32> to vector<1x8x8xf32>
    %130 = vector.shape_cast %129 : vector<1x8x8xf32> to vector<8x8xf32>
    %c0_118 = arith.constant 0 : index
    %c16 = arith.constant 16 : index
    %131 = vector.load %arg9[%c0_118, %c16] : memref<16x32xf32, #tpu.memory_space<vmem>>, vector<8x8xf32>
    tpu.vector_store %arg9[%c0_118, %c16], %130 {strides = array<i32>} : memref<16x32xf32, #tpu.memory_space<vmem>>, vector<8x8xf32>,
    %132 = vector.extract_strided_slice %122 {offsets = [3, 0, 0], sizes = [1, 8, 8], strides = [1, 1, 1]} : vector<8x8x8xf32> to vector<1x8x8xf32>
    %133 = vector.shape_cast %132 : vector<1x8x8xf32> to vector<8x8xf32>
    %c0_119 = arith.constant 0 : index
    %c24 = arith.constant 24 : index
    %134 = vector.load %arg9[%c0_119, %c24] : memref<16x32xf32, #tpu.memory_space<vmem>>, vector<8x8xf32>
    tpu.vector_store %arg9[%c0_119, %c24], %133 {strides = array<i32>} : memref<16x32xf32, #tpu.memory_space<vmem>>, vector<8x8xf32>,
    %135 = vector.extract_strided_slice %122 {offsets = [4, 0, 0], sizes = [1, 8, 8], strides = [1, 1, 1]} : vector<8x8x8xf32> to vector<1x8x8xf32>
    %136 = vector.shape_cast %135 : vector<1x8x8xf32> to vector<8x8xf32>
    %c8_120 = arith.constant 8 : index
    %c0_121 = arith.constant 0 : index
    %137 = vector.load %arg9[%c8_120, %c0_121] : memref<16x32xf32, #tpu.memory_space<vmem>>, vector<8x8xf32>
    tpu.vector_store %arg9[%c8_120, %c0_121], %136 {strides = array<i32>} : memref<16x32xf32, #tpu.memory_space<vmem>>, vector<8x8xf32>,
    %138 = vector.extract_strided_slice %122 {offsets = [5, 0, 0], sizes = [1, 8, 8], strides = [1, 1, 1]} : vector<8x8x8xf32> to vector<1x8x8xf32>
    %139 = vector.shape_cast %138 : vector<1x8x8xf32> to vector<8x8xf32>
    %c8_122 = arith.constant 8 : index
    %c8_123 = arith.constant 8 : index
    %140 = vector.load %arg9[%c8_122, %c8_123] : memref<16x32xf32, #tpu.memory_space<vmem>>, vector<8x8xf32>
    tpu.vector_store %arg9[%c8_122, %c8_123], %139 {strides = array<i32>} : memref<16x32xf32, #tpu.memory_space<vmem>>, vector<8x8xf32>,
    %141 = vector.extract_strided_slice %122 {offsets = [6, 0, 0], sizes = [1, 8, 8], strides = [1, 1, 1]} : vector<8x8x8xf32> to vector<1x8x8xf32>
    %142 = vector.shape_cast %141 : vector<1x8x8xf32> to vector<8x8xf32>
    %c8_124 = arith.constant 8 : index
    %c16_125 = arith.constant 16 : index
    %143 = vector.load %arg9[%c8_124, %c16_125] : memref<16x32xf32, #tpu.memory_space<vmem>>, vector<8x8xf32>
    tpu.vector_store %arg9[%c8_124, %c16_125], %142 {strides = array<i32>} : memref<16x32xf32, #tpu.memory_space<vmem>>, vector<8x8xf32>,
    %144 = vector.extract_strided_slice %122 {offsets = [7, 0, 0], sizes = [1, 8, 8], strides = [1, 1, 1]} : vector<8x8x8xf32> to vector<1x8x8xf32>
    %145 = vector.shape_cast %144 : vector<1x8x8xf32> to vector<8x8xf32>
    %c8_126 = arith.constant 8 : index
    %c24_127 = arith.constant 24 : index
    %146 = vector.load %arg9[%c8_126, %c24_127] : memref<16x32xf32, #tpu.memory_space<vmem>>, vector<8x8xf32>
    tpu.vector_store %arg9[%c8_126, %c24_127], %145 {strides = array<i32>} : memref<16x32xf32, #tpu.memory_space<vmem>>, vector<8x8xf32>,
    %c0_128 = arith.constant 0 : index
    %c0_129 = arith.constant 0 : index
    %147 = vector.load %arg9[%c0_128, %c0_129] : memref<16x32xf32, #tpu.memory_space<vmem>>, vector<16x32xf32>
    %c0_130 = arith.constant 0 : index
    %c0_131 = arith.constant 0 : index
    %148 = vector.load %arg4[%c0_130, %c0_131] : memref<32x32xf32, #tpu.memory_space<vmem>>, vector<32x32xf32>
    %cst_132 = arith.constant dense<0.000000e+00> : vector<16x32xf32>
    %149 = tpu.matmul %147, %148, %cst_132 {dimension_numbers = #tpu.dot_dimension_numbers<[1], [0], [0], [1], [0, 0, 1, 1], [], []>} : vector<16x32xf32>, vector<32x32xf32>, vector<16x32xf32> -> vector<16x32xf32>
    %c0_133 = arith.constant 0 : index
    %c0_134 = arith.constant 0 : index
    %150 = vector.load %arg5[%c0_133, %c0_134] : memref<1x32xf32, #tpu.memory_space<vmem>>, vector<1x32xf32>
    %151 = vector.broadcast %150 : vector<1x32xf32> to vector<16x32xf32>
    %152 = arith.addf %149, %151 : vector<16x32xf32>
    %153 = vector.shape_cast %152 : vector<16x32xf32> to vector<2x8x32xf32>
    %c0_135 = arith.constant 0 : index
    %c0_136 = arith.constant 0 : index
    %c0_137 = arith.constant 0 : index
    %154 = vector.load %arg6[%c0_135, %c0_136, %c0_137] : memref<2x8x32xf32, #tpu.memory_space<vmem>>, vector<2x8x32xf32>
    tpu.vector_store %arg6[%c0_135, %c0_136, %c0_137], %153 {strides = array<i32>} : memref<2x8x32xf32, #tpu.memory_space<vmem>>, vector<2x8x32xf32>,
    return
  }
  func.func @transform_0(%arg0: i32) -> (i32, i32, i32) {
    %c0_i32 = arith.constant 0 : i32
    %c0_i32_0 = arith.constant 0 : i32
    %c0_i32_1 = arith.constant 0 : i32
    return %arg0, %c0_i32, %c0_i32_0 : i32, i32, i32
  }
  func.func @transform_1(%arg0: i32) -> (i32, i32) {
    %c0_i32 = arith.constant 0 : i32
    %c0_i32_0 = arith.constant 0 : i32
    %c0_i32_1 = arith.constant 0 : i32
    return %c0_i32, %c0_i32_0 : i32, i32
  }
  func.func @transform_2(%arg0: i32) -> (i32, i32) {
    %c0_i32 = arith.constant 0 : i32
    %c0_i32_0 = arith.constant 0 : i32
    %c0_i32_1 = arith.constant 0 : i32
    return %c0_i32, %c0_i32_0 : i32, i32
  }
  func.func @transform_3(%arg0: i32) -> (i32, i32) {
    %c0_i32 = arith.constant 0 : i32
    %c0_i32_0 = arith.constant 0 : i32
    %c0_i32_1 = arith.constant 0 : i32
    return %c0_i32, %c0_i32_0 : i32, i32
  }
  func.func @transform_4(%arg0: i32) -> (i32, i32) {
    %c0_i32 = arith.constant 0 : i32
    %c0_i32_0 = arith.constant 0 : i32
    %c0_i32_1 = arith.constant 0 : i32
    return %c0_i32, %c0_i32_0 : i32, i32
  }
  func.func @transform_5(%arg0: i32) -> (i32, i32, i32) {
    %c0_i32 = arith.constant 0 : i32
    %c0_i32_0 = arith.constant 0 : i32
    %c0_i32_1 = arith.constant 0 : i32
    return %arg0, %c0_i32, %c0_i32_0 : i32, i32, i32
  }
  func.func @transform_6(%arg0: i32) -> (i32, i32, i32, i32) {
    %c0_i32 = arith.constant 0 : i32
    %c0_i32_0 = arith.constant 0 : i32
    %c0_i32_1 = arith.constant 0 : i32
    %c0_i32_2 = arith.constant 0 : i32
    return %arg0, %c0_i32, %c0_i32_0, %c0_i32_1 : i32, i32, i32, i32
  }
}

module attributes {stable_mosaic.version = 11 : i64} {
  func.func @_siglip_attn_kernel(%arg0: i32, %arg1: memref<2x8x32xf32, #tpu.memory_space<vmem>>, %arg2: memref<32x96xf32, #tpu.memory_space<vmem>>, %arg3: memref<1x96xf32, #tpu.memory_space<vmem>>, %arg4: memref<32x32xf32, #tpu.memory_space<vmem>>, %arg5: memref<1x32xf32, #tpu.memory_space<vmem>>, %arg6: memref<2x8x32xf32, #tpu.memory_space<vmem>>, %arg7: memref<2x4x8x8xf32, #tpu.memory_space<vmem>>, %arg8: memref<3x8x8x8xf32, #tpu.memory_space<vmem>>, %arg9: memref<16x32xf32, #tpu.memory_space<vmem>>) attributes {dimension_semantics = [#tpu.dimension_semantics<parallel>], iteration_bounds = array<i64: 1>, scalar_prefetch = 0 : i64, scratch_operands = 2 : i64, tpu.core_type = #tpu.core_type<tc>, window_params = [{transform_indices = @transform_0, window_bounds = array<i64: 2, 8, 32>}, {pipeline_mode = #tpu.pipeline_mode<synchronous>, transform_indices = @transform_1, window_bounds = array<i64: 32, 96>}, {pipeline_mode = #tpu.pipeline_mode<synchronous>, transform_indices = @transform_2, window_bounds = array<i64: 1, 96>}, {pipeline_mode = #tpu.pipeline_mode<synchronous>, transform_indices = @transform_3, window_bounds = array<i64: 32, 32>}, {pipeline_mode = #tpu.pipeline_mode<synchronous>, transform_indices = @transform_4, window_bounds = array<i64: 1, 32>}, {transform_indices = @transform_5, window_bounds = array<i64: 2, 8, 32>}, {transform_indices = @transform_6, window_bounds = array<i64: 2, 4, 8, 8>}]} {
    %c0 = arith.constant 0 : index
    %c0_0 = arith.constant 0 : index
    %c0_1 = arith.constant 0 : index
    %0 = vector.load %arg1[%c0, %c0_0, %c0_1] : memref<2x8x32xf32, #tpu.memory_space<vmem>>, vector<2x8x32xf32>
    %1 = vector.shape_cast %0 : vector<2x8x32xf32> to vector<16x32xf32>
    %c0_2 = arith.constant 0 : index
    %c0_3 = arith.constant 0 : index
    %2 = vector.load %arg2[%c0_2, %c0_3] : memref<32x96xf32, #tpu.memory_space<vmem>>, vector<32x96xf32>
    %cst = arith.constant dense<0.000000e+00> : vector<16x96xf32>
    %3 = tpu.matmul %1, %2, %cst {dimension_numbers = #tpu.dot_dimension_numbers<[1], [0], [0], [1], [0, 0, 1, 1], [], []>} : vector<16x32xf32>, vector<32x96xf32>, vector<16x96xf32> -> vector<16x96xf32>
    %c0_4 = arith.constant 0 : index
    %c0_5 = arith.constant 0 : index
    %4 = vector.load %arg3[%c0_4, %c0_5] : memref<1x96xf32, #tpu.memory_space<vmem>>, vector<1x96xf32>
    %5 = vector.broadcast %4 : vector<1x96xf32> to vector<16x96xf32>
    %6 = arith.addf %3, %5 : vector<16x96xf32>
    %7 = vector.extract_strided_slice %6 {offsets = [0, 0], sizes = [8, 8], strides = [1, 1]} : vector<16x96xf32> to vector<8x8xf32>
    %c0_6 = arith.constant 0 : index
    %c0_7 = arith.constant 0 : index
    %c0_8 = arith.constant 0 : index
    %c0_9 = arith.constant 0 : index
    %8 = vector.load %arg8[%c0_6, %c0_7, %c0_8, %c0_9] : memref<3x8x8x8xf32, #tpu.memory_space<vmem>>, vector<1x1x8x8xf32>
    %9 = vector.shape_cast %8 : vector<1x1x8x8xf32> to vector<8x8xf32>
    %10 = vector.shape_cast %7 : vector<8x8xf32> to vector<1x1x8x8xf32>
    tpu.vector_store %arg8[%c0_6, %c0_7, %c0_8, %c0_9], %10 {strides = array<i32>} : memref<3x8x8x8xf32, #tpu.memory_space<vmem>>, vector<1x1x8x8xf32>,
    %11 = vector.extract_strided_slice %6 {offsets = [0, 32], sizes = [8, 8], strides = [1, 1]} : vector<16x96xf32> to vector<8x8xf32>
    %c1 = arith.constant 1 : index
    %c0_10 = arith.constant 0 : index
    %c0_11 = arith.constant 0 : index
    %c0_12 = arith.constant 0 : index
    %12 = vector.load %arg8[%c1, %c0_10, %c0_11, %c0_12] : memref<3x8x8x8xf32, #tpu.memory_space<vmem>>, vector<1x1x8x8xf32>
    %13 = vector.shape_cast %12 : vector<1x1x8x8xf32> to vector<8x8xf32>
    %14 = vector.shape_cast %11 : vector<8x8xf32> to vector<1x1x8x8xf32>
    tpu.vector_store %arg8[%c1, %c0_10, %c0_11, %c0_12], %14 {strides = array<i32>} : memref<3x8x8x8xf32, #tpu.memory_space<vmem>>, vector<1x1x8x8xf32>,
    %15 = vector.extract_strided_slice %6 {offsets = [0, 64], sizes = [8, 8], strides = [1, 1]} : vector<16x96xf32> to vector<8x8xf32>
    %c2 = arith.constant 2 : index
    %c0_13 = arith.constant 0 : index
    %c0_14 = arith.constant 0 : index
    %c0_15 = arith.constant 0 : index
    %16 = vector.load %arg8[%c2, %c0_13, %c0_14, %c0_15] : memref<3x8x8x8xf32, #tpu.memory_space<vmem>>, vector<1x1x8x8xf32>
    %17 = vector.shape_cast %16 : vector<1x1x8x8xf32> to vector<8x8xf32>
    %18 = vector.shape_cast %15 : vector<8x8xf32> to vector<1x1x8x8xf32>
    tpu.vector_store %arg8[%c2, %c0_13, %c0_14, %c0_15], %18 {strides = array<i32>} : memref<3x8x8x8xf32, #tpu.memory_space<vmem>>, vector<1x1x8x8xf32>,
    %19 = vector.extract_strided_slice %6 {offsets = [0, 8], sizes = [8, 8], strides = [1, 1]} : vector<16x96xf32> to vector<8x8xf32>
    %c0_16 = arith.constant 0 : index
    %c1_17 = arith.constant 1 : index
    %c0_18 = arith.constant 0 : index
    %c0_19 = arith.constant 0 : index
    %20 = vector.load %arg8[%c0_16, %c1_17, %c0_18, %c0_19] : memref<3x8x8x8xf32, #tpu.memory_space<vmem>>, vector<1x1x8x8xf32>
    %21 = vector.shape_cast %20 : vector<1x1x8x8xf32> to vector<8x8xf32>
    %22 = vector.shape_cast %19 : vector<8x8xf32> to vector<1x1x8x8xf32>
    tpu.vector_store %arg8[%c0_16, %c1_17, %c0_18, %c0_19], %22 {strides = array<i32>} : memref<3x8x8x8xf32, #tpu.memory_space<vmem>>, vector<1x1x8x8xf32>,
    %23 = vector.extract_strided_slice %6 {offsets = [0, 40], sizes = [8, 8], strides = [1, 1]} : vector<16x96xf32> to vector<8x8xf32>
    %c1_20 = arith.constant 1 : index
    %c1_21 = arith.constant 1 : index
    %c0_22 = arith.constant 0 : index
    %c0_23 = arith.constant 0 : index
    %24 = vector.load %arg8[%c1_20, %c1_21, %c0_22, %c0_23] : memref<3x8x8x8xf32, #tpu.memory_space<vmem>>, vector<1x1x8x8xf32>
    %25 = vector.shape_cast %24 : vector<1x1x8x8xf32> to vector<8x8xf32>
    %26 = vector.shape_cast %23 : vector<8x8xf32> to vector<1x1x8x8xf32>
    tpu.vector_store %arg8[%c1_20, %c1_21, %c0_22, %c0_23], %26 {strides = array<i32>} : memref<3x8x8x8xf32, #tpu.memory_space<vmem>>, vector<1x1x8x8xf32>,
    %27 = vector.extract_strided_slice %6 {offsets = [0, 72], sizes = [8, 8], strides = [1, 1]} : vector<16x96xf32> to vector<8x8xf32>
    %c2_24 = arith.constant 2 : index
    %c1_25 = arith.constant 1 : index
    %c0_26 = arith.constant 0 : index
    %c0_27 = arith.constant 0 : index
    %28 = vector.load %arg8[%c2_24, %c1_25, %c0_26, %c0_27] : memref<3x8x8x8xf32, #tpu.memory_space<vmem>>, vector<1x1x8x8xf32>
    %29 = vector.shape_cast %28 : vector<1x1x8x8xf32> to vector<8x8xf32>
    %30 = vector.shape_cast %27 : vector<8x8xf32> to vector<1x1x8x8xf32>
    tpu.vector_store %arg8[%c2_24, %c1_25, %c0_26, %c0_27], %30 {strides = array<i32>} : memref<3x8x8x8xf32, #tpu.memory_space<vmem>>, vector<1x1x8x8xf32>,
    %31 = vector.extract_strided_slice %6 {offsets = [0, 16], sizes = [8, 8], strides = [1, 1]} : vector<16x96xf32> to vector<8x8xf32>
    %c0_28 = arith.constant 0 : index
    %c2_29 = arith.constant 2 : index
    %c0_30 = arith.constant 0 : index
    %c0_31 = arith.constant 0 : index
    %32 = vector.load %arg8[%c0_28, %c2_29, %c0_30, %c0_31] : memref<3x8x8x8xf32, #tpu.memory_space<vmem>>, vector<1x1x8x8xf32>
    %33 = vector.shape_cast %32 : vector<1x1x8x8xf32> to vector<8x8xf32>
    %34 = vector.shape_cast %31 : vector<8x8xf32> to vector<1x1x8x8xf32>
    tpu.vector_store %arg8[%c0_28, %c2_29, %c0_30, %c0_31], %34 {strides = array<i32>} : memref<3x8x8x8xf32, #tpu.memory_space<vmem>>, vector<1x1x8x8xf32>,
    %35 = vector.extract_strided_slice %6 {offsets = [0, 48], sizes = [8, 8], strides = [1, 1]} : vector<16x96xf32> to vector<8x8xf32>
    %c1_32 = arith.constant 1 : index
    %c2_33 = arith.constant 2 : index
    %c0_34 = arith.constant 0 : index
    %c0_35 = arith.constant 0 : index
    %36 = vector.load %arg8[%c1_32, %c2_33, %c0_34, %c0_35] : memref<3x8x8x8xf32, #tpu.memory_space<vmem>>, vector<1x1x8x8xf32>
    %37 = vector.shape_cast %36 : vector<1x1x8x8xf32> to vector<8x8xf32>
    %38 = vector.shape_cast %35 : vector<8x8xf32> to vector<1x1x8x8xf32>
    tpu.vector_store %arg8[%c1_32, %c2_33, %c0_34, %c0_35], %38 {strides = array<i32>} : memref<3x8x8x8xf32, #tpu.memory_space<vmem>>, vector<1x1x8x8xf32>,
    %39 = vector.extract_strided_slice %6 {offsets = [0, 80], sizes = [8, 8], strides = [1, 1]} : vector<16x96xf32> to vector<8x8xf32>
    %c2_36 = arith.constant 2 : index
    %c2_37 = arith.constant 2 : index
    %c0_38 = arith.constant 0 : index
    %c0_39 = arith.constant 0 : index
    %40 = vector.load %arg8[%c2_36, %c2_37, %c0_38, %c0_39] : memref<3x8x8x8xf32, #tpu.memory_space<vmem>>, vector<1x1x8x8xf32>
    %41 = vector.shape_cast %40 : vector<1x1x8x8xf32> to vector<8x8xf32>
    %42 = vector.shape_cast %39 : vector<8x8xf32> to vector<1x1x8x8xf32>
    tpu.vector_store %arg8[%c2_36, %c2_37, %c0_38, %c0_39], %42 {strides = array<i32>} : memref<3x8x8x8xf32, #tpu.memory_space<vmem>>, vector<1x1x8x8xf32>,
    %43 = vector.extract_strided_slice %6 {offsets = [0, 24], sizes = [8, 8], strides = [1, 1]} : vector<16x96xf32> to vector<8x8xf32>
    %c0_40 = arith.constant 0 : index
    %c3 = arith.constant 3 : index
    %c0_41 = arith.constant 0 : index
    %c0_42 = arith.constant 0 : index
    %44 = vector.load %arg8[%c0_40, %c3, %c0_41, %c0_42] : memref<3x8x8x8xf32, #tpu.memory_space<vmem>>, vector<1x1x8x8xf32>
    %45 = vector.shape_cast %44 : vector<1x1x8x8xf32> to vector<8x8xf32>
    %46 = vector.shape_cast %43 : vector<8x8xf32> to vector<1x1x8x8xf32>
    tpu.vector_store %arg8[%c0_40, %c3, %c0_41, %c0_42], %46 {strides = array<i32>} : memref<3x8x8x8xf32, #tpu.memory_space<vmem>>, vector<1x1x8x8xf32>,
    %47 = vector.extract_strided_slice %6 {offsets = [0, 56], sizes = [8, 8], strides = [1, 1]} : vector<16x96xf32> to vector<8x8xf32>
    %c1_43 = arith.constant 1 : index
    %c3_44 = arith.constant 3 : index
    %c0_45 = arith.constant 0 : index
    %c0_46 = arith.constant 0 : index
    %48 = vector.load %arg8[%c1_43, %c3_44, %c0_45, %c0_46] : memref<3x8x8x8xf32, #tpu.memory_space<vmem>>, vector<1x1x8x8xf32>
    %49 = vector.shape_cast %48 : vector<1x1x8x8xf32> to vector<8x8xf32>
    %50 = vector.shape_cast %47 : vector<8x8xf32> to vector<1x1x8x8xf32>
    tpu.vector_store %arg8[%c1_43, %c3_44, %c0_45, %c0_46], %50 {strides = array<i32>} : memref<3x8x8x8xf32, #tpu.memory_space<vmem>>, vector<1x1x8x8xf32>,
    %51 = vector.extract_strided_slice %6 {offsets = [0, 88], sizes = [8, 8], strides = [1, 1]} : vector<16x96xf32> to vector<8x8xf32>
    %c2_47 = arith.constant 2 : index
    %c3_48 = arith.constant 3 : index
    %c0_49 = arith.constant 0 : index
    %c0_50 = arith.constant 0 : index
    %52 = vector.load %arg8[%c2_47, %c3_48, %c0_49, %c0_50] : memref<3x8x8x8xf32, #tpu.memory_space<vmem>>, vector<1x1x8x8xf32>
    %53 = vector.shape_cast %52 : vector<1x1x8x8xf32> to vector<8x8xf32>
    %54 = vector.shape_cast %51 : vector<8x8xf32> to vector<1x1x8x8xf32>
    tpu.vector_store %arg8[%c2_47, %c3_48, %c0_49, %c0_50], %54 {strides = array<i32>} : memref<3x8x8x8xf32, #tpu.memory_space<vmem>>, vector<1x1x8x8xf32>,
    %55 = vector.extract_strided_slice %6 {offsets = [8, 0], sizes = [8, 8], strides = [1, 1]} : vector<16x96xf32> to vector<8x8xf32>
    %c0_51 = arith.constant 0 : index
    %c4 = arith.constant 4 : index
    %c0_52 = arith.constant 0 : index
    %c0_53 = arith.constant 0 : index
    %56 = vector.load %arg8[%c0_51, %c4, %c0_52, %c0_53] : memref<3x8x8x8xf32, #tpu.memory_space<vmem>>, vector<1x1x8x8xf32>
    %57 = vector.shape_cast %56 : vector<1x1x8x8xf32> to vector<8x8xf32>
    %58 = vector.shape_cast %55 : vector<8x8xf32> to vector<1x1x8x8xf32>
    tpu.vector_store %arg8[%c0_51, %c4, %c0_52, %c0_53], %58 {strides = array<i32>} : memref<3x8x8x8xf32, #tpu.memory_space<vmem>>, vector<1x1x8x8xf32>,
    %59 = vector.extract_strided_slice %6 {offsets = [8, 32], sizes = [8, 8], strides = [1, 1]} : vector<16x96xf32> to vector<8x8xf32>
    %c1_54 = arith.constant 1 : index
    %c4_55 = arith.constant 4 : index
    %c0_56 = arith.constant 0 : index
    %c0_57 = arith.constant 0 : index
    %60 = vector.load %arg8[%c1_54, %c4_55, %c0_56, %c0_57] : memref<3x8x8x8xf32, #tpu.memory_space<vmem>>, vector<1x1x8x8xf32>
    %61 = vector.shape_cast %60 : vector<1x1x8x8xf32> to vector<8x8xf32>
    %62 = vector.shape_cast %59 : vector<8x8xf32> to vector<1x1x8x8xf32>
    tpu.vector_store %arg8[%c1_54, %c4_55, %c0_56, %c0_57], %62 {strides = array<i32>} : memref<3x8x8x8xf32, #tpu.memory_space<vmem>>, vector<1x1x8x8xf32>,
    %63 = vector.extract_strided_slice %6 {offsets = [8, 64], sizes = [8, 8], strides = [1, 1]} : vector<16x96xf32> to vector<8x8xf32>
    %c2_58 = arith.constant 2 : index
    %c4_59 = arith.constant 4 : index
    %c0_60 = arith.constant 0 : index
    %c0_61 = arith.constant 0 : index
    %64 = vector.load %arg8[%c2_58, %c4_59, %c0_60, %c0_61] : memref<3x8x8x8xf32, #tpu.memory_space<vmem>>, vector<1x1x8x8xf32>
    %65 = vector.shape_cast %64 : vector<1x1x8x8xf32> to vector<8x8xf32>
    %66 = vector.shape_cast %63 : vector<8x8xf32> to vector<1x1x8x8xf32>
    tpu.vector_store %arg8[%c2_58, %c4_59, %c0_60, %c0_61], %66 {strides = array<i32>} : memref<3x8x8x8xf32, #tpu.memory_space<vmem>>, vector<1x1x8x8xf32>,
    %67 = vector.extract_strided_slice %6 {offsets = [8, 8], sizes = [8, 8], strides = [1, 1]} : vector<16x96xf32> to vector<8x8xf32>
    %c0_62 = arith.constant 0 : index
    %c5 = arith.constant 5 : index
    %c0_63 = arith.constant 0 : index
    %c0_64 = arith.constant 0 : index
    %68 = vector.load %arg8[%c0_62, %c5, %c0_63, %c0_64] : memref<3x8x8x8xf32, #tpu.memory_space<vmem>>, vector<1x1x8x8xf32>
    %69 = vector.shape_cast %68 : vector<1x1x8x8xf32> to vector<8x8xf32>
    %70 = vector.shape_cast %67 : vector<8x8xf32> to vector<1x1x8x8xf32>
    tpu.vector_store %arg8[%c0_62, %c5, %c0_63, %c0_64], %70 {strides = array<i32>} : memref<3x8x8x8xf32, #tpu.memory_space<vmem>>, vector<1x1x8x8xf32>,
    %71 = vector.extract_strided_slice %6 {offsets = [8, 40], sizes = [8, 8], strides = [1, 1]} : vector<16x96xf32> to vector<8x8xf32>
    %c1_65 = arith.constant 1 : index
    %c5_66 = arith.constant 5 : index
    %c0_67 = arith.constant 0 : index
    %c0_68 = arith.constant 0 : index
    %72 = vector.load %arg8[%c1_65, %c5_66, %c0_67, %c0_68] : memref<3x8x8x8xf32, #tpu.memory_space<vmem>>, vector<1x1x8x8xf32>
    %73 = vector.shape_cast %72 : vector<1x1x8x8xf32> to vector<8x8xf32>
    %74 = vector.shape_cast %71 : vector<8x8xf32> to vector<1x1x8x8xf32>
    tpu.vector_store %arg8[%c1_65, %c5_66, %c0_67, %c0_68], %74 {strides = array<i32>} : memref<3x8x8x8xf32, #tpu.memory_space<vmem>>, vector<1x1x8x8xf32>,
    %75 = vector.extract_strided_slice %6 {offsets = [8, 72], sizes = [8, 8], strides = [1, 1]} : vector<16x96xf32> to vector<8x8xf32>
    %c2_69 = arith.constant 2 : index
    %c5_70 = arith.constant 5 : index
    %c0_71 = arith.constant 0 : index
    %c0_72 = arith.constant 0 : index
    %76 = vector.load %arg8[%c2_69, %c5_70, %c0_71, %c0_72] : memref<3x8x8x8xf32, #tpu.memory_space<vmem>>, vector<1x1x8x8xf32>
    %77 = vector.shape_cast %76 : vector<1x1x8x8xf32> to vector<8x8xf32>
    %78 = vector.shape_cast %75 : vector<8x8xf32> to vector<1x1x8x8xf32>
    tpu.vector_store %arg8[%c2_69, %c5_70, %c0_71, %c0_72], %78 {strides = array<i32>} : memref<3x8x8x8xf32, #tpu.memory_space<vmem>>, vector<1x1x8x8xf32>,
    %79 = vector.extract_strided_slice %6 {offsets = [8, 16], sizes = [8, 8], strides = [1, 1]} : vector<16x96xf32> to vector<8x8xf32>
    %c0_73 = arith.constant 0 : index
    %c6 = arith.constant 6 : index
    %c0_74 = arith.constant 0 : index
    %c0_75 = arith.constant 0 : index
    %80 = vector.load %arg8[%c0_73, %c6, %c0_74, %c0_75] : memref<3x8x8x8xf32, #tpu.memory_space<vmem>>, vector<1x1x8x8xf32>
    %81 = vector.shape_cast %80 : vector<1x1x8x8xf32> to vector<8x8xf32>
    %82 = vector.shape_cast %79 : vector<8x8xf32> to vector<1x1x8x8xf32>
    tpu.vector_store %arg8[%c0_73, %c6, %c0_74, %c0_75], %82 {strides = array<i32>} : memref<3x8x8x8xf32, #tpu.memory_space<vmem>>, vector<1x1x8x8xf32>,
    %83 = vector.extract_strided_slice %6 {offsets = [8, 48], sizes = [8, 8], strides = [1, 1]} : vector<16x96xf32> to vector<8x8xf32>
    %c1_76 = arith.constant 1 : index
    %c6_77 = arith.constant 6 : index
    %c0_78 = arith.constant 0 : index
    %c0_79 = arith.constant 0 : index
    %84 = vector.load %arg8[%c1_76, %c6_77, %c0_78, %c0_79] : memref<3x8x8x8xf32, #tpu.memory_space<vmem>>, vector<1x1x8x8xf32>
    %85 = vector.shape_cast %84 : vector<1x1x8x8xf32> to vector<8x8xf32>
    %86 = vector.shape_cast %83 : vector<8x8xf32> to vector<1x1x8x8xf32>
    tpu.vector_store %arg8[%c1_76, %c6_77, %c0_78, %c0_79], %86 {strides = array<i32>} : memref<3x8x8x8xf32, #tpu.memory_space<vmem>>, vector<1x1x8x8xf32>,
    %87 = vector.extract_strided_slice %6 {offsets = [8, 80], sizes = [8, 8], strides = [1, 1]} : vector<16x96xf32> to vector<8x8xf32>
    %c2_80 = arith.constant 2 : index
    %c6_81 = arith.constant 6 : index
    %c0_82 = arith.constant 0 : index
    %c0_83 = arith.constant 0 : index
    %88 = vector.load %arg8[%c2_80, %c6_81, %c0_82, %c0_83] : memref<3x8x8x8xf32, #tpu.memory_space<vmem>>, vector<1x1x8x8xf32>
    %89 = vector.shape_cast %88 : vector<1x1x8x8xf32> to vector<8x8xf32>
    %90 = vector.shape_cast %87 : vector<8x8xf32> to vector<1x1x8x8xf32>
    tpu.vector_store %arg8[%c2_80, %c6_81, %c0_82, %c0_83], %90 {strides = array<i32>} : memref<3x8x8x8xf32, #tpu.memory_space<vmem>>, vector<1x1x8x8xf32>,
    %91 = vector.extract_strided_slice %6 {offsets = [8, 24], sizes = [8, 8], strides = [1, 1]} : vector<16x96xf32> to vector<8x8xf32>
    %c0_84 = arith.constant 0 : index
    %c7 = arith.constant 7 : index
    %c0_85 = arith.constant 0 : index
    %c0_86 = arith.constant 0 : index
    %92 = vector.load %arg8[%c0_84, %c7, %c0_85, %c0_86] : memref<3x8x8x8xf32, #tpu.memory_space<vmem>>, vector<1x1x8x8xf32>
    %93 = vector.shape_cast %92 : vector<1x1x8x8xf32> to vector<8x8xf32>
    %94 = vector.shape_cast %91 : vector<8x8xf32> to vector<1x1x8x8xf32>
    tpu.vector_store %arg8[%c0_84, %c7, %c0_85, %c0_86], %94 {strides = array<i32>} : memref<3x8x8x8xf32, #tpu.memory_space<vmem>>, vector<1x1x8x8xf32>,
    %95 = vector.extract_strided_slice %6 {offsets = [8, 56], sizes = [8, 8], strides = [1, 1]} : vector<16x96xf32> to vector<8x8xf32>
    %c1_87 = arith.constant 1 : index
    %c7_88 = arith.constant 7 : index
    %c0_89 = arith.constant 0 : index
    %c0_90 = arith.constant 0 : index
    %96 = vector.load %arg8[%c1_87, %c7_88, %c0_89, %c0_90] : memref<3x8x8x8xf32, #tpu.memory_space<vmem>>, vector<1x1x8x8xf32>
    %97 = vector.shape_cast %96 : vector<1x1x8x8xf32> to vector<8x8xf32>
    %98 = vector.shape_cast %95 : vector<8x8xf32> to vector<1x1x8x8xf32>
    tpu.vector_store %arg8[%c1_87, %c7_88, %c0_89, %c0_90], %98 {strides = array<i32>} : memref<3x8x8x8xf32, #tpu.memory_space<vmem>>, vector<1x1x8x8xf32>,
    %99 = vector.extract_strided_slice %6 {offsets = [8, 88], sizes = [8, 8], strides = [1, 1]} : vector<16x96xf32> to vector<8x8xf32>
    %c2_91 = arith.constant 2 : index
    %c7_92 = arith.constant 7 : index
    %c0_93 = arith.constant 0 : index
    %c0_94 = arith.constant 0 : index
    %100 = vector.load %arg8[%c2_91, %c7_92, %c0_93, %c0_94] : memref<3x8x8x8xf32, #tpu.memory_space<vmem>>, vector<1x1x8x8xf32>
    %101 = vector.shape_cast %100 : vector<1x1x8x8xf32> to vector<8x8xf32>
    %102 = vector.shape_cast %99 : vector<8x8xf32> to vector<1x1x8x8xf32>
    tpu.vector_store %arg8[%c2_91, %c7_92, %c0_93, %c0_94], %102 {strides = array<i32>} : memref<3x8x8x8xf32, #tpu.memory_space<vmem>>, vector<1x1x8x8xf32>,
    %c0_95 = arith.constant 0 : index
    %c0_96 = arith.constant 0 : index
    %c0_97 = arith.constant 0 : index
    %c0_98 = arith.constant 0 : index
    %103 = vector.load %arg8[%c0_95, %c0_96, %c0_97, %c0_98] : memref<3x8x8x8xf32, #tpu.memory_space<vmem>>, vector<1x8x8x8xf32>
    %104 = vector.shape_cast %103 : vector<1x8x8x8xf32> to vector<8x8x8xf32>
    %c1_99 = arith.constant 1 : index
    %c0_100 = arith.constant 0 : index
    %c0_101 = arith.constant 0 : index
    %c0_102 = arith.constant 0 : index
    %105 = vector.load %arg8[%c1_99, %c0_100, %c0_101, %c0_102] : memref<3x8x8x8xf32, #tpu.memory_space<vmem>>, vector<1x8x8x8xf32>
    %106 = vector.shape_cast %105 : vector<1x8x8x8xf32> to vector<8x8x8xf32>
    %c2_103 = arith.constant 2 : index
    %c0_104 = arith.constant 0 : index
    %c0_105 = arith.constant 0 : index
    %c0_106 = arith.constant 0 : index
    %107 = vector.load %arg8[%c2_103, %c0_104, %c0_105, %c0_106] : memref<3x8x8x8xf32, #tpu.memory_space<vmem>>, vector<1x8x8x8xf32>
    %108 = vector.shape_cast %107 : vector<1x8x8x8xf32> to vector<8x8x8xf32>
    "tpu.trace_start"() <{level = 10 : i32, message = "gqd,gkd->gqk"}> : () -> ()
    %cst_107 = arith.constant dense<0.000000e+00> : vector<8x8x8xf32>
    %109 = tpu.matmul %104, %106, %cst_107 {dimension_numbers = #tpu.dot_dimension_numbers<[2], [2], [1], [1], [0, 0, 0, 1, 1, 1], [0], [0]>} : vector<8x8x8xf32>, vector<8x8x8xf32>, vector<8x8x8xf32> -> vector<8x8x8xf32>
    "tpu.trace_stop"() : () -> ()
    %cst_108 = arith.constant dense<0xFF800000> : vector<8x8xf32>
    %110 = vector.multi_reduction <maximumf>, %109, %cst_108 [2] : vector<8x8x8xf32> to vector<8x8xf32>
    %111 = vector.shape_cast %110 : vector<8x8xf32> to vector<8x8x1xf32>
    %112 = vector.broadcast %111 : vector<8x8x1xf32> to vector<8x8x8xf32>
    %113 = arith.subf %109, %112 : vector<8x8x8xf32>
    %114 = math.exp %113 : vector<8x8x8xf32>
    %cst_109 = arith.constant dense<0.000000e+00> : vector<8x8xf32>
    %115 = vector.multi_reduction <add>, %114, %cst_109 [2] : vector<8x8x8xf32> to vector<8x8xf32>
    %116 = vector.shape_cast %115 : vector<8x8xf32> to vector<8x8x1xf32>
    %117 = tpu.reciprocal %116 : vector<8x8x1xf32> -> vector<8x8x1xf32>
    %118 = vector.broadcast %117 : vector<8x8x1xf32> to vector<8x8x8xf32>
    %119 = arith.mulf %114, %118 : vector<8x8x8xf32>
    %120 = vector.shape_cast %119 : vector<8x8x8xf32> to vector<2x4x8x8xf32>
    %c0_110 = arith.constant 0 : index
    %c0_111 = arith.constant 0 : index
    %c0_112 = arith.constant 0 : index
    %c0_113 = arith.constant 0 : index
    %121 = vector.load %arg7[%c0_110, %c0_111, %c0_112, %c0_113] : memref<2x4x8x8xf32, #tpu.memory_space<vmem>>, vector<2x4x8x8xf32>
    tpu.vector_store %arg7[%c0_110, %c0_111, %c0_112, %c0_113], %120 {strides = array<i32>} : memref<2x4x8x8xf32, #tpu.memory_space<vmem>>, vector<2x4x8x8xf32>,
    "tpu.trace_start"() <{level = 10 : i32, message = "gqk,gkd->gqd"}> : () -> ()
    %cst_114 = arith.constant dense<0.000000e+00> : vector<8x8x8xf32>
    %122 = tpu.matmul %119, %108, %cst_114 {dimension_numbers = #tpu.dot_dimension_numbers<[2], [1], [1], [2], [0, 0, 0, 1, 1, 2], [0], [0]>} : vector<8x8x8xf32>, vector<8x8x8xf32>, vector<8x8x8xf32> -> vector<8x8x8xf32>
    "tpu.trace_stop"() : () -> ()
    %123 = vector.extract_strided_slice %122 {offsets = [0, 0, 0], sizes = [1, 8, 8], strides = [1, 1, 1]} : vector<8x8x8xf32> to vector<1x8x8xf32>
    %124 = vector.shape_cast %123 : vector<1x8x8xf32> to vector<8x8xf32>
    %c0_115 = arith.constant 0 : index
    %c0_116 = arith.constant 0 : index
    %125 = vector.load %arg9[%c0_115, %c0_116] : memref<16x32xf32, #tpu.memory_space<vmem>>, vector<8x8xf32>
    tpu.vector_store %arg9[%c0_115, %c0_116], %124 {strides = array<i32>} : memref<16x32xf32, #tpu.memory_space<vmem>>, vector<8x8xf32>,
    %126 = vector.extract_strided_slice %122 {offsets = [1, 0, 0], sizes = [1, 8, 8], strides = [1, 1, 1]} : vector<8x8x8xf32> to vector<1x8x8xf32>
    %127 = vector.shape_cast %126 : vector<1x8x8xf32> to vector<8x8xf32>
    %c0_117 = arith.constant 0 : index
    %c8 = arith.constant 8 : index
    %128 = vector.load %arg9[%c0_117, %c8] : memref<16x32xf32, #tpu.memory_space<vmem>>, vector<8x8xf32>
    tpu.vector_store %arg9[%c0_117, %c8], %127 {strides = array<i32>} : memref<16x32xf32, #tpu.memory_space<vmem>>, vector<8x8xf32>,
    %129 = vector.extract_strided_slice %122 {offsets = [2, 0, 0], sizes = [1, 8, 8], strides = [1, 1, 1]} : vector<8x8x8xf32> to vector<1x8x8xf32>
    %130 = vector.shape_cast %129 : vector<1x8x8xf32> to vector<8x8xf32>
    %c0_118 = arith.constant 0 : index
    %c16 = arith.constant 16 : index
    %131 = vector.load %arg9[%c0_118, %c16] : memref<16x32xf32, #tpu.memory_space<vmem>>, vector<8x8xf32>
    tpu.vector_store %arg9[%c0_118, %c16], %130 {strides = array<i32>} : memref<16x32xf32, #tpu.memory_space<vmem>>, vector<8x8xf32>,
    %132 = vector.extract_strided_slice %122 {offsets = [3, 0, 0], sizes = [1, 8, 8], strides = [1, 1, 1]} : vector<8x8x8xf32> to vector<1x8x8xf32>
    %133 = vector.shape_cast %132 : vector<1x8x8xf32> to vector<8x8xf32>
    %c0_119 = arith.constant 0 : index
    %c24 = arith.constant 24 : index
    %134 = vector.load %arg9[%c0_119, %c24] : memref<16x32xf32, #tpu.memory_space<vmem>>, vector<8x8xf32>
    tpu.vector_store %arg9[%c0_119, %c24], %133 {strides = array<i32>} : memref<16x32xf32, #tpu.memory_space<vmem>>, vector<8x8xf32>,
    %135 = vector.extract_strided_slice %122 {offsets = [4, 0, 0], sizes = [1, 8, 8], strides = [1, 1, 1]} : vector<8x8x8xf32> to vector<1x8x8xf32>
    %136 = vector.shape_cast %135 : vector<1x8x8xf32> to vector<8x8xf32>
    %c8_120 = arith.constant 8 : index
    %c0_121 = arith.constant 0 : index
    %137 = vector.load %arg9[%c8_120, %c0_121] : memref<16x32xf32, #tpu.memory_space<vmem>>, vector<8x8xf32>
    tpu.vector_store %arg9[%c8_120, %c0_121], %136 {strides = array<i32>} : memref<16x32xf32, #tpu.memory_space<vmem>>, vector<8x8xf32>,
    %138 = vector.extract_strided_slice %122 {offsets = [5, 0, 0], sizes = [1, 8, 8], strides = [1, 1, 1]} : vector<8x8x8xf32> to vector<1x8x8xf32>
    %139 = vector.shape_cast %138 : vector<1x8x8xf32> to vector<8x8xf32>
    %c8_122 = arith.constant 8 : index
    %c8_123 = arith.constant 8 : index
    %140 = vector.load %arg9[%c8_122, %c8_123] : memref<16x32xf32, #tpu.memory_space<vmem>>, vector<8x8xf32>
    tpu.vector_store %arg9[%c8_122, %c8_123], %139 {strides = array<i32>} : memref<16x32xf32, #tpu.memory_space<vmem>>, vector<8x8xf32>,
    %141 = vector.extract_strided_slice %122 {offsets = [6, 0, 0], sizes = [1, 8, 8], strides = [1, 1, 1]} : vector<8x8x8xf32> to vector<1x8x8xf32>
    %142 = vector.shape_cast %141 : vector<1x8x8xf32> to vector<8x8xf32>
    %c8_124 = arith.constant 8 : index
    %c16_125 = arith.constant 16 : index
    %143 = vector.load %arg9[%c8_124, %c16_125] : memref<16x32xf32, #tpu.memory_space<vmem>>, vector<8x8xf32>
    tpu.vector_store %arg9[%c8_124, %c16_125], %142 {strides = array<i32>} : memref<16x32xf32, #tpu.memory_space<vmem>>, vector<8x8xf32>,
    %144 = vector.extract_strided_slice %122 {offsets = [7, 0, 0], sizes = [1, 8, 8], strides = [1, 1, 1]} : vector<8x8x8xf32> to vector<1x8x8xf32>
    %145 = vector.shape_cast %144 : vector<1x8x8xf32> to vector<8x8xf32>
    %c8_126 = arith.constant 8 : index
    %c24_127 = arith.constant 24 : index
    %146 = vector.load %arg9[%c8_126, %c24_127] : memref<16x32xf32, #tpu.memory_space<vmem>>, vector<8x8xf32>
    tpu.vector_store %arg9[%c8_126, %c24_127], %145 {strides = array<i32>} : memref<16x32xf32, #tpu.memory_space<vmem>>, vector<8x8xf32>,
    %c0_128 = arith.constant 0 : index
    %c0_129 = arith.constant 0 : index
    %147 = vector.load %arg9[%c0_128, %c0_129] : memref<16x32xf32, #tpu.memory_space<vmem>>, vector<16x32xf32>
    %c0_130 = arith.constant 0 : index
    %c0_131 = arith.constant 0 : index
    %148 = vector.load %arg4[%c0_130, %c0_131] : memref<32x32xf32, #tpu.memory_space<vmem>>, vector<32x32xf32>
    %cst_132 = arith.constant dense<0.000000e+00> : vector<16x32xf32>
    %149 = tpu.matmul %147, %148, %cst_132 {dimension_numbers = #tpu.dot_dimension_numbers<[1], [0], [0], [1], [0, 0, 1, 1], [], []>} : vector<16x32xf32>, vector<32x32xf32>, vector<16x32xf32> -> vector<16x32xf32>
    %c0_133 = arith.constant 0 : index
    %c0_134 = arith.constant 0 : index
    %150 = vector.load %arg5[%c0_133, %c0_134] : memref<1x32xf32, #tpu.memory_space<vmem>>, vector<1x32xf32>
    %151 = vector.broadcast %150 : vector<1x32xf32> to vector<16x32xf32>
    %152 = arith.addf %149, %151 : vector<16x32xf32>
    %153 = vector.shape_cast %152 : vector<16x32xf32> to vector<2x8x32xf32>
    %c0_135 = arith.constant 0 : index
    %c0_136 = arith.constant 0 : index
    %c0_137 = arith.constant 0 : index
    %154 = vector.load %arg6[%c0_135, %c0_136, %c0_137] : memref<2x8x32xf32, #tpu.memory_space<vmem>>, vector<2x8x32xf32>
    tpu.vector_store %arg6[%c0_135, %c0_136, %c0_137], %153 {strides = array<i32>} : memref<2x8x32xf32, #tpu.memory_space<vmem>>, vector<2x8x32xf32>,
    return
  }
  func.func @transform_0(%arg0: i32) -> (i32, i32, i32) {
    %c0_i32 = arith.constant 0 : i32
    %c0_i32_0 = arith.constant 0 : i32
    %c0_i32_1 = arith.constant 0 : i32
    return %arg0, %c0_i32, %c0_i32_0 : i32, i32, i32
  }
  func.func @transform_1(%arg0: i32) -> (i32, i32) {
    %c0_i32 = arith.constant 0 : i32
    %c0_i32_0 = arith.constant 0 : i32
    %c0_i32_1 = arith.constant 0 : i32
    return %c0_i32, %c0_i32_0 : i32, i32
  }
  func.func @transform_2(%arg0: i32) -> (i32, i32) {
    %c0_i32 = arith.constant 0 : i32
    %c0_i32_0 = arith.constant 0 : i32
    %c0_i32_1 = arith.constant 0 : i32
    return %c0_i32, %c0_i32_0 : i32, i32
  }
  func.func @transform_3(%arg0: i32) -> (i32, i32) {
    %c0_i32 = arith.constant 0 : i32
    %c0_i32_0 = arith.constant 0 : i32
    %c0_i32_1 = arith.constant 0 : i32
    return %c0_i32, %c0_i32_0 : i32, i32
  }
  func.func @transform_4(%arg0: i32) -> (i32, i32) {
    %c0_i32 = arith.constant 0 : i32
    %c0_i32_0 = arith.constant 0 : i32
    %c0_i32_1 = arith.constant 0 : i32
    return %c0_i32, %c0_i32_0 : i32, i32
  }
  func.func @transform_5(%arg0: i32) -> (i32, i32, i32) {
    %c0_i32 = arith.constant 0 : i32
    %c0_i32_0 = arith.constant 0 : i32
    %c0_i32_1 = arith.constant 0 : i32
    return %arg0, %c0_i32, %c0_i32_0 : i32, i32, i32
  }
  func.func @transform_6(%arg0: i32) -> (i32, i32, i32, i32) {
    %c0_i32 = arith.constant 0 : i32
    %c0_i32_0 = arith.constant 0 : i32
    %c0_i32_1 = arith.constant 0 : i32
    %c0_i32_2 = arith.constant 0 : i32
    return %arg0, %c0_i32, %c0_i32_0, %c0_i32_1 : i32, i32, i32, i32
  }
}

</mosaic_0001>

<llo_original>
// kernel: tpu_custom_call.1
$region0: #{tpu_custom_call.1}
  #allocation0 [shape = 'u32[]', space=smem, size = 0x4, offset = 0x4, fixed_abs, tag = 'smem constant byte address 0x4 - core index']
  #allocation1 [shape = 'u32[144,128]{1,0:T(1,128)}', space=vmem, size = 0x12000, scoped, tag = 'internal scratch']
  #allocation2 [shape = 'f32[3,8,8,8]{3,2,1,0:T(8,128)}', space=vmem, size = 0x18000, scoped, tag = 'scratch operand']
  #allocation3 [shape = 'f32[16,32]{1,0:T(8,128)}', space=vmem, size = 0x2000, scoped, tag = 'scratch operand']
  %s0 = inlined_call_operand.hbm [shape: f32[2,8,32], index: 0, kind: input, shape index: {}]
  %s1 = inlined_call_operand.hbm [shape: f32[32,96], index: 1, kind: input, shape index: {}]
  %s2 = inlined_call_operand.vmem [shape: f32[1,96], index: 2, kind: input, shape index: {}]
  %s3 = inlined_call_operand.hbm [shape: f32[32,32], index: 3, kind: input, shape index: {}]
  %s4 = inlined_call_operand.vmem [shape: f32[1,32], index: 4, kind: input, shape index: {}]
  %s5 = inlined_call_operand.hbm [shape: f32[2,8,32], index: 5, kind: output, shape index: {0}]
  %s6 = inlined_call_operand.hbm [shape: f32[2,4,8,8], index: 6, kind: output, shape index: {1}]
  %7 = xla_tuple %s5, %s6
  %s8 = sld [smem:[#allocation0]]
  $region50: #{tpu_custom_call.1} parent=0
    _
  %s10 = ssub.s32 1, %s8
  %s11 = scalar_select 0, %s10, %s8
  $region1: #{tpu_custom_call.1} parent=0
    #allocation4 [shape = 'u8[8192]{0}', space=vmem, size = 0x2000, scoped, tag = 'input window, operand 0, single buffered']
    #allocation5 [shape = 's32[1]{0}', space=sflag, size = 0x4, scoped, tag = 'scoped memory for tpu_custom_call.1']
    #allocation6 [shape = 's32[1]{0}', space=sflag, size = 0x4, scoped, tag = 'scoped memory for tpu_custom_call.1']
    #allocation7 [shape = 'u8[16384]{0}', space=vmem, size = 0x4000, scoped, tag = 'input window, operand 1, single buffered']
    #allocation8 [shape = 's32[1]{0}', space=sflag, size = 0x4, scoped, tag = 'scoped memory for tpu_custom_call.1']
    #allocation9 [shape = 'u8[16384]{0}', space=vmem, size = 0x4000, scoped, tag = 'input window, operand 3, single buffered']
    #allocation10 [shape = 'u8[8192]{0}', space=vmem, size = 0x2000, scoped, tag = 'output window, operand 0, single buffered']
    #allocation11 [shape = 'u8[32768]{0}', space=vmem, size = 0x8000, scoped, tag = 'output window, operand 1, single buffered']
    #allocation12 [shape = 's32[1]{0}', space=sflag, size = 0x4, scoped, tag = 'scoped memory for tpu_custom_call.1']
    %12 = vsyncpa [#allocation5], 0
    %13 = vsyncpa [#allocation8], 0
    %14 = vsyncpa [#allocation6], 0
    %15 = vsyncpa [#allocation12], 0
    // Predicated region
    $region2: #{tpu_custom_call.1} parent=1 // pred_check
      _
    $region3: #{tpu_custom_call.1} parent=1 // pred_check_branch
      %17 = sbr.rel (0) target = $region5
    $region4: #{tpu_custom_call.1} parent=1 // pred_region
      %s19 = ssub.s32 256, 256
      %20 = vsyncadd [#allocation5], %s19
      %s21 = sshll.u32 [#allocation4], 4
      %s22 = int_to_ptr.vmem [resolvable:$true] %s21
      %27 = dma.hbm_to_vmem [thread:$0]  %s0, 256, %s22, [#allocation5], 128, 128, 8
    $region5: #{tpu_custom_call.1} parent=1 // pred_fallthru
      _
    // Predicated region
    $region6: #{tpu_custom_call.1} parent=1 // pred_check
      _
    $region7: #{tpu_custom_call.1} parent=1 // pred_check_branch
      %29 = sbr.rel (0) target = $region9
    $region8: #{tpu_custom_call.1} parent=1 // pred_region
      %s31 = ssub.s32 512, 512
      %32 = vsyncadd [#allocation8], %s31
      %s33 = sshll.u32 [#allocation7], 4
      %s34 = int_to_ptr.vmem [resolvable:$true] %s33
      %39 = dma.hbm_to_vmem [thread:$0]  %s1, 512, %s34, [#allocation8], 128, 128, 8
    $region9: #{tpu_custom_call.1} parent=1 // pred_fallthru
      _
    // Predicated region
    $region10: #{tpu_custom_call.1} parent=1 // pred_check
      _
    $region11: #{tpu_custom_call.1} parent=1 // pred_check_branch
      %41 = sbr.rel (0) target = $region13
    $region12: #{tpu_custom_call.1} parent=1 // pred_region
      _
    $region13: #{tpu_custom_call.1} parent=1 // pred_fallthru
      _
    // Predicated region
    $region14: #{tpu_custom_call.1} parent=1 // pred_check
      _
    $region15: #{tpu_custom_call.1} parent=1 // pred_check_branch
      %43 = sbr.rel (0) target = $region17
    $region16: #{tpu_custom_call.1} parent=1 // pred_region
      %s45 = ssub.s32 512, 512
      %46 = vsyncadd [#allocation8], %s45
      %s47 = sshll.u32 [#allocation9], 4
      %s48 = int_to_ptr.vmem [resolvable:$true] %s47
      %53 = dma.hbm_to_vmem [thread:$0]  %s3, 512, %s48, [#allocation8], 128, 128, 8
    $region17: #{tpu_custom_call.1} parent=1 // pred_fallthru
      _
    // Predicated region
    $region18: #{tpu_custom_call.1} parent=1 // pred_check
      _
    $region19: #{tpu_custom_call.1} parent=1 // pred_check_branch
      %55 = sbr.rel (0) target = $region21
    $region20: #{tpu_custom_call.1} parent=1 // pred_region
      _
    $region21: #{tpu_custom_call.1} parent=1 // pred_fallthru
      _
    // Predicated region
    $region22: #{tpu_custom_call.1} parent=1 // pred_check
      _
    $region23: #{tpu_custom_call.1} parent=1 // pred_check_branch
      %57 = sbr.rel (0) target = $region25
    $region24: #{tpu_custom_call.1} parent=1 // pred_region
      %58 = dma.done [#allocation5], 256
    $region25: #{tpu_custom_call.1} parent=1 // pred_fallthru
      _
    // Predicated region
    $region26: #{tpu_custom_call.1} parent=1 // pred_check
      _
    $region27: #{tpu_custom_call.1} parent=1 // pred_check_branch
      %60 = sbr.rel (0) target = $region29
    $region28: #{tpu_custom_call.1} parent=1 // pred_region
      %61 = dma.done [#allocation8], 512
    $region29: #{tpu_custom_call.1} parent=1 // pred_fallthru
      _
    // Predicated region
    $region30: #{tpu_custom_call.1} parent=1 // pred_check
      _
    $region31: #{tpu_custom_call.1} parent=1 // pred_check_branch
      %63 = sbr.rel (0) target = $region33
    $region32: #{tpu_custom_call.1} parent=1 // pred_region
      %64 = dma.done [#allocation8], 512
    $region33: #{tpu_custom_call.1} parent=1 // pred_fallthru
      _
    %v65 = vld [vmem:[#allocation4] sm:$0xff]
    %v66 = vld [vmem:[#allocation4 + $0x8] sm:$0xff]
    %v67 = vld [vmem:[#allocation7] sm:$0xff]
    %v68 = vld [vmem:[#allocation7 + $0x8] sm:$0xff]
    %v69 = vld [vmem:[#allocation7 + $0x10] sm:$0xff]
    %v70 = vld [vmem:[#allocation7 + $0x18] sm:$0xff]
    %v71 = vld [vmem:[%s2] sm:$0x1]
    %v73 = vlaneseq
    %v74 = vshrl.u32 %v73, 7
    %v75 = vsub.s32 0, %v74
    %v76 = vrot.slane %v71, %v75
    %vm78 = vcmask 261120
    %v80 = vsel %vm78, %v65, 0
    %v83 = vsel %vm78, %v66, 0
    %85 = vmatprep.subr.mxu0 0.0
    %86 = vmatpush1.msra.mxu0 0.0
    %87 = vmatprep.subr.mxu0 0.0
    %88 = vmatpush1.msra.mxu0 0.0
    %89 = vmatprep.subr.mxu0 0.0
    %90 = vmatpush1.msra.mxu0 0.0
    %91 = vmatprep.subr.mxu0 0.0
    %92 = vmatpush1.msra.mxu0 0.0
    %93 = vmatprep.subr.mxu0 0.0
    %94 = vmatpush1.msra.mxu0 0.0
    %95 = vmatprep.subr.mxu0 0.0
    %96 = vmatpush1.msra.mxu0 0.0
    %97 = vmatprep.subr.mxu0 0.0
    %98 = vmatpush1.msra.mxu0 0.0
    %99 = vmatprep.subr.mxu0 0.0
    %100 = vmatpush1.msra.mxu0 0.0
    %101 = vmatprep.subr.mxu0 0.0
    %102 = vmatpush1.msra.mxu0 0.0
    %103 = vmatprep.subr.mxu0 0.0
    %104 = vmatpush1.msra.mxu0 0.0
    %105 = vmatprep.subr.mxu0 0.0
    %106 = vmatpush1.msra.mxu0 0.0
    %107 = vmatprep.subr.mxu0 0.0
    %108 = vmatpush1.msra.mxu0 0.0
    %109 = vmatprep.subr.mxu0 0.0
    %110 = vmatpush1.msra.mxu0 %v70
    %111 = vmatprep.subr.mxu0 0.0
    %112 = vmatpush1.msra.mxu0 %v69
    %113 = vmatprep.subr.mxu0 0.0
    %114 = vmatpush1.msra.mxu0 %v68
    %115 = vmatprep.subr.mxu0 0.0
    %116 = vmatpush1.msra.mxu0 %v67
    %117 = vmatprep.subr.mxu0 0.0
    %118 = vmatpush2.msra.mxu0 0.0
    %119 = vmatprep.subr.mxu0 0.0
    %120 = vmatpush2.msra.mxu0 0.0
    %121 = vmatprep.subr.mxu0 0.0
    %122 = vmatpush2.msra.mxu0 0.0
    %123 = vmatprep.subr.mxu0 0.0
    %124 = vmatpush2.msra.mxu0 0.0
    %125 = vmatprep.subr.mxu0 0.0
    %126 = vmatpush2.msra.mxu0 0.0
    %127 = vmatprep.subr.mxu0 0.0
    %128 = vmatpush2.msra.mxu0 0.0
    %129 = vmatprep.subr.mxu0 0.0
    %130 = vmatpush2.msra.mxu0 0.0
    %131 = vmatprep.subr.mxu0 0.0
    %132 = vmatpush2.msra.mxu0 0.0
    %133 = vmatprep.subr.mxu0 0.0
    %134 = vmatpush2.msra.mxu0 0.0
    %135 = vmatprep.subr.mxu0 0.0
    %136 = vmatpush2.msra.mxu0 0.0
    %137 = vmatprep.subr.mxu0 0.0
    %138 = vmatpush2.msra.mxu0 0.0
    %139 = vmatprep.subr.mxu0 0.0
    %140 = vmatpush2.msra.mxu0 0.0
    %141 = vmatprep.subr.mxu0 0.0
    %142 = vmatpush2.msra.mxu0 0.0
    %143 = vmatprep.subr.mxu0 0.0
    %144 = vmatpush2.msra.mxu0 0.0
    %145 = vmatprep.subr.mxu0 0.0
    %146 = vmatpush2.msra.mxu0 0.0
    %147 = vmatprep.subr.mxu0 0.0
    %148 = vmatpush2.msra.mxu0 0.0
    %149 = vmatprep.mubr.f32.mxu0 0.0
    %150 = vmatmul.mubr.f32.gmra.mxu0 %v80
    %v151 = vpop.f32.mrf.mxu0
    %v152 = vadd.f32 %v76, %v151
    %v153 = vpop.f32.mrf.mxu0
    %154 = vmatprep.mubr.f32.mxu0 0.0
    %155 = vmatmul.mubr.f32.gmra.mxu0 %v83
    %v156 = vpop.f32.mrf.mxu0
    %v157 = vadd.f32 %v76, %v156
    %v158 = vpop.f32.mrf.mxu0
    %159 = vdwg.mxu0
    %vm160 = vcmask 64512
    %161 = vst.msk [vmem:[#allocation2] sm:$0xff] %vm160, %v152
    %163 = vrot.lane.b32.xlu0 %v152, 96
    %v164 = vpop.permute.xlu0 %163
    %s166 = scalar_lea.vmem [#allocation2], 64
    %167 = vst.msk [vmem:[%s166] sm:$0xff] %vm160, %v164
    %168 = vrot.lane.b32.xlu0 %v152, 64
    %v169 = vpop.permute.xlu0 %168
    %s171 = scalar_lea.vmem [#allocation2], 128
    %172 = vst.msk [vmem:[%s171] sm:$0xff] %vm160, %v169
    %173 = vrot.lane.b32.xlu0 %v152, 120
    %v174 = vpop.permute.xlu0 %173
    %s176 = scalar_lea.vmem [#allocation2], 8
    %177 = vst.msk [vmem:[%s176] sm:$0xff] %vm160, %v174
    %178 = vrot.lane.b32.xlu0 %v152, 88
    %v179 = vpop.permute.xlu0 %178
    %s181 = scalar_lea.vmem [#allocation2], 72
    %182 = vst.msk [vmem:[%s181] sm:$0xff] %vm160, %v179
    %183 = vrot.lane.b32.xlu0 %v152, 56
    %v184 = vpop.permute.xlu0 %183
    %s186 = scalar_lea.vmem [#allocation2], 136
    %187 = vst.msk [vmem:[%s186] sm:$0xff] %vm160, %v184
    %188 = vrot.lane.b32.xlu0 %v152, 112
    %v189 = vpop.permute.xlu0 %188
    %s191 = scalar_lea.vmem [#allocation2], 16
    %192 = vst.msk [vmem:[%s191] sm:$0xff] %vm160, %v189
    %193 = vrot.lane.b32.xlu0 %v152, 80
    %v194 = vpop.permute.xlu0 %193
    %s196 = scalar_lea.vmem [#allocation2], 80
    %197 = vst.msk [vmem:[%s196] sm:$0xff] %vm160, %v194
    %198 = vrot.lane.b32.xlu0 %v152, 48
    %v199 = vpop.permute.xlu0 %198
    %s201 = scalar_lea.vmem [#allocation2], 144
    %202 = vst.msk [vmem:[%s201] sm:$0xff] %vm160, %v199
    %203 = vrot.lane.b32.xlu0 %v152, 104
    %v204 = vpop.permute.xlu0 %203
    %s206 = scalar_lea.vmem [#allocation2], 24
    %207 = vst.msk [vmem:[%s206] sm:$0xff] %vm160, %v204
    %208 = vrot.lane.b32.xlu0 %v152, 72
    %v209 = vpop.permute.xlu0 %208
    %s211 = scalar_lea.vmem [#allocation2], 88
    %212 = vst.msk [vmem:[%s211] sm:$0xff] %vm160, %v209
    %213 = vrot.lane.b32.xlu0 %v152, 40
    %v214 = vpop.permute.xlu0 %213
    %s216 = scalar_lea.vmem [#allocation2], 152
    %217 = vst.msk [vmem:[%s216] sm:$0xff] %vm160, %v214
    %s218 = scalar_lea.vmem [#allocation2], 32
    %219 = vst.msk [vmem:[%s218] sm:$0xff] %vm160, %v157
    %221 = vrot.lane.b32.xlu0 %v157, 96
    %v222 = vpop.permute.xlu0 %221
    %s224 = scalar_lea.vmem [#allocation2], 96
    %225 = vst.msk [vmem:[%s224] sm:$0xff] %vm160, %v222
    %226 = vrot.lane.b32.xlu0 %v157, 64
    %v227 = vpop.permute.xlu0 %226
    %s229 = scalar_lea.vmem [#allocation2], 160
    %230 = vst.msk [vmem:[%s229] sm:$0xff] %vm160, %v227
    %231 = vrot.lane.b32.xlu0 %v157, 120
    %v232 = vpop.permute.xlu0 %231
    %s234 = scalar_lea.vmem [#allocation2], 40
    %235 = vst.msk [vmem:[%s234] sm:$0xff] %vm160, %v232
    %236 = vrot.lane.b32.xlu0 %v157, 88
    %v237 = vpop.permute.xlu0 %236
    %s239 = scalar_lea.vmem [#allocation2], 104
    %240 = vst.msk [vmem:[%s239] sm:$0xff] %vm160, %v237
    %241 = vrot.lane.b32.xlu0 %v157, 56
    %v242 = vpop.permute.xlu0 %241
    %s244 = scalar_lea.vmem [#allocation2], 168
    %245 = vst.msk [vmem:[%s244] sm:$0xff] %vm160, %v242
    %246 = vrot.lane.b32.xlu0 %v157, 112
    %v247 = vpop.permute.xlu0 %246
    %s249 = scalar_lea.vmem [#allocation2], 48
    %250 = vst.msk [vmem:[%s249] sm:$0xff] %vm160, %v247
    %251 = vrot.lane.b32.xlu0 %v157, 80
    %v252 = vpop.permute.xlu0 %251
    %s254 = scalar_lea.vmem [#allocation2], 112
    %255 = vst.msk [vmem:[%s254] sm:$0xff] %vm160, %v252
    %256 = vrot.lane.b32.xlu0 %v157, 48
    %v257 = vpop.permute.xlu0 %256
    %s259 = scalar_lea.vmem [#allocation2], 176
    %260 = vst.msk [vmem:[%s259] sm:$0xff] %vm160, %v257
    %261 = vrot.lane.b32.xlu0 %v157, 104
    %v262 = vpop.permute.xlu0 %261
    %s264 = scalar_lea.vmem [#allocation2], 56
    %265 = vst.msk [vmem:[%s264] sm:$0xff] %vm160, %v262
    %266 = vrot.lane.b32.xlu0 %v157, 72
    %v267 = vpop.permute.xlu0 %266
    %s269 = scalar_lea.vmem [#allocation2], 120
    %270 = vst.msk [vmem:[%s269] sm:$0xff] %vm160, %v267
    %271 = vrot.lane.b32.xlu0 %v157, 40
    %v272 = vpop.permute.xlu0 %271
    %s274 = scalar_lea.vmem [#allocation2], 184
    %275 = vst.msk [vmem:[%s274] sm:$0xff] %vm160, %v272
    %v276 = vld [vmem:[#allocation2] sm:$0xff]
    %v277 = vld [vmem:[#allocation2 + $0x8] sm:$0xff]
    %v278 = vld [vmem:[#allocation2 + $0x10] sm:$0xff]
    %v279 = vld [vmem:[#allocation2 + $0x18] sm:$0xff]
    %v280 = vld [vmem:[#allocation2 + $0x20] sm:$0xff]
    %v281 = vld [vmem:[#allocation2 + $0x28] sm:$0xff]
    %v282 = vld [vmem:[#allocation2 + $0x30] sm:$0xff]
    %v283 = vld [vmem:[#allocation2 + $0x38] sm:$0xff]
    %v284 = vld [vmem:[%s166] sm:$0xff]
    %v285 = vld [vmem:[%s166 + $0x8] sm:$0xff]
    %v286 = vld [vmem:[%s166 + $0x10] sm:$0xff]
    %v287 = vld [vmem:[%s166 + $0x18] sm:$0xff]
    %v288 = vld [vmem:[%s166 + $0x20] sm:$0xff]
    %v289 = vld [vmem:[%s166 + $0x28] sm:$0xff]
    %v290 = vld [vmem:[%s166 + $0x30] sm:$0xff]
    %v291 = vld [vmem:[%s166 + $0x38] sm:$0xff]
    %v292 = vld [vmem:[%s171] sm:$0xff]
    %v293 = vld [vmem:[%s171 + $0x8] sm:$0xff]
    %v294 = vld [vmem:[%s171 + $0x10] sm:$0xff]
    %v295 = vld [vmem:[%s171 + $0x18] sm:$0xff]
    %v296 = vld [vmem:[%s171 + $0x20] sm:$0xff]
    %v297 = vld [vmem:[%s171 + $0x28] sm:$0xff]
    %v298 = vld [vmem:[%s171 + $0x30] sm:$0xff]
    %v299 = vld [vmem:[%s171 + $0x38] sm:$0xff]
    %v301 = vsel %vm160, %v276, 0
    %v304 = vsel %vm160, %v284, 0
    %306 = vmatprep.subr.mxu0 0.0
    %307 = vmatpush1.xpose.msra.mxu0 0.0
    %308 = vmatprep.subr.mxu0 0.0
    %309 = vmatpush1.xpose.msra.mxu0 0.0
    %310 = vmatprep.subr.mxu0 0.0
    %311 = vmatpush1.xpose.msra.mxu0 0.0
    %312 = vmatprep.subr.mxu0 0.0
    %313 = vmatpush1.xpose.msra.mxu0 0.0
    %314 = vmatprep.subr.mxu0 0.0
    %315 = vmatpush1.xpose.msra.mxu0 0.0
    %316 = vmatprep.subr.mxu0 0.0
    %317 = vmatpush1.xpose.msra.mxu0 0.0
    %318 = vmatprep.subr.mxu0 0.0
    %319 = vmatpush1.xpose.msra.mxu0 0.0
    %320 = vmatprep.subr.mxu0 0.0
    %321 = vmatpush1.xpose.msra.mxu0 0.0
    %322 = vmatprep.subr.mxu0 0.0
    %323 = vmatpush1.xpose.msra.mxu0 0.0
    %324 = vmatprep.subr.mxu0 0.0
    %325 = vmatpush1.xpose.msra.mxu0 0.0
    %326 = vmatprep.subr.mxu0 0.0
    %327 = vmatpush1.xpose.msra.mxu0 0.0
    %328 = vmatprep.subr.mxu0 0.0
    %329 = vmatpush1.xpose.msra.mxu0 0.0
    %330 = vmatprep.subr.mxu0 0.0
    %331 = vmatpush1.xpose.msra.mxu0 0.0
    %332 = vmatprep.subr.mxu0 0.0
    %333 = vmatpush1.xpose.msra.mxu0 0.0
    %334 = vmatprep.subr.mxu0 0.0
    %335 = vmatpush1.xpose.msra.mxu0 0.0
    %336 = vmatprep.subr.mxu0 0.0
    %337 = vmatpush1.xpose.msra.mxu0 %v304
    %338 = vmatprep.subr.mxu0 0.0
    %339 = vmatpush2.xpose.msra.mxu0 0.0
    %340 = vmatprep.subr.mxu0 0.0
    %341 = vmatpush2.xpose.msra.mxu0 0.0
    %342 = vmatprep.subr.mxu0 0.0
    %343 = vmatpush2.xpose.msra.mxu0 0.0
    %344 = vmatprep.subr.mxu0 0.0
    %345 = vmatpush2.xpose.msra.mxu0 0.0
    %346 = vmatprep.subr.mxu0 0.0
    %347 = vmatpush2.xpose.msra.mxu0 0.0
    %348 = vmatprep.subr.mxu0 0.0
    %349 = vmatpush2.xpose.msra.mxu0 0.0
    %350 = vmatprep.subr.mxu0 0.0
    %351 = vmatpush2.xpose.msra.mxu0 0.0
    %352 = vmatprep.subr.mxu0 0.0
    %353 = vmatpush2.xpose.msra.mxu0 0.0
    %354 = vmatprep.subr.mxu0 0.0
    %355 = vmatpush2.xpose.msra.mxu0 0.0
    %356 = vmatprep.subr.mxu0 0.0
    %357 = vmatpush2.xpose.msra.mxu0 0.0
    %358 = vmatprep.subr.mxu0 0.0
    %359 = vmatpush2.xpose.msra.mxu0 0.0
    %360 = vmatprep.subr.mxu0 0.0
    %361 = vmatpush2.xpose.msra.mxu0 0.0
    %362 = vmatprep.subr.mxu0 0.0
    %363 = vmatpush2.xpose.msra.mxu0 0.0
    %364 = vmatprep.subr.mxu0 0.0
    %365 = vmatpush2.xpose.msra.mxu0 0.0
    %366 = vmatprep.subr.mxu0 0.0
    %367 = vmatpush2.xpose.msra.mxu0 0.0
    %368 = vmatprep.subr.mxu0 0.0
    %369 = vmatpush2.xpose.msra.mxu0 0.0
    %370 = vmatprep.mubr.f32.mxu0 0.0
    %371 = vmatmul.mubr.f32.gmra.mxu0 %v301
    %v372 = vpop.f32.mrf.mxu0
    %v373 = vadd.f32 0.0, %v372
    %v374 = vpop.f32.mrf.mxu0
    %375 = vdwg.mxu0
    %v377 = vsel %vm160, %v277, 0
    %v380 = vsel %vm160, %v285, 0
    %382 = vmatprep.subr.mxu0 0.0
    %383 = vmatpush1.xpose.msra.mxu0 0.0
    %384 = vmatprep.subr.mxu0 0.0
    %385 = vmatpush1.xpose.msra.mxu0 0.0
    %386 = vmatprep.subr.mxu0 0.0
    %387 = vmatpush1.xpose.msra.mxu0 0.0
    %388 = vmatprep.subr.mxu0 0.0
    %389 = vmatpush1.xpose.msra.mxu0 0.0
    %390 = vmatprep.subr.mxu0 0.0
    %391 = vmatpush1.xpose.msra.mxu0 0.0
    %392 = vmatprep.subr.mxu0 0.0
    %393 = vmatpush1.xpose.msra.mxu0 0.0
    %394 = vmatprep.subr.mxu0 0.0
    %395 = vmatpush1.xpose.msra.mxu0 0.0
    %396 = vmatprep.subr.mxu0 0.0
    %397 = vmatpush1.xpose.msra.mxu0 0.0
    %398 = vmatprep.subr.mxu0 0.0
    %399 = vmatpush1.xpose.msra.mxu0 0.0
    %400 = vmatprep.subr.mxu0 0.0
    %401 = vmatpush1.xpose.msra.mxu0 0.0
    %402 = vmatprep.subr.mxu0 0.0
    %403 = vmatpush1.xpose.msra.mxu0 0.0
    %404 = vmatprep.subr.mxu0 0.0
    %405 = vmatpush1.xpose.msra.mxu0 0.0
    %406 = vmatprep.subr.mxu0 0.0
    %407 = vmatpush1.xpose.msra.mxu0 0.0
    %408 = vmatprep.subr.mxu0 0.0
    %409 = vmatpush1.xpose.msra.mxu0 0.0
    %410 = vmatprep.subr.mxu0 0.0
    %411 = vmatpush1.xpose.msra.mxu0 0.0
    %412 = vmatprep.subr.mxu0 0.0
    %413 = vmatpush1.xpose.msra.mxu0 %v380
    %414 = vmatprep.subr.mxu0 0.0
    %415 = vmatpush2.xpose.msra.mxu0 0.0
    %416 = vmatprep.subr.mxu0 0.0
    %417 = vmatpush2.xpose.msra.mxu0 0.0
    %418 = vmatprep.subr.mxu0 0.0
    %419 = vmatpush2.xpose.msra.mxu0 0.0
    %420 = vmatprep.subr.mxu0 0.0
    %421 = vmatpush2.xpose.msra.mxu0 0.0
    %422 = vmatprep.subr.mxu0 0.0
    %423 = vmatpush2.xpose.msra.mxu0 0.0
    %424 = vmatprep.subr.mxu0 0.0
    %425 = vmatpush2.xpose.msra.mxu0 0.0
    %426 = vmatprep.subr.mxu0 0.0
    %427 = vmatpush2.xpose.msra.mxu0 0.0
    %428 = vmatprep.subr.mxu0 0.0
    %429 = vmatpush2.xpose.msra.mxu0 0.0
    %430 = vmatprep.subr.mxu0 0.0
    %431 = vmatpush2.xpose.msra.mxu0 0.0
    %432 = vmatprep.subr.mxu0 0.0
    %433 = vmatpush2.xpose.msra.mxu0 0.0
    %434 = vmatprep.subr.mxu0 0.0
    %435 = vmatpush2.xpose.msra.mxu0 0.0
    %436 = vmatprep.subr.mxu0 0.0
    %437 = vmatpush2.xpose.msra.mxu0 0.0
    %438 = vmatprep.subr.mxu0 0.0
    %439 = vmatpush2.xpose.msra.mxu0 0.0
    %440 = vmatprep.subr.mxu0 0.0
    %441 = vmatpush2.xpose.msra.mxu0 0.0
    %442 = vmatprep.subr.mxu0 0.0
    %443 = vmatpush2.xpose.msra.mxu0 0.0
    %444 = vmatprep.subr.mxu0 0.0
    %445 = vmatpush2.xpose.msra.mxu0 0.0
    %446 = vmatprep.mubr.f32.mxu0 0.0
    %447 = vmatmul.mubr.f32.gmra.mxu0 %v377
    %v448 = vpop.f32.mrf.mxu0
    %v449 = vadd.f32 0.0, %v448
    %v450 = vpop.f32.mrf.mxu0
    %451 = vdwg.mxu0
    %v453 = vsel %vm160, %v278, 0
    %v456 = vsel %vm160, %v286, 0
    %458 = vmatprep.subr.mxu0 0.0
    %459 = vmatpush1.xpose.msra.mxu0 0.0
    %460 = vmatprep.subr.mxu0 0.0
    %461 = vmatpush1.xpose.msra.mxu0 0.0
    %462 = vmatprep.subr.mxu0 0.0
    %463 = vmatpush1.xpose.msra.mxu0 0.0
    %464 = vmatprep.subr.mxu0 0.0
    %465 = vmatpush1.xpose.msra.mxu0 0.0
    %466 = vmatprep.subr.mxu0 0.0
    %467 = vmatpush1.xpose.msra.mxu0 0.0
    %468 = vmatprep.subr.mxu0 0.0
    %469 = vmatpush1.xpose.msra.mxu0 0.0
    %470 = vmatprep.subr.mxu0 0.0
    %471 = vmatpush1.xpose.msra.mxu0 0.0
    %472 = vmatprep.subr.mxu0 0.0
    %473 = vmatpush1.xpose.msra.mxu0 0.0
    %474 = vmatprep.subr.mxu0 0.0
    %475 = vmatpush1.xpose.msra.mxu0 0.0
    %476 = vmatprep.subr.mxu0 0.0
    %477 = vmatpush1.xpose.msra.mxu0 0.0
    %478 = vmatprep.subr.mxu0 0.0
    %479 = vmatpush1.xpose.msra.mxu0 0.0
    %480 = vmatprep.subr.mxu0 0.0
    %481 = vmatpush1.xpose.msra.mxu0 0.0
    %482 = vmatprep.subr.mxu0 0.0
    %483 = vmatpush1.xpose.msra.mxu0 0.0
    %484 = vmatprep.subr.mxu0 0.0
    %485 = vmatpush1.xpose.msra.mxu0 0.0
    %486 = vmatprep.subr.mxu0 0.0
    %487 = vmatpush1.xpose.msra.mxu0 0.0
    %488 = vmatprep.subr.mxu0 0.0
    %489 = vmatpush1.xpose.msra.mxu0 %v456
    %490 = vmatprep.subr.mxu0 0.0
    %491 = vmatpush2.xpose.msra.mxu0 0.0
    %492 = vmatprep.subr.mxu0 0.0
    %493 = vmatpush2.xpose.msra.mxu0 0.0
    %494 = vmatprep.subr.mxu0 0.0
    %495 = vmatpush2.xpose.msra.mxu0 0.0
    %496 = vmatprep.subr.mxu0 0.0
    %497 = vmatpush2.xpose.msra.mxu0 0.0
    %498 = vmatprep.subr.mxu0 0.0
    %499 = vmatpush2.xpose.msra.mxu0 0.0
    %500 = vmatprep.subr.mxu0 0.0
    %501 = vmatpush2.xpose.msra.mxu0 0.0
    %502 = vmatprep.subr.mxu0 0.0
    %503 = vmatpush2.xpose.msra.mxu0 0.0
    %504 = vmatprep.subr.mxu0 0.0
    %505 = vmatpush2.xpose.msra.mxu0 0.0
    %506 = vmatprep.subr.mxu0 0.0
    %507 = vmatpush2.xpose.msra.mxu0 0.0
    %508 = vmatprep.subr.mxu0 0.0
    %509 = vmatpush2.xpose.msra.mxu0 0.0
    %510 = vmatprep.subr.mxu0 0.0
    %511 = vmatpush2.xpose.msra.mxu0 0.0
    %512 = vmatprep.subr.mxu0 0.0
    %513 = vmatpush2.xpose.msra.mxu0 0.0
    %514 = vmatprep.subr.mxu0 0.0
    %515 = vmatpush2.xpose.msra.mxu0 0.0
    %516 = vmatprep.subr.mxu0 0.0
    %517 = vmatpush2.xpose.msra.mxu0 0.0
    %518 = vmatprep.subr.mxu0 0.0
    %519 = vmatpush2.xpose.msra.mxu0 0.0
    %520 = vmatprep.subr.mxu0 0.0
    %521 = vmatpush2.xpose.msra.mxu0 0.0
    %522 = vmatprep.mubr.f32.mxu0 0.0
    %523 = vmatmul.mubr.f32.gmra.mxu0 %v453
    %v524 = vpop.f32.mrf.mxu0
    %v525 = vadd.f32 0.0, %v524
    %v526 = vpop.f32.mrf.mxu0
    %527 = vdwg.mxu0
    %v529 = vsel %vm160, %v279, 0
    %v532 = vsel %vm160, %v287, 0
    %534 = vmatprep.subr.mxu0 0.0
    %535 = vmatpush1.xpose.msra.mxu0 0.0
    %536 = vmatprep.subr.mxu0 0.0
    %537 = vmatpush1.xpose.msra.mxu0 0.0
    %538 = vmatprep.subr.mxu0 0.0
    %539 = vmatpush1.xpose.msra.mxu0 0.0
    %540 = vmatprep.subr.mxu0 0.0
    %541 = vmatpush1.xpose.msra.mxu0 0.0
    %542 = vmatprep.subr.mxu0 0.0
    %543 = vmatpush1.xpose.msra.mxu0 0.0
    %544 = vmatprep.subr.mxu0 0.0
    %545 = vmatpush1.xpose.msra.mxu0 0.0
    %546 = vmatprep.subr.mxu0 0.0
    %547 = vmatpush1.xpose.msra.mxu0 0.0
    %548 = vmatprep.subr.mxu0 0.0
    %549 = vmatpush1.xpose.msra.mxu0 0.0
    %550 = vmatprep.subr.mxu0 0.0
    %551 = vmatpush1.xpose.msra.mxu0 0.0
    %552 = vmatprep.subr.mxu0 0.0
    %553 = vmatpush1.xpose.msra.mxu0 0.0
    %554 = vmatprep.subr.mxu0 0.0
    %555 = vmatpush1.xpose.msra.mxu0 0.0
    %556 = vmatprep.subr.mxu0 0.0
    %557 = vmatpush1.xpose.msra.mxu0 0.0
    %558 = vmatprep.subr.mxu0 0.0
    %559 = vmatpush1.xpose.msra.mxu0 0.0
    %560 = vmatprep.subr.mxu0 0.0
    %561 = vmatpush1.xpose.msra.mxu0 0.0
    %562 = vmatprep.subr.mxu0 0.0
    %563 = vmatpush1.xpose.msra.mxu0 0.0
    %564 = vmatprep.subr.mxu0 0.0
    %565 = vmatpush1.xpose.msra.mxu0 %v532
    %566 = vmatprep.subr.mxu0 0.0
    %567 = vmatpush2.xpose.msra.mxu0 0.0
    %568 = vmatprep.subr.mxu0 0.0
    %569 = vmatpush2.xpose.msra.mxu0 0.0
    %570 = vmatprep.subr.mxu0 0.0
    %571 = vmatpush2.xpose.msra.mxu0 0.0
    %572 = vmatprep.subr.mxu0 0.0
    %573 = vmatpush2.xpose.msra.mxu0 0.0
    %574 = vmatprep.subr.mxu0 0.0
    %575 = vmatpush2.xpose.msra.mxu0 0.0
    %576 = vmatprep.subr.mxu0 0.0
    %577 = vmatpush2.xpose.msra.mxu0 0.0
    %578 = vmatprep.subr.mxu0 0.0
    %579 = vmatpush2.xpose.msra.mxu0 0.0
    %580 = vmatprep.subr.mxu0 0.0
    %581 = vmatpush2.xpose.msra.mxu0 0.0
    %582 = vmatprep.subr.mxu0 0.0
    %583 = vmatpush2.xpose.msra.mxu0 0.0
    %584 = vmatprep.subr.mxu0 0.0
    %585 = vmatpush2.xpose.msra.mxu0 0.0
    %586 = vmatprep.subr.mxu0 0.0
    %587 = vmatpush2.xpose.msra.mxu0 0.0
    %588 = vmatprep.subr.mxu0 0.0
    %589 = vmatpush2.xpose.msra.mxu0 0.0
    %590 = vmatprep.subr.mxu0 0.0
    %591 = vmatpush2.xpose.msra.mxu0 0.0
    %592 = vmatprep.subr.mxu0 0.0
    %593 = vmatpush2.xpose.msra.mxu0 0.0
    %594 = vmatprep.subr.mxu0 0.0
    %595 = vmatpush2.xpose.msra.mxu0 0.0
    %596 = vmatprep.subr.mxu0 0.0
    %597 = vmatpush2.xpose.msra.mxu0 0.0
    %598 = vmatprep.mubr.f32.mxu0 0.0
    %599 = vmatmul.mubr.f32.gmra.mxu0 %v529
    %v600 = vpop.f32.mrf.mxu0
    %v601 = vadd.f32 0.0, %v600
    %v602 = vpop.f32.mrf.mxu0
    %603 = vdwg.mxu0
    %v605 = vsel %vm160, %v280, 0
    %v608 = vsel %vm160, %v288, 0
    %610 = vmatprep.subr.mxu0 0.0
    %611 = vmatpush1.xpose.msra.mxu0 0.0
    %612 = vmatprep.subr.mxu0 0.0
    %613 = vmatpush1.xpose.msra.mxu0 0.0
    %614 = vmatprep.subr.mxu0 0.0
    %615 = vmatpush1.xpose.msra.mxu0 0.0
    %616 = vmatprep.subr.mxu0 0.0
    %617 = vmatpush1.xpose.msra.mxu0 0.0
    %618 = vmatprep.subr.mxu0 0.0
    %619 = vmatpush1.xpose.msra.mxu0 0.0
    %620 = vmatprep.subr.mxu0 0.0
    %621 = vmatpush1.xpose.msra.mxu0 0.0
    %622 = vmatprep.subr.mxu0 0.0
    %623 = vmatpush1.xpose.msra.mxu0 0.0
    %624 = vmatprep.subr.mxu0 0.0
    %625 = vmatpush1.xpose.msra.mxu0 0.0
    %626 = vmatprep.subr.mxu0 0.0
    %627 = vmatpush1.xpose.msra.mxu0 0.0
    %628 = vmatprep.subr.mxu0 0.0
    %629 = vmatpush1.xpose.msra.mxu0 0.0
    %630 = vmatprep.subr.mxu0 0.0
    %631 = vmatpush1.xpose.msra.mxu0 0.0
    %632 = vmatprep.subr.mxu0 0.0
    %633 = vmatpush1.xpose.msra.mxu0 0.0
    %634 = vmatprep.subr.mxu0 0.0
    %635 = vmatpush1.xpose.msra.mxu0 0.0
    %636 = vmatprep.subr.mxu0 0.0
    %637 = vmatpush1.xpose.msra.mxu0 0.0
    %638 = vmatprep.subr.mxu0 0.0
    %639 = vmatpush1.xpose.msra.mxu0 0.0
    %640 = vmatprep.subr.mxu0 0.0
    %641 = vmatpush1.xpose.msra.mxu0 %v608
    %642 = vmatprep.subr.mxu0 0.0
    %643 = vmatpush2.xpose.msra.mxu0 0.0
    %644 = vmatprep.subr.mxu0 0.0
    %645 = vmatpush2.xpose.msra.mxu0 0.0
    %646 = vmatprep.subr.mxu0 0.0
    %647 = vmatpush2.xpose.msra.mxu0 0.0
    %648 = vmatprep.subr.mxu0 0.0
    %649 = vmatpush2.xpose.msra.mxu0 0.0
    %650 = vmatprep.subr.mxu0 0.0
    %651 = vmatpush2.xpose.msra.mxu0 0.0
    %652 = vmatprep.subr.mxu0 0.0
    %653 = vmatpush2.xpose.msra.mxu0 0.0
    %654 = vmatprep.subr.mxu0 0.0
    %655 = vmatpush2.xpose.msra.mxu0 0.0
    %656 = vmatprep.subr.mxu0 0.0
    %657 = vmatpush2.xpose.msra.mxu0 0.0
    %658 = vmatprep.subr.mxu0 0.0
    %659 = vmatpush2.xpose.msra.mxu0 0.0
    %660 = vmatprep.subr.mxu0 0.0
    %661 = vmatpush2.xpose.msra.mxu0 0.0
    %662 = vmatprep.subr.mxu0 0.0
    %663 = vmatpush2.xpose.msra.mxu0 0.0
    %664 = vmatprep.subr.mxu0 0.0
    %665 = vmatpush2.xpose.msra.mxu0 0.0
    %666 = vmatprep.subr.mxu0 0.0
    %667 = vmatpush2.xpose.msra.mxu0 0.0
    %668 = vmatprep.subr.mxu0 0.0
    %669 = vmatpush2.xpose.msra.mxu0 0.0
    %670 = vmatprep.subr.mxu0 0.0
    %671 = vmatpush2.xpose.msra.mxu0 0.0
    %672 = vmatprep.subr.mxu0 0.0
    %673 = vmatpush2.xpose.msra.mxu0 0.0
    %674 = vmatprep.mubr.f32.mxu0 0.0
    %675 = vmatmul.mubr.f32.gmra.mxu0 %v605
    %v676 = vpop.f32.mrf.mxu0
    %v677 = vadd.f32 0.0, %v676
    %v678 = vpop.f32.mrf.mxu0
    %679 = vdwg.mxu0
    %v681 = vsel %vm160, %v281, 0
    %v684 = vsel %vm160, %v289, 0
    %686 = vmatprep.subr.mxu0 0.0
    %687 = vmatpush1.xpose.msra.mxu0 0.0
    %688 = vmatprep.subr.mxu0 0.0
    %689 = vmatpush1.xpose.msra.mxu0 0.0
    %690 = vmatprep.subr.mxu0 0.0
    %691 = vmatpush1.xpose.msra.mxu0 0.0
    %692 = vmatprep.subr.mxu0 0.0
    %693 = vmatpush1.xpose.msra.mxu0 0.0
    %694 = vmatprep.subr.mxu0 0.0
    %695 = vmatpush1.xpose.msra.mxu0 0.0
    %696 = vmatprep.subr.mxu0 0.0
    %697 = vmatpush1.xpose.msra.mxu0 0.0
    %698 = vmatprep.subr.mxu0 0.0
    %699 = vmatpush1.xpose.msra.mxu0 0.0
    %700 = vmatprep.subr.mxu0 0.0
    %701 = vmatpush1.xpose.msra.mxu0 0.0
    %702 = vmatprep.subr.mxu0 0.0
    %703 = vmatpush1.xpose.msra.mxu0 0.0
    %704 = vmatprep.subr.mxu0 0.0
    %705 = vmatpush1.xpose.msra.mxu0 0.0
    %706 = vmatprep.subr.mxu0 0.0
    %707 = vmatpush1.xpose.msra.mxu0 0.0
    %708 = vmatprep.subr.mxu0 0.0
    %709 = vmatpush1.xpose.msra.mxu0 0.0
    %710 = vmatprep.subr.mxu0 0.0
    %711 = vmatpush1.xpose.msra.mxu0 0.0
    %712 = vmatprep.subr.mxu0 0.0
    %713 = vmatpush1.xpose.msra.mxu0 0.0
    %714 = vmatprep.subr.mxu0 0.0
    %715 = vmatpush1.xpose.msra.mxu0 0.0
    %716 = vmatprep.subr.mxu0 0.0
    %717 = vmatpush1.xpose.msra.mxu0 %v684
    %718 = vmatprep.subr.mxu0 0.0
    %719 = vmatpush2.xpose.msra.mxu0 0.0
    %720 = vmatprep.subr.mxu0 0.0
    %721 = vmatpush2.xpose.msra.mxu0 0.0
    %722 = vmatprep.subr.mxu0 0.0
    %723 = vmatpush2.xpose.msra.mxu0 0.0
    %724 = vmatprep.subr.mxu0 0.0
    %725 = vmatpush2.xpose.msra.mxu0 0.0
    %726 = vmatprep.subr.mxu0 0.0
    %727 = vmatpush2.xpose.msra.mxu0 0.0
    %728 = vmatprep.subr.mxu0 0.0
    %729 = vmatpush2.xpose.msra.mxu0 0.0
    %730 = vmatprep.subr.mxu0 0.0
    %731 = vmatpush2.xpose.msra.mxu0 0.0
    %732 = vmatprep.subr.mxu0 0.0
    %733 = vmatpush2.xpose.msra.mxu0 0.0
    %734 = vmatprep.subr.mxu0 0.0
    %735 = vmatpush2.xpose.msra.mxu0 0.0
    %736 = vmatprep.subr.mxu0 0.0
    %737 = vmatpush2.xpose.msra.mxu0 0.0
    %738 = vmatprep.subr.mxu0 0.0
    %739 = vmatpush2.xpose.msra.mxu0 0.0
    %740 = vmatprep.subr.mxu0 0.0
    %741 = vmatpush2.xpose.msra.mxu0 0.0
    %742 = vmatprep.subr.mxu0 0.0
    %743 = vmatpush2.xpose.msra.mxu0 0.0
    %744 = vmatprep.subr.mxu0 0.0
    %745 = vmatpush2.xpose.msra.mxu0 0.0
    %746 = vmatprep.subr.mxu0 0.0
    %747 = vmatpush2.xpose.msra.mxu0 0.0
    %748 = vmatprep.subr.mxu0 0.0
    %749 = vmatpush2.xpose.msra.mxu0 0.0
    %750 = vmatprep.mubr.f32.mxu0 0.0
    %751 = vmatmul.mubr.f32.gmra.mxu0 %v681
    %v752 = vpop.f32.mrf.mxu0
    %v753 = vadd.f32 0.0, %v752
    %v754 = vpop.f32.mrf.mxu0
    %755 = vdwg.mxu0
    %v757 = vsel %vm160, %v282, 0
    %v760 = vsel %vm160, %v290, 0
    %762 = vmatprep.subr.mxu0 0.0
    %763 = vmatpush1.xpose.msra.mxu0 0.0
    %764 = vmatprep.subr.mxu0 0.0
    %765 = vmatpush1.xpose.msra.mxu0 0.0
    %766 = vmatprep.subr.mxu0 0.0
    %767 = vmatpush1.xpose.msra.mxu0 0.0
    %768 = vmatprep.subr.mxu0 0.0
    %769 = vmatpush1.xpose.msra.mxu0 0.0
    %770 = vmatprep.subr.mxu0 0.0
    %771 = vmatpush1.xpose.msra.mxu0 0.0
    %772 = vmatprep.subr.mxu0 0.0
    %773 = vmatpush1.xpose.msra.mxu0 0.0
    %774 = vmatprep.subr.mxu0 0.0
    %775 = vmatpush1.xpose.msra.mxu0 0.0
    %776 = vmatprep.subr.mxu0 0.0
    %777 = vmatpush1.xpose.msra.mxu0 0.0
    %778 = vmatprep.subr.mxu0 0.0
    %779 = vmatpush1.xpose.msra.mxu0 0.0
    %780 = vmatprep.subr.mxu0 0.0
    %781 = vmatpush1.xpose.msra.mxu0 0.0
    %782 = vmatprep.subr.mxu0 0.0
    %783 = vmatpush1.xpose.msra.mxu0 0.0
    %784 = vmatprep.subr.mxu0 0.0
    %785 = vmatpush1.xpose.msra.mxu0 0.0
    %786 = vmatprep.subr.mxu0 0.0
    %787 = vmatpush1.xpose.msra.mxu0 0.0
    %788 = vmatprep.subr.mxu0 0.0
    %789 = vmatpush1.xpose.msra.mxu0 0.0
    %790 = vmatprep.subr.mxu0 0.0
    %791 = vmatpush1.xpose.msra.mxu0 0.0
    %792 = vmatprep.subr.mxu0 0.0
    %793 = vmatpush1.xpose.msra.mxu0 %v760
    %794 = vmatprep.subr.mxu0 0.0
    %795 = vmatpush2.xpose.msra.mxu0 0.0
    %796 = vmatprep.subr.mxu0 0.0
    %797 = vmatpush2.xpose.msra.mxu0 0.0
    %798 = vmatprep.subr.mxu0 0.0
    %799 = vmatpush2.xpose.msra.mxu0 0.0
    %800 = vmatprep.subr.mxu0 0.0
    %801 = vmatpush2.xpose.msra.mxu0 0.0
    %802 = vmatprep.subr.mxu0 0.0
    %803 = vmatpush2.xpose.msra.mxu0 0.0
    %804 = vmatprep.subr.mxu0 0.0
    %805 = vmatpush2.xpose.msra.mxu0 0.0
    %806 = vmatprep.subr.mxu0 0.0
    %807 = vmatpush2.xpose.msra.mxu0 0.0
    %808 = vmatprep.subr.mxu0 0.0
    %809 = vmatpush2.xpose.msra.mxu0 0.0
    %810 = vmatprep.subr.mxu0 0.0
    %811 = vmatpush2.xpose.msra.mxu0 0.0
    %812 = vmatprep.subr.mxu0 0.0
    %813 = vmatpush2.xpose.msra.mxu0 0.0
    %814 = vmatprep.subr.mxu0 0.0
    %815 = vmatpush2.xpose.msra.mxu0 0.0
    %816 = vmatprep.subr.mxu0 0.0
    %817 = vmatpush2.xpose.msra.mxu0 0.0
    %818 = vmatprep.subr.mxu0 0.0
    %819 = vmatpush2.xpose.msra.mxu0 0.0
    %820 = vmatprep.subr.mxu0 0.0
    %821 = vmatpush2.xpose.msra.mxu0 0.0
    %822 = vmatprep.subr.mxu0 0.0
    %823 = vmatpush2.xpose.msra.mxu0 0.0
    %824 = vmatprep.subr.mxu0 0.0
    %825 = vmatpush2.xpose.msra.mxu0 0.0
    %826 = vmatprep.mubr.f32.mxu0 0.0
    %827 = vmatmul.mubr.f32.gmra.mxu0 %v757
    %v828 = vpop.f32.mrf.mxu0
    %v829 = vadd.f32 0.0, %v828
    %v830 = vpop.f32.mrf.mxu0
    %831 = vdwg.mxu0
    %v833 = vsel %vm160, %v283, 0
    %v836 = vsel %vm160, %v291, 0
    %838 = vmatprep.subr.mxu0 0.0
    %839 = vmatpush1.xpose.msra.mxu0 0.0
    %840 = vmatprep.subr.mxu0 0.0
    %841 = vmatpush1.xpose.msra.mxu0 0.0
    %842 = vmatprep.subr.mxu0 0.0
    %843 = vmatpush1.xpose.msra.mxu0 0.0
    %844 = vmatprep.subr.mxu0 0.0
    %845 = vmatpush1.xpose.msra.mxu0 0.0
    %846 = vmatprep.subr.mxu0 0.0
    %847 = vmatpush1.xpose.msra.mxu0 0.0
    %848 = vmatprep.subr.mxu0 0.0
    %849 = vmatpush1.xpose.msra.mxu0 0.0
    %850 = vmatprep.subr.mxu0 0.0
    %851 = vmatpush1.xpose.msra.mxu0 0.0
    %852 = vmatprep.subr.mxu0 0.0
    %853 = vmatpush1.xpose.msra.mxu0 0.0
    %854 = vmatprep.subr.mxu0 0.0
    %855 = vmatpush1.xpose.msra.mxu0 0.0
    %856 = vmatprep.subr.mxu0 0.0
    %857 = vmatpush1.xpose.msra.mxu0 0.0
    %858 = vmatprep.subr.mxu0 0.0
    %859 = vmatpush1.xpose.msra.mxu0 0.0
    %860 = vmatprep.subr.mxu0 0.0
    %861 = vmatpush1.xpose.msra.mxu0 0.0
    %862 = vmatprep.subr.mxu0 0.0
    %863 = vmatpush1.xpose.msra.mxu0 0.0
    %864 = vmatprep.subr.mxu0 0.0
    %865 = vmatpush1.xpose.msra.mxu0 0.0
    %866 = vmatprep.subr.mxu0 0.0
    %867 = vmatpush1.xpose.msra.mxu0 0.0
    %868 = vmatprep.subr.mxu0 0.0
    %869 = vmatpush1.xpose.msra.mxu0 %v836
    %870 = vmatprep.subr.mxu0 0.0
    %871 = vmatpush2.xpose.msra.mxu0 0.0
    %872 = vmatprep.subr.mxu0 0.0
    %873 = vmatpush2.xpose.msra.mxu0 0.0
    %874 = vmatprep.subr.mxu0 0.0
    %875 = vmatpush2.xpose.msra.mxu0 0.0
    %876 = vmatprep.subr.mxu0 0.0
    %877 = vmatpush2.xpose.msra.mxu0 0.0
    %878 = vmatprep.subr.mxu0 0.0
    %879 = vmatpush2.xpose.msra.mxu0 0.0
    %880 = vmatprep.subr.mxu0 0.0
    %881 = vmatpush2.xpose.msra.mxu0 0.0
    %882 = vmatprep.subr.mxu0 0.0
    %883 = vmatpush2.xpose.msra.mxu0 0.0
    %884 = vmatprep.subr.mxu0 0.0
    %885 = vmatpush2.xpose.msra.mxu0 0.0
    %886 = vmatprep.subr.mxu0 0.0
    %887 = vmatpush2.xpose.msra.mxu0 0.0
    %888 = vmatprep.subr.mxu0 0.0
    %889 = vmatpush2.xpose.msra.mxu0 0.0
    %890 = vmatprep.subr.mxu0 0.0
    %891 = vmatpush2.xpose.msra.mxu0 0.0
    %892 = vmatprep.subr.mxu0 0.0
    %893 = vmatpush2.xpose.msra.mxu0 0.0
    %894 = vmatprep.subr.mxu0 0.0
    %895 = vmatpush2.xpose.msra.mxu0 0.0
    %896 = vmatprep.subr.mxu0 0.0
    %897 = vmatpush2.xpose.msra.mxu0 0.0
    %898 = vmatprep.subr.mxu0 0.0
    %899 = vmatpush2.xpose.msra.mxu0 0.0
    %900 = vmatprep.subr.mxu0 0.0
    %901 = vmatpush2.xpose.msra.mxu0 0.0
    %902 = vmatprep.mubr.f32.mxu0 0.0
    %903 = vmatmul.mubr.f32.gmra.mxu0 %v833
    %v904 = vpop.f32.mrf.mxu0
    %v905 = vadd.f32 0.0, %v904
    %v906 = vpop.f32.mrf.mxu0
    %907 = vdwg.mxu0
    %v908 = vsel %vm160, %v373, -inf
    %909 = vmax.xlane.f32.xlu0 %v908
    %v910 = vpop.xlane.xlu0 %909
    %v911 = vsel %vm160, %v449, -inf
    %912 = vmax.xlane.f32.xlu0 %v911
    %v913 = vpop.xlane.xlu0 %912
    %v914 = vsel %vm160, %v525, -inf
    %915 = vmax.xlane.f32.xlu0 %v914
    %v916 = vpop.xlane.xlu0 %915
    %v917 = vsel %vm160, %v601, -inf
    %918 = vmax.xlane.f32.xlu0 %v917
    %v919 = vpop.xlane.xlu0 %918
    %v920 = vsel %vm160, %v677, -inf
    %921 = vmax.xlane.f32.xlu0 %v920
    %v922 = vpop.xlane.xlu0 %921
    %v923 = vsel %vm160, %v753, -inf
    %924 = vmax.xlane.f32.xlu0 %v923
    %v925 = vpop.xlane.xlu0 %924
    %v926 = vsel %vm160, %v829, -inf
    %927 = vmax.xlane.f32.xlu0 %v926
    %v928 = vpop.xlane.xlu0 %927
    %v929 = vsel %vm160, %v905, -inf
    %930 = vmax.xlane.f32.xlu0 %v929
    %v931 = vpop.xlane.xlu0 %930
    %v932 = vsub.f32 %v373, %v910
    %v933 = vsub.f32 %v449, %v913
    %v934 = vsub.f32 %v525, %v916
    %v935 = vsub.f32 %v601, %v919
    %v936 = vsub.f32 %v677, %v922
    %v937 = vsub.f32 %v753, %v925
    %v938 = vsub.f32 %v829, %v928
    %v939 = vsub.f32 %v905, %v931
    %v940 = vmul.f32 %v932, 1.442695
    %v941 = vpow.pop %v940
    %v942 = vmul.f32 %v933, 1.442695
    %v943 = vpow.pop %v942
    %v944 = vmul.f32 %v934, 1.442695
    %v945 = vpow.pop %v944
    %v946 = vmul.f32 %v935, 1.442695
    %v947 = vpow.pop %v946
    %v948 = vmul.f32 %v936, 1.442695
    %v949 = vpow.pop %v948
    %v950 = vmul.f32 %v937, 1.442695
    %v951 = vpow.pop %v950
    %v952 = vmul.f32 %v938, 1.442695
    %v953 = vpow.pop %v952
    %v954 = vmul.f32 %v939, 1.442695
    %v955 = vpow.pop %v954
    %v956 = vsel %vm160, %v941, 0.0
    %957 = vadd.xlane.f32.xlu0 %v956
    %v958 = vpop.xlane.xlu0 %957
    %v959 = vsel %vm160, %v943, 0.0
    %960 = vadd.xlane.f32.xlu0 %v959
    %v961 = vpop.xlane.xlu0 %960
    %v962 = vsel %vm160, %v945, 0.0
    %963 = vadd.xlane.f32.xlu0 %v962
    %v964 = vpop.xlane.xlu0 %963
    %v965 = vsel %vm160, %v947, 0.0
    %966 = vadd.xlane.f32.xlu0 %v965
    %v967 = vpop.xlane.xlu0 %966
    %v968 = vsel %vm160, %v949, 0.0
    %969 = vadd.xlane.f32.xlu0 %v968
    %v970 = vpop.xlane.xlu0 %969
    %v971 = vsel %vm160, %v951, 0.0
    %972 = vadd.xlane.f32.xlu0 %v971
    %v973 = vpop.xlane.xlu0 %972
    %v974 = vsel %vm160, %v953, 0.0
    %975 = vadd.xlane.f32.xlu0 %v974
    %v976 = vpop.xlane.xlu0 %975
    %v977 = vsel %vm160, %v955, 0.0
    %978 = vadd.xlane.f32.xlu0 %v977
    %v979 = vpop.xlane.xlu0 %978
    %v980 = vrcp.pop %v958
    %v981 = vrcp.pop %v961
    %v982 = vrcp.pop %v964
    %v983 = vrcp.pop %v967
    %v984 = vrcp.pop %v970
    %v985 = vrcp.pop %v973
    %v986 = vrcp.pop %v976
    %v987 = vrcp.pop %v979
    %v988 = vmul.f32 %v941, %v980
    %v989 = vmul.f32 %v943, %v981
    %v990 = vmul.f32 %v945, %v982
    %v991 = vmul.f32 %v947, %v983
    %v992 = vmul.f32 %v949, %v984
    %v993 = vmul.f32 %v951, %v985
    %v994 = vmul.f32 %v953, %v986
    %v995 = vmul.f32 %v955, %v987
    %996 = vst.msk [vmem:[#allocation11] sm:$0xff] %vm160, %v988
    %997 = vst.msk [vmem:[#allocation11 + $0x8] sm:$0xff] %vm160, %v989
    %998 = vst.msk [vmem:[#allocation11 + $0x10] sm:$0xff] %vm160, %v990
    %999 = vst.msk [vmem:[#allocation11 + $0x18] sm:$0xff] %vm160, %v991
    %1000 = vst.msk [vmem:[#allocation11 + $0x20] sm:$0xff] %vm160, %v992
    %1001 = vst.msk [vmem:[#allocation11 + $0x28] sm:$0xff] %vm160, %v993
    %1002 = vst.msk [vmem:[#allocation11 + $0x30] sm:$0xff] %vm160, %v994
    %1003 = vst.msk [vmem:[#allocation11 + $0x38] sm:$0xff] %vm160, %v995
    %v1005 = vsel %vm160, %v988, 0
    %1007 = vmatprep.subr.mxu0 0.0
    %1008 = vmatpush1.msra.mxu0 0.0
    %1009 = vmatprep.subr.mxu0 0.0
    %1010 = vmatpush1.msra.mxu0 0.0
    %1011 = vmatprep.subr.mxu0 0.0
    %1012 = vmatpush1.msra.mxu0 0.0
    %1013 = vmatprep.subr.mxu0 0.0
    %1014 = vmatpush1.msra.mxu0 0.0
    %1015 = vmatprep.subr.mxu0 0.0
    %1016 = vmatpush1.msra.mxu0 0.0
    %1017 = vmatprep.subr.mxu0 0.0
    %1018 = vmatpush1.msra.mxu0 0.0
    %1019 = vmatprep.subr.mxu0 0.0
    %1020 = vmatpush1.msra.mxu0 0.0
    %1021 = vmatprep.subr.mxu0 0.0
    %1022 = vmatpush1.msra.mxu0 0.0
    %1023 = vmatprep.subr.mxu0 0.0
    %1024 = vmatpush1.msra.mxu0 0.0
    %1025 = vmatprep.subr.mxu0 0.0
    %1026 = vmatpush1.msra.mxu0 0.0
    %1027 = vmatprep.subr.mxu0 0.0
    %1028 = vmatpush1.msra.mxu0 0.0
    %1029 = vmatprep.subr.mxu0 0.0
    %1030 = vmatpush1.msra.mxu0 0.0
    %1031 = vmatprep.subr.mxu0 0.0
    %1032 = vmatpush1.msra.mxu0 0.0
    %1033 = vmatprep.subr.mxu0 0.0
    %1034 = vmatpush1.msra.mxu0 0.0
    %1035 = vmatprep.subr.mxu0 0.0
    %1036 = vmatpush1.msra.mxu0 0.0
    %1037 = vmatprep.subr.mxu0 0.0
    %1038 = vmatpush1.msra.mxu0 %v292
    %1039 = vmatprep.subr.mxu0 0.0
    %1040 = vmatpush2.msra.mxu0 0.0
    %1041 = vmatprep.subr.mxu0 0.0
    %1042 = vmatpush2.msra.mxu0 0.0
    %1043 = vmatprep.subr.mxu0 0.0
    %1044 = vmatpush2.msra.mxu0 0.0
    %1045 = vmatprep.subr.mxu0 0.0
    %1046 = vmatpush2.msra.mxu0 0.0
    %1047 = vmatprep.subr.mxu0 0.0
    %1048 = vmatpush2.msra.mxu0 0.0
    %1049 = vmatprep.subr.mxu0 0.0
    %1050 = vmatpush2.msra.mxu0 0.0
    %1051 = vmatprep.subr.mxu0 0.0
    %1052 = vmatpush2.msra.mxu0 0.0
    %1053 = vmatprep.subr.mxu0 0.0
    %1054 = vmatpush2.msra.mxu0 0.0
    %1055 = vmatprep.subr.mxu0 0.0
    %1056 = vmatpush2.msra.mxu0 0.0
    %1057 = vmatprep.subr.mxu0 0.0
    %1058 = vmatpush2.msra.mxu0 0.0
    %1059 = vmatprep.subr.mxu0 0.0
    %1060 = vmatpush2.msra.mxu0 0.0
    %1061 = vmatprep.subr.mxu0 0.0
    %1062 = vmatpush2.msra.mxu0 0.0
    %1063 = vmatprep.subr.mxu0 0.0
    %1064 = vmatpush2.msra.mxu0 0.0
    %1065 = vmatprep.subr.mxu0 0.0
    %1066 = vmatpush2.msra.mxu0 0.0
    %1067 = vmatprep.subr.mxu0 0.0
    %1068 = vmatpush2.msra.mxu0 0.0
    %1069 = vmatprep.subr.mxu0 0.0
    %1070 = vmatpush2.msra.mxu0 0.0
    %1071 = vmatprep.mubr.f32.mxu0 0.0
    %1072 = vmatmul.mubr.f32.gmra.mxu0 %v1005
    %v1073 = vpop.f32.mrf.mxu0
    %v1074 = vadd.f32 0.0, %v1073
    %v1075 = vpop.f32.mrf.mxu0
    %1076 = vdwg.mxu0
    %v1078 = vsel %vm160, %v989, 0
    %1080 = vmatprep.subr.mxu0 0.0
    %1081 = vmatpush1.msra.mxu0 0.0
    %1082 = vmatprep.subr.mxu0 0.0
    %1083 = vmatpush1.msra.mxu0 0.0
    %1084 = vmatprep.subr.mxu0 0.0
    %1085 = vmatpush1.msra.mxu0 0.0
    %1086 = vmatprep.subr.mxu0 0.0
    %1087 = vmatpush1.msra.mxu0 0.0
    %1088 = vmatprep.subr.mxu0 0.0
    %1089 = vmatpush1.msra.mxu0 0.0
    %1090 = vmatprep.subr.mxu0 0.0
    %1091 = vmatpush1.msra.mxu0 0.0
    %1092 = vmatprep.subr.mxu0 0.0
    %1093 = vmatpush1.msra.mxu0 0.0
    %1094 = vmatprep.subr.mxu0 0.0
    %1095 = vmatpush1.msra.mxu0 0.0
    %1096 = vmatprep.subr.mxu0 0.0
    %1097 = vmatpush1.msra.mxu0 0.0
    %1098 = vmatprep.subr.mxu0 0.0
    %1099 = vmatpush1.msra.mxu0 0.0
    %1100 = vmatprep.subr.mxu0 0.0
    %1101 = vmatpush1.msra.mxu0 0.0
    %1102 = vmatprep.subr.mxu0 0.0
    %1103 = vmatpush1.msra.mxu0 0.0
    %1104 = vmatprep.subr.mxu0 0.0
    %1105 = vmatpush1.msra.mxu0 0.0
    %1106 = vmatprep.subr.mxu0 0.0
    %1107 = vmatpush1.msra.mxu0 0.0
    %1108 = vmatprep.subr.mxu0 0.0
    %1109 = vmatpush1.msra.mxu0 0.0
    %1110 = vmatprep.subr.mxu0 0.0
    %1111 = vmatpush1.msra.mxu0 %v293
    %1112 = vmatprep.subr.mxu0 0.0
    %1113 = vmatpush2.msra.mxu0 0.0
    %1114 = vmatprep.subr.mxu0 0.0
    %1115 = vmatpush2.msra.mxu0 0.0
    %1116 = vmatprep.subr.mxu0 0.0
    %1117 = vmatpush2.msra.mxu0 0.0
    %1118 = vmatprep.subr.mxu0 0.0
    %1119 = vmatpush2.msra.mxu0 0.0
    %1120 = vmatprep.subr.mxu0 0.0
    %1121 = vmatpush2.msra.mxu0 0.0
    %1122 = vmatprep.subr.mxu0 0.0
    %1123 = vmatpush2.msra.mxu0 0.0
    %1124 = vmatprep.subr.mxu0 0.0
    %1125 = vmatpush2.msra.mxu0 0.0
    %1126 = vmatprep.subr.mxu0 0.0
    %1127 = vmatpush2.msra.mxu0 0.0
    %1128 = vmatprep.subr.mxu0 0.0
    %1129 = vmatpush2.msra.mxu0 0.0
    %1130 = vmatprep.subr.mxu0 0.0
    %1131 = vmatpush2.msra.mxu0 0.0
    %1132 = vmatprep.subr.mxu0 0.0
    %1133 = vmatpush2.msra.mxu0 0.0
    %1134 = vmatprep.subr.mxu0 0.0
    %1135 = vmatpush2.msra.mxu0 0.0
    %1136 = vmatprep.subr.mxu0 0.0
    %1137 = vmatpush2.msra.mxu0 0.0
    %1138 = vmatprep.subr.mxu0 0.0
    %1139 = vmatpush2.msra.mxu0 0.0
    %1140 = vmatprep.subr.mxu0 0.0
    %1141 = vmatpush2.msra.mxu0 0.0
    %1142 = vmatprep.subr.mxu0 0.0
    %1143 = vmatpush2.msra.mxu0 0.0
    %1144 = vmatprep.mubr.f32.mxu0 0.0
    %1145 = vmatmul.mubr.f32.gmra.mxu0 %v1078
    %v1146 = vpop.f32.mrf.mxu0
    %v1147 = vadd.f32 0.0, %v1146
    %v1148 = vpop.f32.mrf.mxu0
    %1149 = vdwg.mxu0
    %v1151 = vsel %vm160, %v990, 0
    %1153 = vmatprep.subr.mxu0 0.0
    %1154 = vmatpush1.msra.mxu0 0.0
    %1155 = vmatprep.subr.mxu0 0.0
    %1156 = vmatpush1.msra.mxu0 0.0
    %1157 = vmatprep.subr.mxu0 0.0
    %1158 = vmatpush1.msra.mxu0 0.0
    %1159 = vmatprep.subr.mxu0 0.0
    %1160 = vmatpush1.msra.mxu0 0.0
    %1161 = vmatprep.subr.mxu0 0.0
    %1162 = vmatpush1.msra.mxu0 0.0
    %1163 = vmatprep.subr.mxu0 0.0
    %1164 = vmatpush1.msra.mxu0 0.0
    %1165 = vmatprep.subr.mxu0 0.0
    %1166 = vmatpush1.msra.mxu0 0.0
    %1167 = vmatprep.subr.mxu0 0.0
    %1168 = vmatpush1.msra.mxu0 0.0
    %1169 = vmatprep.subr.mxu0 0.0
    %1170 = vmatpush1.msra.mxu0 0.0
    %1171 = vmatprep.subr.mxu0 0.0
    %1172 = vmatpush1.msra.mxu0 0.0
    %1173 = vmatprep.subr.mxu0 0.0
    %1174 = vmatpush1.msra.mxu0 0.0
    %1175 = vmatprep.subr.mxu0 0.0
    %1176 = vmatpush1.msra.mxu0 0.0
    %1177 = vmatprep.subr.mxu0 0.0
    %1178 = vmatpush1.msra.mxu0 0.0
    %1179 = vmatprep.subr.mxu0 0.0
    %1180 = vmatpush1.msra.mxu0 0.0
    %1181 = vmatprep.subr.mxu0 0.0
    %1182 = vmatpush1.msra.mxu0 0.0
    %1183 = vmatprep.subr.mxu0 0.0
    %1184 = vmatpush1.msra.mxu0 %v294
    %1185 = vmatprep.subr.mxu0 0.0
    %1186 = vmatpush2.msra.mxu0 0.0
    %1187 = vmatprep.subr.mxu0 0.0
    %1188 = vmatpush2.msra.mxu0 0.0
    %1189 = vmatprep.subr.mxu0 0.0
    %1190 = vmatpush2.msra.mxu0 0.0
    %1191 = vmatprep.subr.mxu0 0.0
    %1192 = vmatpush2.msra.mxu0 0.0
    %1193 = vmatprep.subr.mxu0 0.0
    %1194 = vmatpush2.msra.mxu0 0.0
    %1195 = vmatprep.subr.mxu0 0.0
    %1196 = vmatpush2.msra.mxu0 0.0
    %1197 = vmatprep.subr.mxu0 0.0
    %1198 = vmatpush2.msra.mxu0 0.0
    %1199 = vmatprep.subr.mxu0 0.0
    %1200 = vmatpush2.msra.mxu0 0.0
    %1201 = vmatprep.subr.mxu0 0.0
    %1202 = vmatpush2.msra.mxu0 0.0
    %1203 = vmatprep.subr.mxu0 0.0
    %1204 = vmatpush2.msra.mxu0 0.0
    %1205 = vmatprep.subr.mxu0 0.0
    %1206 = vmatpush2.msra.mxu0 0.0
    %1207 = vmatprep.subr.mxu0 0.0
    %1208 = vmatpush2.msra.mxu0 0.0
    %1209 = vmatprep.subr.mxu0 0.0
    %1210 = vmatpush2.msra.mxu0 0.0
    %1211 = vmatprep.subr.mxu0 0.0
    %1212 = vmatpush2.msra.mxu0 0.0
    %1213 = vmatprep.subr.mxu0 0.0
    %1214 = vmatpush2.msra.mxu0 0.0
    %1215 = vmatprep.subr.mxu0 0.0
    %1216 = vmatpush2.msra.mxu0 0.0
    %1217 = vmatprep.mubr.f32.mxu0 0.0
    %1218 = vmatmul.mubr.f32.gmra.mxu0 %v1151
    %v1219 = vpop.f32.mrf.mxu0
    %v1220 = vadd.f32 0.0, %v1219
    %v1221 = vpop.f32.mrf.mxu0
    %1222 = vdwg.mxu0
    %v1224 = vsel %vm160, %v991, 0
    %1226 = vmatprep.subr.mxu0 0.0
    %1227 = vmatpush1.msra.mxu0 0.0
    %1228 = vmatprep.subr.mxu0 0.0
    %1229 = vmatpush1.msra.mxu0 0.0
    %1230 = vmatprep.subr.mxu0 0.0
    %1231 = vmatpush1.msra.mxu0 0.0
    %1232 = vmatprep.subr.mxu0 0.0
    %1233 = vmatpush1.msra.mxu0 0.0
    %1234 = vmatprep.subr.mxu0 0.0
    %1235 = vmatpush1.msra.mxu0 0.0
    %1236 = vmatprep.subr.mxu0 0.0
    %1237 = vmatpush1.msra.mxu0 0.0
    %1238 = vmatprep.subr.mxu0 0.0
    %1239 = vmatpush1.msra.mxu0 0.0
    %1240 = vmatprep.subr.mxu0 0.0
    %1241 = vmatpush1.msra.mxu0 0.0
    %1242 = vmatprep.subr.mxu0 0.0
    %1243 = vmatpush1.msra.mxu0 0.0
    %1244 = vmatprep.subr.mxu0 0.0
    %1245 = vmatpush1.msra.mxu0 0.0
    %1246 = vmatprep.subr.mxu0 0.0
    %1247 = vmatpush1.msra.mxu0 0.0
    %1248 = vmatprep.subr.mxu0 0.0
    %1249 = vmatpush1.msra.mxu0 0.0
    %1250 = vmatprep.subr.mxu0 0.0
    %1251 = vmatpush1.msra.mxu0 0.0
    %1252 = vmatprep.subr.mxu0 0.0
    %1253 = vmatpush1.msra.mxu0 0.0
    %1254 = vmatprep.subr.mxu0 0.0
    %1255 = vmatpush1.msra.mxu0 0.0
    %1256 = vmatprep.subr.mxu0 0.0
    %1257 = vmatpush1.msra.mxu0 %v295
    %1258 = vmatprep.subr.mxu0 0.0
    %1259 = vmatpush2.msra.mxu0 0.0
    %1260 = vmatprep.subr.mxu0 0.0
    %1261 = vmatpush2.msra.mxu0 0.0
    %1262 = vmatprep.subr.mxu0 0.0
    %1263 = vmatpush2.msra.mxu0 0.0
    %1264 = vmatprep.subr.mxu0 0.0
    %1265 = vmatpush2.msra.mxu0 0.0
    %1266 = vmatprep.subr.mxu0 0.0
    %1267 = vmatpush2.msra.mxu0 0.0
    %1268 = vmatprep.subr.mxu0 0.0
    %1269 = vmatpush2.msra.mxu0 0.0
    %1270 = vmatprep.subr.mxu0 0.0
    %1271 = vmatpush2.msra.mxu0 0.0
    %1272 = vmatprep.subr.mxu0 0.0
    %1273 = vmatpush2.msra.mxu0 0.0
    %1274 = vmatprep.subr.mxu0 0.0
    %1275 = vmatpush2.msra.mxu0 0.0
    %1276 = vmatprep.subr.mxu0 0.0
    %1277 = vmatpush2.msra.mxu0 0.0
    %1278 = vmatprep.subr.mxu0 0.0
    %1279 = vmatpush2.msra.mxu0 0.0
    %1280 = vmatprep.subr.mxu0 0.0
    %1281 = vmatpush2.msra.mxu0 0.0
    %1282 = vmatprep.subr.mxu0 0.0
    %1283 = vmatpush2.msra.mxu0 0.0
    %1284 = vmatprep.subr.mxu0 0.0
    %1285 = vmatpush2.msra.mxu0 0.0
    %1286 = vmatprep.subr.mxu0 0.0
    %1287 = vmatpush2.msra.mxu0 0.0
    %1288 = vmatprep.subr.mxu0 0.0
    %1289 = vmatpush2.msra.mxu0 0.0
    %1290 = vmatprep.mubr.f32.mxu0 0.0
    %1291 = vmatmul.mubr.f32.gmra.mxu0 %v1224
    %v1292 = vpop.f32.mrf.mxu0
    %v1293 = vadd.f32 0.0, %v1292
    %v1294 = vpop.f32.mrf.mxu0
    %1295 = vdwg.mxu0
    %v1297 = vsel %vm160, %v992, 0
    %1299 = vmatprep.subr.mxu0 0.0
    %1300 = vmatpush1.msra.mxu0 0.0
    %1301 = vmatprep.subr.mxu0 0.0
    %1302 = vmatpush1.msra.mxu0 0.0
    %1303 = vmatprep.subr.mxu0 0.0
    %1304 = vmatpush1.msra.mxu0 0.0
    %1305 = vmatprep.subr.mxu0 0.0
    %1306 = vmatpush1.msra.mxu0 0.0
    %1307 = vmatprep.subr.mxu0 0.0
    %1308 = vmatpush1.msra.mxu0 0.0
    %1309 = vmatprep.subr.mxu0 0.0
    %1310 = vmatpush1.msra.mxu0 0.0
    %1311 = vmatprep.subr.mxu0 0.0
    %1312 = vmatpush1.msra.mxu0 0.0
    %1313 = vmatprep.subr.mxu0 0.0
    %1314 = vmatpush1.msra.mxu0 0.0
    %1315 = vmatprep.subr.mxu0 0.0
    %1316 = vmatpush1.msra.mxu0 0.0
    %1317 = vmatprep.subr.mxu0 0.0
    %1318 = vmatpush1.msra.mxu0 0.0
    %1319 = vmatprep.subr.mxu0 0.0
    %1320 = vmatpush1.msra.mxu0 0.0
    %1321 = vmatprep.subr.mxu0 0.0
    %1322 = vmatpush1.msra.mxu0 0.0
    %1323 = vmatprep.subr.mxu0 0.0
    %1324 = vmatpush1.msra.mxu0 0.0
    %1325 = vmatprep.subr.mxu0 0.0
    %1326 = vmatpush1.msra.mxu0 0.0
    %1327 = vmatprep.subr.mxu0 0.0
    %1328 = vmatpush1.msra.mxu0 0.0
    %1329 = vmatprep.subr.mxu0 0.0
    %1330 = vmatpush1.msra.mxu0 %v296
    %1331 = vmatprep.subr.mxu0 0.0
    %1332 = vmatpush2.msra.mxu0 0.0
    %1333 = vmatprep.subr.mxu0 0.0
    %1334 = vmatpush2.msra.mxu0 0.0
    %1335 = vmatprep.subr.mxu0 0.0
    %1336 = vmatpush2.msra.mxu0 0.0
    %1337 = vmatprep.subr.mxu0 0.0
    %1338 = vmatpush2.msra.mxu0 0.0
    %1339 = vmatprep.subr.mxu0 0.0
    %1340 = vmatpush2.msra.mxu0 0.0
    %1341 = vmatprep.subr.mxu0 0.0
    %1342 = vmatpush2.msra.mxu0 0.0
    %1343 = vmatprep.subr.mxu0 0.0
    %1344 = vmatpush2.msra.mxu0 0.0
    %1345 = vmatprep.subr.mxu0 0.0
    %1346 = vmatpush2.msra.mxu0 0.0
    %1347 = vmatprep.subr.mxu0 0.0
    %1348 = vmatpush2.msra.mxu0 0.0
    %1349 = vmatprep.subr.mxu0 0.0
    %1350 = vmatpush2.msra.mxu0 0.0
    %1351 = vmatprep.subr.mxu0 0.0
    %1352 = vmatpush2.msra.mxu0 0.0
    %1353 = vmatprep.subr.mxu0 0.0
    %1354 = vmatpush2.msra.mxu0 0.0
    %1355 = vmatprep.subr.mxu0 0.0
    %1356 = vmatpush2.msra.mxu0 0.0
    %1357 = vmatprep.subr.mxu0 0.0
    %1358 = vmatpush2.msra.mxu0 0.0
    %1359 = vmatprep.subr.mxu0 0.0
    %1360 = vmatpush2.msra.mxu0 0.0
    %1361 = vmatprep.subr.mxu0 0.0
    %1362 = vmatpush2.msra.mxu0 0.0
    %1363 = vmatprep.mubr.f32.mxu0 0.0
    %1364 = vmatmul.mubr.f32.gmra.mxu0 %v1297
    %v1365 = vpop.f32.mrf.mxu0
    %v1366 = vadd.f32 0.0, %v1365
    %v1367 = vpop.f32.mrf.mxu0
    %1368 = vdwg.mxu0
    %v1370 = vsel %vm160, %v993, 0
    %1372 = vmatprep.subr.mxu0 0.0
    %1373 = vmatpush1.msra.mxu0 0.0
    %1374 = vmatprep.subr.mxu0 0.0
    %1375 = vmatpush1.msra.mxu0 0.0
    %1376 = vmatprep.subr.mxu0 0.0
    %1377 = vmatpush1.msra.mxu0 0.0
    %1378 = vmatprep.subr.mxu0 0.0
    %1379 = vmatpush1.msra.mxu0 0.0
    %1380 = vmatprep.subr.mxu0 0.0
    %1381 = vmatpush1.msra.mxu0 0.0
    %1382 = vmatprep.subr.mxu0 0.0
    %1383 = vmatpush1.msra.mxu0 0.0
    %1384 = vmatprep.subr.mxu0 0.0
    %1385 = vmatpush1.msra.mxu0 0.0
    %1386 = vmatprep.subr.mxu0 0.0
    %1387 = vmatpush1.msra.mxu0 0.0
    %1388 = vmatprep.subr.mxu0 0.0
    %1389 = vmatpush1.msra.mxu0 0.0
    %1390 = vmatprep.subr.mxu0 0.0
    %1391 = vmatpush1.msra.mxu0 0.0
    %1392 = vmatprep.subr.mxu0 0.0
    %1393 = vmatpush1.msra.mxu0 0.0
    %1394 = vmatprep.subr.mxu0 0.0
    %1395 = vmatpush1.msra.mxu0 0.0
    %1396 = vmatprep.subr.mxu0 0.0
    %1397 = vmatpush1.msra.mxu0 0.0
    %1398 = vmatprep.subr.mxu0 0.0
    %1399 = vmatpush1.msra.mxu0 0.0
    %1400 = vmatprep.subr.mxu0 0.0
    %1401 = vmatpush1.msra.mxu0 0.0
    %1402 = vmatprep.subr.mxu0 0.0
    %1403 = vmatpush1.msra.mxu0 %v297
    %1404 = vmatprep.subr.mxu0 0.0
    %1405 = vmatpush2.msra.mxu0 0.0
    %1406 = vmatprep.subr.mxu0 0.0
    %1407 = vmatpush2.msra.mxu0 0.0
    %1408 = vmatprep.subr.mxu0 0.0
    %1409 = vmatpush2.msra.mxu0 0.0
    %1410 = vmatprep.subr.mxu0 0.0
    %1411 = vmatpush2.msra.mxu0 0.0
    %1412 = vmatprep.subr.mxu0 0.0
    %1413 = vmatpush2.msra.mxu0 0.0
    %1414 = vmatprep.subr.mxu0 0.0
    %1415 = vmatpush2.msra.mxu0 0.0
    %1416 = vmatprep.subr.mxu0 0.0
    %1417 = vmatpush2.msra.mxu0 0.0
    %1418 = vmatprep.subr.mxu0 0.0
    %1419 = vmatpush2.msra.mxu0 0.0
    %1420 = vmatprep.subr.mxu0 0.0
    %1421 = vmatpush2.msra.mxu0 0.0
    %1422 = vmatprep.subr.mxu0 0.0
    %1423 = vmatpush2.msra.mxu0 0.0
    %1424 = vmatprep.subr.mxu0 0.0
    %1425 = vmatpush2.msra.mxu0 0.0
    %1426 = vmatprep.subr.mxu0 0.0
    %1427 = vmatpush2.msra.mxu0 0.0
    %1428 = vmatprep.subr.mxu0 0.0
    %1429 = vmatpush2.msra.mxu0 0.0
    %1430 = vmatprep.subr.mxu0 0.0
    %1431 = vmatpush2.msra.mxu0 0.0
    %1432 = vmatprep.subr.mxu0 0.0
    %1433 = vmatpush2.msra.mxu0 0.0
    %1434 = vmatprep.subr.mxu0 0.0
    %1435 = vmatpush2.msra.mxu0 0.0
    %1436 = vmatprep.mubr.f32.mxu0 0.0
    %1437 = vmatmul.mubr.f32.gmra.mxu0 %v1370
    %v1438 = vpop.f32.mrf.mxu0
    %v1439 = vadd.f32 0.0, %v1438
    %v1440 = vpop.f32.mrf.mxu0
    %1441 = vdwg.mxu0
    %v1443 = vsel %vm160, %v994, 0
    %1445 = vmatprep.subr.mxu0 0.0
    %1446 = vmatpush1.msra.mxu0 0.0
    %1447 = vmatprep.subr.mxu0 0.0
    %1448 = vmatpush1.msra.mxu0 0.0
    %1449 = vmatprep.subr.mxu0 0.0
    %1450 = vmatpush1.msra.mxu0 0.0
    %1451 = vmatprep.subr.mxu0 0.0
    %1452 = vmatpush1.msra.mxu0 0.0
    %1453 = vmatprep.subr.mxu0 0.0
    %1454 = vmatpush1.msra.mxu0 0.0
    %1455 = vmatprep.subr.mxu0 0.0
    %1456 = vmatpush1.msra.mxu0 0.0
    %1457 = vmatprep.subr.mxu0 0.0
    %1458 = vmatpush1.msra.mxu0 0.0
    %1459 = vmatprep.subr.mxu0 0.0
    %1460 = vmatpush1.msra.mxu0 0.0
    %1461 = vmatprep.subr.mxu0 0.0
    %1462 = vmatpush1.msra.mxu0 0.0
    %1463 = vmatprep.subr.mxu0 0.0
    %1464 = vmatpush1.msra.mxu0 0.0
    %1465 = vmatprep.subr.mxu0 0.0
    %1466 = vmatpush1.msra.mxu0 0.0
    %1467 = vmatprep.subr.mxu0 0.0
    %1468 = vmatpush1.msra.mxu0 0.0
    %1469 = vmatprep.subr.mxu0 0.0
    %1470 = vmatpush1.msra.mxu0 0.0
    %1471 = vmatprep.subr.mxu0 0.0
    %1472 = vmatpush1.msra.mxu0 0.0
    %1473 = vmatprep.subr.mxu0 0.0
    %1474 = vmatpush1.msra.mxu0 0.0
    %1475 = vmatprep.subr.mxu0 0.0
    %1476 = vmatpush1.msra.mxu0 %v298
    %1477 = vmatprep.subr.mxu0 0.0
    %1478 = vmatpush2.msra.mxu0 0.0
    %1479 = vmatprep.subr.mxu0 0.0
    %1480 = vmatpush2.msra.mxu0 0.0
    %1481 = vmatprep.subr.mxu0 0.0
    %1482 = vmatpush2.msra.mxu0 0.0
    %1483 = vmatprep.subr.mxu0 0.0
    %1484 = vmatpush2.msra.mxu0 0.0
    %1485 = vmatprep.subr.mxu0 0.0
    %1486 = vmatpush2.msra.mxu0 0.0
    %1487 = vmatprep.subr.mxu0 0.0
    %1488 = vmatpush2.msra.mxu0 0.0
    %1489 = vmatprep.subr.mxu0 0.0
    %1490 = vmatpush2.msra.mxu0 0.0
    %1491 = vmatprep.subr.mxu0 0.0
    %1492 = vmatpush2.msra.mxu0 0.0
    %1493 = vmatprep.subr.mxu0 0.0
    %1494 = vmatpush2.msra.mxu0 0.0
    %1495 = vmatprep.subr.mxu0 0.0
    %1496 = vmatpush2.msra.mxu0 0.0
    %1497 = vmatprep.subr.mxu0 0.0
    %1498 = vmatpush2.msra.mxu0 0.0
    %1499 = vmatprep.subr.mxu0 0.0
    %1500 = vmatpush2.msra.mxu0 0.0
    %1501 = vmatprep.subr.mxu0 0.0
    %1502 = vmatpush2.msra.mxu0 0.0
    %1503 = vmatprep.subr.mxu0 0.0
    %1504 = vmatpush2.msra.mxu0 0.0
    %1505 = vmatprep.subr.mxu0 0.0
    %1506 = vmatpush2.msra.mxu0 0.0
    %1507 = vmatprep.subr.mxu0 0.0
    %1508 = vmatpush2.msra.mxu0 0.0
    %1509 = vmatprep.mubr.f32.mxu0 0.0
    %1510 = vmatmul.mubr.f32.gmra.mxu0 %v1443
    %v1511 = vpop.f32.mrf.mxu0
    %v1512 = vadd.f32 0.0, %v1511
    %v1513 = vpop.f32.mrf.mxu0
    %1514 = vdwg.mxu0
    %v1516 = vsel %vm160, %v995, 0
    %1518 = vmatprep.subr.mxu0 0.0
    %1519 = vmatpush1.msra.mxu0 0.0
    %1520 = vmatprep.subr.mxu0 0.0
    %1521 = vmatpush1.msra.mxu0 0.0
    %1522 = vmatprep.subr.mxu0 0.0
    %1523 = vmatpush1.msra.mxu0 0.0
    %1524 = vmatprep.subr.mxu0 0.0
    %1525 = vmatpush1.msra.mxu0 0.0
    %1526 = vmatprep.subr.mxu0 0.0
    %1527 = vmatpush1.msra.mxu0 0.0
    %1528 = vmatprep.subr.mxu0 0.0
    %1529 = vmatpush1.msra.mxu0 0.0
    %1530 = vmatprep.subr.mxu0 0.0
    %1531 = vmatpush1.msra.mxu0 0.0
    %1532 = vmatprep.subr.mxu0 0.0
    %1533 = vmatpush1.msra.mxu0 0.0
    %1534 = vmatprep.subr.mxu0 0.0
    %1535 = vmatpush1.msra.mxu0 0.0
    %1536 = vmatprep.subr.mxu0 0.0
    %1537 = vmatpush1.msra.mxu0 0.0
    %1538 = vmatprep.subr.mxu0 0.0
    %1539 = vmatpush1.msra.mxu0 0.0
    %1540 = vmatprep.subr.mxu0 0.0
    %1541 = vmatpush1.msra.mxu0 0.0
    %1542 = vmatprep.subr.mxu0 0.0
    %1543 = vmatpush1.msra.mxu0 0.0
    %1544 = vmatprep.subr.mxu0 0.0
    %1545 = vmatpush1.msra.mxu0 0.0
    %1546 = vmatprep.subr.mxu0 0.0
    %1547 = vmatpush1.msra.mxu0 0.0
    %1548 = vmatprep.subr.mxu0 0.0
    %1549 = vmatpush1.msra.mxu0 %v299
    %1550 = vmatprep.subr.mxu0 0.0
    %1551 = vmatpush2.msra.mxu0 0.0
    %1552 = vmatprep.subr.mxu0 0.0
    %1553 = vmatpush2.msra.mxu0 0.0
    %1554 = vmatprep.subr.mxu0 0.0
    %1555 = vmatpush2.msra.mxu0 0.0
    %1556 = vmatprep.subr.mxu0 0.0
    %1557 = vmatpush2.msra.mxu0 0.0
    %1558 = vmatprep.subr.mxu0 0.0
    %1559 = vmatpush2.msra.mxu0 0.0
    %1560 = vmatprep.subr.mxu0 0.0
    %1561 = vmatpush2.msra.mxu0 0.0
    %1562 = vmatprep.subr.mxu0 0.0
    %1563 = vmatpush2.msra.mxu0 0.0
    %1564 = vmatprep.subr.mxu0 0.0
    %1565 = vmatpush2.msra.mxu0 0.0
    %1566 = vmatprep.subr.mxu0 0.0
    %1567 = vmatpush2.msra.mxu0 0.0
    %1568 = vmatprep.subr.mxu0 0.0
    %1569 = vmatpush2.msra.mxu0 0.0
    %1570 = vmatprep.subr.mxu0 0.0
    %1571 = vmatpush2.msra.mxu0 0.0
    %1572 = vmatprep.subr.mxu0 0.0
    %1573 = vmatpush2.msra.mxu0 0.0
    %1574 = vmatprep.subr.mxu0 0.0
    %1575 = vmatpush2.msra.mxu0 0.0
    %1576 = vmatprep.subr.mxu0 0.0
    %1577 = vmatpush2.msra.mxu0 0.0
    %1578 = vmatprep.subr.mxu0 0.0
    %1579 = vmatpush2.msra.mxu0 0.0
    %1580 = vmatprep.subr.mxu0 0.0
    %1581 = vmatpush2.msra.mxu0 0.0
    %1582 = vmatprep.mubr.f32.mxu0 0.0
    %1583 = vmatmul.mubr.f32.gmra.mxu0 %v1516
    %v1584 = vpop.f32.mrf.mxu0
    %v1585 = vadd.f32 0.0, %v1584
    %v1586 = vpop.f32.mrf.mxu0
    %1587 = vdwg.mxu0
    %1588 = vst.msk [vmem:[#allocation3] sm:$0xff] %vm160, %v1074
    %1590 = vrot.lane.b32.xlu0 %v1147, 8
    %v1591 = vpop.permute.xlu0 %1590
    %vm1593 = vcmask 130112
    %1594 = vst.msk [vmem:[#allocation3] sm:$0xff] %vm1593, %v1591
    %1596 = vrot.lane.b32.xlu0 %v1220, 16
    %v1597 = vpop.permute.xlu0 %1596
    %vm1599 = vcmask 195712
    %1600 = vst.msk [vmem:[#allocation3] sm:$0xff] %vm1599, %v1597
    %1602 = vrot.lane.b32.xlu0 %v1293, 24
    %v1603 = vpop.permute.xlu0 %1602
    %vm1605 = vcmask 261312
    %1606 = vst.msk [vmem:[#allocation3] sm:$0xff] %vm1605, %v1603
    %1607 = vst.msk [vmem:[#allocation3 + $0x8] sm:$0xff] %vm160, %v1366
    %1609 = vrot.lane.b32.xlu0 %v1439, 8
    %v1610 = vpop.permute.xlu0 %1609
    %1612 = vst.msk [vmem:[#allocation3 + $0x8] sm:$0xff] %vm1593, %v1610
    %1614 = vrot.lane.b32.xlu0 %v1512, 16
    %v1615 = vpop.permute.xlu0 %1614
    %1617 = vst.msk [vmem:[#allocation3 + $0x8] sm:$0xff] %vm1599, %v1615
    %1619 = vrot.lane.b32.xlu0 %v1585, 24
    %v1620 = vpop.permute.xlu0 %1619
    %1622 = vst.msk [vmem:[#allocation3 + $0x8] sm:$0xff] %vm1605, %v1620
    %v1623 = vld [vmem:[#allocation3] sm:$0xff]
    %v1624 = vld [vmem:[#allocation3 + $0x8] sm:$0xff]
    %v1625 = vld [vmem:[#allocation9] sm:$0xff]
    %v1626 = vld [vmem:[#allocation9 + $0x8] sm:$0xff]
    %v1627 = vld [vmem:[#allocation9 + $0x10] sm:$0xff]
    %v1628 = vld [vmem:[#allocation9 + $0x18] sm:$0xff]
    %v1629 = vld [vmem:[%s4] sm:$0x1]
    %v1631 = vlaneseq
    %v1632 = vshrl.u32 %v1631, 7
    %v1633 = vsub.s32 0, %v1632
    %v1634 = vrot.slane %v1629, %v1633
    %v1637 = vsel %vm78, %v1623, 0
    %v1640 = vsel %vm78, %v1624, 0
    %1642 = vmatprep.subr.mxu0 0.0
    %1643 = vmatpush1.msra.mxu0 0.0
    %1644 = vmatprep.subr.mxu0 0.0
    %1645 = vmatpush1.msra.mxu0 0.0
    %1646 = vmatprep.subr.mxu0 0.0
    %1647 = vmatpush1.msra.mxu0 0.0
    %1648 = vmatprep.subr.mxu0 0.0
    %1649 = vmatpush1.msra.mxu0 0.0
    %1650 = vmatprep.subr.mxu0 0.0
    %1651 = vmatpush1.msra.mxu0 0.0
    %1652 = vmatprep.subr.mxu0 0.0
    %1653 = vmatpush1.msra.mxu0 0.0
    %1654 = vmatprep.subr.mxu0 0.0
    %1655 = vmatpush1.msra.mxu0 0.0
    %1656 = vmatprep.subr.mxu0 0.0
    %1657 = vmatpush1.msra.mxu0 0.0
    %1658 = vmatprep.subr.mxu0 0.0
    %1659 = vmatpush1.msra.mxu0 0.0
    %1660 = vmatprep.subr.mxu0 0.0
    %1661 = vmatpush1.msra.mxu0 0.0
    %1662 = vmatprep.subr.mxu0 0.0
    %1663 = vmatpush1.msra.mxu0 0.0
    %1664 = vmatprep.subr.mxu0 0.0
    %1665 = vmatpush1.msra.mxu0 0.0
    %1666 = vmatprep.subr.mxu0 0.0
    %1667 = vmatpush1.msra.mxu0 %v1628
    %1668 = vmatprep.subr.mxu0 0.0
    %1669 = vmatpush1.msra.mxu0 %v1627
    %1670 = vmatprep.subr.mxu0 0.0
    %1671 = vmatpush1.msra.mxu0 %v1626
    %1672 = vmatprep.subr.mxu0 0.0
    %1673 = vmatpush1.msra.mxu0 %v1625
    %1674 = vmatprep.subr.mxu0 0.0
    %1675 = vmatpush2.msra.mxu0 0.0
    %1676 = vmatprep.subr.mxu0 0.0
    %1677 = vmatpush2.msra.mxu0 0.0
    %1678 = vmatprep.subr.mxu0 0.0
    %1679 = vmatpush2.msra.mxu0 0.0
    %1680 = vmatprep.subr.mxu0 0.0
    %1681 = vmatpush2.msra.mxu0 0.0
    %1682 = vmatprep.subr.mxu0 0.0
    %1683 = vmatpush2.msra.mxu0 0.0
    %1684 = vmatprep.subr.mxu0 0.0
    %1685 = vmatpush2.msra.mxu0 0.0
    %1686 = vmatprep.subr.mxu0 0.0
    %1687 = vmatpush2.msra.mxu0 0.0
    %1688 = vmatprep.subr.mxu0 0.0
    %1689 = vmatpush2.msra.mxu0 0.0
    %1690 = vmatprep.subr.mxu0 0.0
    %1691 = vmatpush2.msra.mxu0 0.0
    %1692 = vmatprep.subr.mxu0 0.0
    %1693 = vmatpush2.msra.mxu0 0.0
    %1694 = vmatprep.subr.mxu0 0.0
    %1695 = vmatpush2.msra.mxu0 0.0
    %1696 = vmatprep.subr.mxu0 0.0
    %1697 = vmatpush2.msra.mxu0 0.0
    %1698 = vmatprep.subr.mxu0 0.0
    %1699 = vmatpush2.msra.mxu0 0.0
    %1700 = vmatprep.subr.mxu0 0.0
    %1701 = vmatpush2.msra.mxu0 0.0
    %1702 = vmatprep.subr.mxu0 0.0
    %1703 = vmatpush2.msra.mxu0 0.0
    %1704 = vmatprep.subr.mxu0 0.0
    %1705 = vmatpush2.msra.mxu0 0.0
    %1706 = vmatprep.mubr.f32.mxu0 0.0
    %1707 = vmatmul.mubr.f32.gmra.mxu0 %v1637
    %v1708 = vpop.f32.mrf.mxu0
    %v1709 = vadd.f32 %v1634, %v1708
    %v1710 = vpop.f32.mrf.mxu0
    %1711 = vmatprep.mubr.f32.mxu0 0.0
    %1712 = vmatmul.mubr.f32.gmra.mxu0 %v1640
    %v1713 = vpop.f32.mrf.mxu0
    %v1714 = vadd.f32 %v1634, %v1713
    %v1715 = vpop.f32.mrf.mxu0
    %1716 = vdwg.mxu0
    %1717 = vst.msk [vmem:[#allocation10] sm:$0xff] %vm78, %v1709
    %1718 = vst.msk [vmem:[#allocation10 + $0x8] sm:$0xff] %vm78, %v1714
    // Predicated region
    $region34: #{tpu_custom_call.1} parent=1 // pred_check
      _
    $region35: #{tpu_custom_call.1} parent=1 // pred_check_branch
      %1720 = sbr.rel (0) target = $region37
    $region36: #{tpu_custom_call.1} parent=1 // pred_region
      %s1722 = ssub.s32 256, 256
      %1723 = vsyncadd [#allocation6], %s1722
      %s1724 = sshll.u32 [#allocation10], 4
      %s1725 = int_to_ptr.vmem [resolvable:$true] %s1724
      %1730 = dma.vmem_to_hbm [thread:$0]  %s1725, 256, %s5, [#allocation6], 128, 128, 8
    $region37: #{tpu_custom_call.1} parent=1 // pred_fallthru
      _
    // Predicated region
    $region38: #{tpu_custom_call.1} parent=1 // pred_check
      _
    $region39: #{tpu_custom_call.1} parent=1 // pred_check_branch
      %1732 = sbr.rel (0) target = $region41
    $region40: #{tpu_custom_call.1} parent=1 // pred_region
      %s1734 = ssub.s32 1024, 1024
      %1735 = vsyncadd [#allocation12], %s1734
      %s1736 = sshll.u32 [#allocation11], 4
      %s1737 = int_to_ptr.vmem [resolvable:$true] %s1736
      %1742 = dma.vmem_to_hbm [thread:$0]  %s1737, 1024, %s6, [#allocation12], 128, 128, 8
    $region41: #{tpu_custom_call.1} parent=1 // pred_fallthru
      _
    // Predicated region
    $region42: #{tpu_custom_call.1} parent=1 // pred_check
      _
    $region43: #{tpu_custom_call.1} parent=1 // pred_check_branch
      %1744 = sbr.rel (0) target = $region45
    $region44: #{tpu_custom_call.1} parent=1 // pred_region
      %1745 = dma.done [#allocation6], 256
    $region45: #{tpu_custom_call.1} parent=1 // pred_fallthru
      _
    // Predicated region
    $region46: #{tpu_custom_call.1} parent=1 // pred_check
      _
    $region47: #{tpu_custom_call.1} parent=1 // pred_check_branch
      %1747 = sbr.rel (0) target = $region49
    $region48: #{tpu_custom_call.1} parent=1 // pred_region
      %1748 = dma.done [#allocation12], 1024
    $region49: #{tpu_custom_call.1} parent=1 // pred_fallthru
      _
    %1749 = vsyncpa [#allocation5], 1
    %1750 = vsyncpa [#allocation8], 1
    %1751 = vsyncpa [#allocation6], 1
    %1752 = vsyncpa [#allocation12], 1

// kernel: tpu_custom_call.1
$region0: #{tpu_custom_call.1}
  #allocation0 [shape = 'u32[]', space=smem, size = 0x4, offset = 0x4, fixed_abs, tag = 'smem constant byte address 0x4 - core index']
  #allocation1 [shape = 'u32[144,128]{1,0:T(1,128)}', space=vmem, size = 0x12000, scoped, tag = 'internal scratch']
  #allocation2 [shape = 'f32[3,8,8,8]{3,2,1,0:T(8,128)}', space=vmem, size = 0x18000, scoped, tag = 'scratch operand']
  #allocation3 [shape = 'f32[16,32]{1,0:T(8,128)}', space=vmem, size = 0x2000, scoped, tag = 'scratch operand']
  %s0 = inlined_call_operand.hbm [shape: f32[2,8,32], index: 0, kind: input, shape index: {}]
  %s1 = inlined_call_operand.hbm [shape: f32[32,96], index: 1, kind: input, shape index: {}]
  %s2 = inlined_call_operand.vmem [shape: f32[1,96], index: 2, kind: input, shape index: {}]
  %s3 = inlined_call_operand.hbm [shape: f32[32,32], index: 3, kind: input, shape index: {}]
  %s4 = inlined_call_operand.vmem [shape: f32[1,32], index: 4, kind: input, shape index: {}]
  %s5 = inlined_call_operand.hbm [shape: f32[2,8,32], index: 5, kind: output, shape index: {0}]
  %s6 = inlined_call_operand.hbm [shape: f32[2,4,8,8], index: 6, kind: output, shape index: {1}]
  %7 = xla_tuple %s5, %s6
  %s8 = sld [smem:[#allocation0]]
  $region50: #{tpu_custom_call.1} parent=0
    _
  %s10 = ssub.s32 1, %s8
  %s11 = scalar_select 0, %s10, %s8
  $region1: #{tpu_custom_call.1} parent=0
    #allocation4 [shape = 'u8[8192]{0}', space=vmem, size = 0x2000, scoped, tag = 'input window, operand 0, single buffered']
    #allocation5 [shape = 's32[1]{0}', space=sflag, size = 0x4, scoped, tag = 'scoped memory for tpu_custom_call.1']
    #allocation6 [shape = 's32[1]{0}', space=sflag, size = 0x4, scoped, tag = 'scoped memory for tpu_custom_call.1']
    #allocation7 [shape = 'u8[16384]{0}', space=vmem, size = 0x4000, scoped, tag = 'input window, operand 1, single buffered']
    #allocation8 [shape = 's32[1]{0}', space=sflag, size = 0x4, scoped, tag = 'scoped memory for tpu_custom_call.1']
    #allocation9 [shape = 'u8[16384]{0}', space=vmem, size = 0x4000, scoped, tag = 'input window, operand 3, single buffered']
    #allocation10 [shape = 'u8[8192]{0}', space=vmem, size = 0x2000, scoped, tag = 'output window, operand 0, single buffered']
    #allocation11 [shape = 'u8[32768]{0}', space=vmem, size = 0x8000, scoped, tag = 'output window, operand 1, single buffered']
    #allocation12 [shape = 's32[1]{0}', space=sflag, size = 0x4, scoped, tag = 'scoped memory for tpu_custom_call.1']
    %12 = vsyncpa [#allocation5], 0
    %13 = vsyncpa [#allocation8], 0
    %14 = vsyncpa [#allocation6], 0
    %15 = vsyncpa [#allocation12], 0
    // Predicated region
    $region2: #{tpu_custom_call.1} parent=1 // pred_check
      _
    $region3: #{tpu_custom_call.1} parent=1 // pred_check_branch
      %17 = sbr.rel (0) target = $region5
    $region4: #{tpu_custom_call.1} parent=1 // pred_region
      %s19 = ssub.s32 256, 256
      %20 = vsyncadd [#allocation5], %s19
      %s21 = sshll.u32 [#allocation4], 4
      %s22 = int_to_ptr.vmem [resolvable:$true] %s21
      %27 = dma.hbm_to_vmem [thread:$0]  %s0, 256, %s22, [#allocation5], 128, 128, 8
    $region5: #{tpu_custom_call.1} parent=1 // pred_fallthru
      _
    // Predicated region
    $region6: #{tpu_custom_call.1} parent=1 // pred_check
      _
    $region7: #{tpu_custom_call.1} parent=1 // pred_check_branch
      %29 = sbr.rel (0) target = $region9
    $region8: #{tpu_custom_call.1} parent=1 // pred_region
      %s31 = ssub.s32 512, 512
      %32 = vsyncadd [#allocation8], %s31
      %s33 = sshll.u32 [#allocation7], 4
      %s34 = int_to_ptr.vmem [resolvable:$true] %s33
      %39 = dma.hbm_to_vmem [thread:$0]  %s1, 512, %s34, [#allocation8], 128, 128, 8
    $region9: #{tpu_custom_call.1} parent=1 // pred_fallthru
      _
    // Predicated region
    $region10: #{tpu_custom_call.1} parent=1 // pred_check
      _
    $region11: #{tpu_custom_call.1} parent=1 // pred_check_branch
      %41 = sbr.rel (0) target = $region13
    $region12: #{tpu_custom_call.1} parent=1 // pred_region
      _
    $region13: #{tpu_custom_call.1} parent=1 // pred_fallthru
      _
    // Predicated region
    $region14: #{tpu_custom_call.1} parent=1 // pred_check
      _
    $region15: #{tpu_custom_call.1} parent=1 // pred_check_branch
      %43 = sbr.rel (0) target = $region17
    $region16: #{tpu_custom_call.1} parent=1 // pred_region
      %s45 = ssub.s32 512, 512
      %46 = vsyncadd [#allocation8], %s45
      %s47 = sshll.u32 [#allocation9], 4
      %s48 = int_to_ptr.vmem [resolvable:$true] %s47
      %53 = dma.hbm_to_vmem [thread:$0]  %s3, 512, %s48, [#allocation8], 128, 128, 8
    $region17: #{tpu_custom_call.1} parent=1 // pred_fallthru
      _
    // Predicated region
    $region18: #{tpu_custom_call.1} parent=1 // pred_check
      _
    $region19: #{tpu_custom_call.1} parent=1 // pred_check_branch
      %55 = sbr.rel (0) target = $region21
    $region20: #{tpu_custom_call.1} parent=1 // pred_region
      _
    $region21: #{tpu_custom_call.1} parent=1 // pred_fallthru
      _
    // Predicated region
    $region22: #{tpu_custom_call.1} parent=1 // pred_check
      _
    $region23: #{tpu_custom_call.1} parent=1 // pred_check_branch
      %57 = sbr.rel (0) target = $region25
    $region24: #{tpu_custom_call.1} parent=1 // pred_region
      %58 = dma.done [#allocation5], 256
    $region25: #{tpu_custom_call.1} parent=1 // pred_fallthru
      _
    // Predicated region
    $region26: #{tpu_custom_call.1} parent=1 // pred_check
      _
    $region27: #{tpu_custom_call.1} parent=1 // pred_check_branch
      %60 = sbr.rel (0) target = $region29
    $region28: #{tpu_custom_call.1} parent=1 // pred_region
      %61 = dma.done [#allocation8], 512
    $region29: #{tpu_custom_call.1} parent=1 // pred_fallthru
      _
    // Predicated region
    $region30: #{tpu_custom_call.1} parent=1 // pred_check
      _
    $region31: #{tpu_custom_call.1} parent=1 // pred_check_branch
      %63 = sbr.rel (0) target = $region33
    $region32: #{tpu_custom_call.1} parent=1 // pred_region
      %64 = dma.done [#allocation8], 512
    $region33: #{tpu_custom_call.1} parent=1 // pred_fallthru
      _
    %v65 = vld [vmem:[#allocation4] sm:$0xff]
    %v66 = vld [vmem:[#allocation4 + $0x8] sm:$0xff]
    %v67 = vld [vmem:[#allocation7] sm:$0xff]
    %v68 = vld [vmem:[#allocation7 + $0x8] sm:$0xff]
    %v69 = vld [vmem:[#allocation7 + $0x10] sm:$0xff]
    %v70 = vld [vmem:[#allocation7 + $0x18] sm:$0xff]
    %v71 = vld [vmem:[%s2] sm:$0x1]
    %v73 = vlaneseq
    %v74 = vshrl.u32 %v73, 7
    %v75 = vsub.s32 0, %v74
    %v76 = vrot.slane %v71, %v75
    %vm78 = vcmask 261120
    %v80 = vsel %vm78, %v65, 0
    %v83 = vsel %vm78, %v66, 0
    %85 = vmatprep.subr.mxu0 0.0
    %86 = vmatpush1.msra.mxu0 0.0
    %87 = vmatprep.subr.mxu0 0.0
    %88 = vmatpush1.msra.mxu0 0.0
    %89 = vmatprep.subr.mxu0 0.0
    %90 = vmatpush1.msra.mxu0 0.0
    %91 = vmatprep.subr.mxu0 0.0
    %92 = vmatpush1.msra.mxu0 0.0
    %93 = vmatprep.subr.mxu0 0.0
    %94 = vmatpush1.msra.mxu0 0.0
    %95 = vmatprep.subr.mxu0 0.0
    %96 = vmatpush1.msra.mxu0 0.0
    %97 = vmatprep.subr.mxu0 0.0
    %98 = vmatpush1.msra.mxu0 0.0
    %99 = vmatprep.subr.mxu0 0.0
    %100 = vmatpush1.msra.mxu0 0.0
    %101 = vmatprep.subr.mxu0 0.0
    %102 = vmatpush1.msra.mxu0 0.0
    %103 = vmatprep.subr.mxu0 0.0
    %104 = vmatpush1.msra.mxu0 0.0
    %105 = vmatprep.subr.mxu0 0.0
    %106 = vmatpush1.msra.mxu0 0.0
    %107 = vmatprep.subr.mxu0 0.0
    %108 = vmatpush1.msra.mxu0 0.0
    %109 = vmatprep.subr.mxu0 0.0
    %110 = vmatpush1.msra.mxu0 %v70
    %111 = vmatprep.subr.mxu0 0.0
    %112 = vmatpush1.msra.mxu0 %v69
    %113 = vmatprep.subr.mxu0 0.0
    %114 = vmatpush1.msra.mxu0 %v68
    %115 = vmatprep.subr.mxu0 0.0
    %116 = vmatpush1.msra.mxu0 %v67
    %117 = vmatprep.subr.mxu0 0.0
    %118 = vmatpush2.msra.mxu0 0.0
    %119 = vmatprep.subr.mxu0 0.0
    %120 = vmatpush2.msra.mxu0 0.0
    %121 = vmatprep.subr.mxu0 0.0
    %122 = vmatpush2.msra.mxu0 0.0
    %123 = vmatprep.subr.mxu0 0.0
    %124 = vmatpush2.msra.mxu0 0.0
    %125 = vmatprep.subr.mxu0 0.0
    %126 = vmatpush2.msra.mxu0 0.0
    %127 = vmatprep.subr.mxu0 0.0
    %128 = vmatpush2.msra.mxu0 0.0
    %129 = vmatprep.subr.mxu0 0.0
    %130 = vmatpush2.msra.mxu0 0.0
    %131 = vmatprep.subr.mxu0 0.0
    %132 = vmatpush2.msra.mxu0 0.0
    %133 = vmatprep.subr.mxu0 0.0
    %134 = vmatpush2.msra.mxu0 0.0
    %135 = vmatprep.subr.mxu0 0.0
    %136 = vmatpush2.msra.mxu0 0.0
    %137 = vmatprep.subr.mxu0 0.0
    %138 = vmatpush2.msra.mxu0 0.0
    %139 = vmatprep.subr.mxu0 0.0
    %140 = vmatpush2.msra.mxu0 0.0
    %141 = vmatprep.subr.mxu0 0.0
    %142 = vmatpush2.msra.mxu0 0.0
    %143 = vmatprep.subr.mxu0 0.0
    %144 = vmatpush2.msra.mxu0 0.0
    %145 = vmatprep.subr.mxu0 0.0
    %146 = vmatpush2.msra.mxu0 0.0
    %147 = vmatprep.subr.mxu0 0.0
    %148 = vmatpush2.msra.mxu0 0.0
    %149 = vmatprep.mubr.f32.mxu0 0.0
    %150 = vmatmul.mubr.f32.gmra.mxu0 %v80
    %v151 = vpop.f32.mrf.mxu0
    %v152 = vadd.f32 %v76, %v151
    %v153 = vpop.f32.mrf.mxu0
    %154 = vmatprep.mubr.f32.mxu0 0.0
    %155 = vmatmul.mubr.f32.gmra.mxu0 %v83
    %v156 = vpop.f32.mrf.mxu0
    %v157 = vadd.f32 %v76, %v156
    %v158 = vpop.f32.mrf.mxu0
    %159 = vdwg.mxu0
    %vm160 = vcmask 64512
    %161 = vst.msk [vmem:[#allocation2] sm:$0xff] %vm160, %v152
    %163 = vrot.lane.b32.xlu0 %v152, 96
    %v164 = vpop.permute.xlu0 %163
    %s166 = scalar_lea.vmem [#allocation2], 64
    %167 = vst.msk [vmem:[%s166] sm:$0xff] %vm160, %v164
    %168 = vrot.lane.b32.xlu0 %v152, 64
    %v169 = vpop.permute.xlu0 %168
    %s171 = scalar_lea.vmem [#allocation2], 128
    %172 = vst.msk [vmem:[%s171] sm:$0xff] %vm160, %v169
    %173 = vrot.lane.b32.xlu0 %v152, 120
    %v174 = vpop.permute.xlu0 %173
    %s176 = scalar_lea.vmem [#allocation2], 8
    %177 = vst.msk [vmem:[%s176] sm:$0xff] %vm160, %v174
    %178 = vrot.lane.b32.xlu0 %v152, 88
    %v179 = vpop.permute.xlu0 %178
    %s181 = scalar_lea.vmem [#allocation2], 72
    %182 = vst.msk [vmem:[%s181] sm:$0xff] %vm160, %v179
    %183 = vrot.lane.b32.xlu0 %v152, 56
    %v184 = vpop.permute.xlu0 %183
    %s186 = scalar_lea.vmem [#allocation2], 136
    %187 = vst.msk [vmem:[%s186] sm:$0xff] %vm160, %v184
    %188 = vrot.lane.b32.xlu0 %v152, 112
    %v189 = vpop.permute.xlu0 %188
    %s191 = scalar_lea.vmem [#allocation2], 16
    %192 = vst.msk [vmem:[%s191] sm:$0xff] %vm160, %v189
    %193 = vrot.lane.b32.xlu0 %v152, 80
    %v194 = vpop.permute.xlu0 %193
    %s196 = scalar_lea.vmem [#allocation2], 80
    %197 = vst.msk [vmem:[%s196] sm:$0xff] %vm160, %v194
    %198 = vrot.lane.b32.xlu0 %v152, 48
    %v199 = vpop.permute.xlu0 %198
    %s201 = scalar_lea.vmem [#allocation2], 144
    %202 = vst.msk [vmem:[%s201] sm:$0xff] %vm160, %v199
    %203 = vrot.lane.b32.xlu0 %v152, 104
    %v204 = vpop.permute.xlu0 %203
    %s206 = scalar_lea.vmem [#allocation2], 24
    %207 = vst.msk [vmem:[%s206] sm:$0xff] %vm160, %v204
    %208 = vrot.lane.b32.xlu0 %v152, 72
    %v209 = vpop.permute.xlu0 %208
    %s211 = scalar_lea.vmem [#allocation2], 88
    %212 = vst.msk [vmem:[%s211] sm:$0xff] %vm160, %v209
    %213 = vrot.lane.b32.xlu0 %v152, 40
    %v214 = vpop.permute.xlu0 %213
    %s216 = scalar_lea.vmem [#allocation2], 152
    %217 = vst.msk [vmem:[%s216] sm:$0xff] %vm160, %v214
    %s218 = scalar_lea.vmem [#allocation2], 32
    %219 = vst.msk [vmem:[%s218] sm:$0xff] %vm160, %v157
    %221 = vrot.lane.b32.xlu0 %v157, 96
    %v222 = vpop.permute.xlu0 %221
    %s224 = scalar_lea.vmem [#allocation2], 96
    %225 = vst.msk [vmem:[%s224] sm:$0xff] %vm160, %v222
    %226 = vrot.lane.b32.xlu0 %v157, 64
    %v227 = vpop.permute.xlu0 %226
    %s229 = scalar_lea.vmem [#allocation2], 160
    %230 = vst.msk [vmem:[%s229] sm:$0xff] %vm160, %v227
    %231 = vrot.lane.b32.xlu0 %v157, 120
    %v232 = vpop.permute.xlu0 %231
    %s234 = scalar_lea.vmem [#allocation2], 40
    %235 = vst.msk [vmem:[%s234] sm:$0xff] %vm160, %v232
    %236 = vrot.lane.b32.xlu0 %v157, 88
    %v237 = vpop.permute.xlu0 %236
    %s239 = scalar_lea.vmem [#allocation2], 104
    %240 = vst.msk [vmem:[%s239] sm:$0xff] %vm160, %v237
    %241 = vrot.lane.b32.xlu0 %v157, 56
    %v242 = vpop.permute.xlu0 %241
    %s244 = scalar_lea.vmem [#allocation2], 168
    %245 = vst.msk [vmem:[%s244] sm:$0xff] %vm160, %v242
    %246 = vrot.lane.b32.xlu0 %v157, 112
    %v247 = vpop.permute.xlu0 %246
    %s249 = scalar_lea.vmem [#allocation2], 48
    %250 = vst.msk [vmem:[%s249] sm:$0xff] %vm160, %v247
    %251 = vrot.lane.b32.xlu0 %v157, 80
    %v252 = vpop.permute.xlu0 %251
    %s254 = scalar_lea.vmem [#allocation2], 112
    %255 = vst.msk [vmem:[%s254] sm:$0xff] %vm160, %v252
    %256 = vrot.lane.b32.xlu0 %v157, 48
    %v257 = vpop.permute.xlu0 %256
    %s259 = scalar_lea.vmem [#allocation2], 176
    %260 = vst.msk [vmem:[%s259] sm:$0xff] %vm160, %v257
    %261 = vrot.lane.b32.xlu0 %v157, 104
    %v262 = vpop.permute.xlu0 %261
    %s264 = scalar_lea.vmem [#allocation2], 56
    %265 = vst.msk [vmem:[%s264] sm:$0xff] %vm160, %v262
    %266 = vrot.lane.b32.xlu0 %v157, 72
    %v267 = vpop.permute.xlu0 %266
    %s269 = scalar_lea.vmem [#allocation2], 120
    %270 = vst.msk [vmem:[%s269] sm:$0xff] %vm160, %v267
    %271 = vrot.lane.b32.xlu0 %v157, 40
    %v272 = vpop.permute.xlu0 %271
    %s274 = scalar_lea.vmem [#allocation2], 184
    %275 = vst.msk [vmem:[%s274] sm:$0xff] %vm160, %v272
    %v276 = vld [vmem:[#allocation2] sm:$0xff]
    %v277 = vld [vmem:[#allocation2 + $0x8] sm:$0xff]
    %v278 = vld [vmem:[#allocation2 + $0x10] sm:$0xff]
    %v279 = vld [vmem:[#allocation2 + $0x18] sm:$0xff]
    %v280 = vld [vmem:[#allocation2 + $0x20] sm:$0xff]
    %v281 = vld [vmem:[#allocation2 + $0x28] sm:$0xff]
    %v282 = vld [vmem:[#allocation2 + $0x30] sm:$0xff]
    %v283 = vld [vmem:[#allocation2 + $0x38] sm:$0xff]
    %v284 = vld [vmem:[%s166] sm:$0xff]
    %v285 = vld [vmem:[%s166 + $0x8] sm:$0xff]
    %v286 = vld [vmem:[%s166 + $0x10] sm:$0xff]
    %v287 = vld [vmem:[%s166 + $0x18] sm:$0xff]
    %v288 = vld [vmem:[%s166 + $0x20] sm:$0xff]
    %v289 = vld [vmem:[%s166 + $0x28] sm:$0xff]
    %v290 = vld [vmem:[%s166 + $0x30] sm:$0xff]
    %v291 = vld [vmem:[%s166 + $0x38] sm:$0xff]
    %v292 = vld [vmem:[%s171] sm:$0xff]
    %v293 = vld [vmem:[%s171 + $0x8] sm:$0xff]
    %v294 = vld [vmem:[%s171 + $0x10] sm:$0xff]
    %v295 = vld [vmem:[%s171 + $0x18] sm:$0xff]
    %v296 = vld [vmem:[%s171 + $0x20] sm:$0xff]
    %v297 = vld [vmem:[%s171 + $0x28] sm:$0xff]
    %v298 = vld [vmem:[%s171 + $0x30] sm:$0xff]
    %v299 = vld [vmem:[%s171 + $0x38] sm:$0xff]
    %v301 = vsel %vm160, %v276, 0
    %v304 = vsel %vm160, %v284, 0
    %306 = vmatprep.subr.mxu0 0.0
    %307 = vmatpush1.xpose.msra.mxu0 0.0
    %308 = vmatprep.subr.mxu0 0.0
    %309 = vmatpush1.xpose.msra.mxu0 0.0
    %310 = vmatprep.subr.mxu0 0.0
    %311 = vmatpush1.xpose.msra.mxu0 0.0
    %312 = vmatprep.subr.mxu0 0.0
    %313 = vmatpush1.xpose.msra.mxu0 0.0
    %314 = vmatprep.subr.mxu0 0.0
    %315 = vmatpush1.xpose.msra.mxu0 0.0
    %316 = vmatprep.subr.mxu0 0.0
    %317 = vmatpush1.xpose.msra.mxu0 0.0
    %318 = vmatprep.subr.mxu0 0.0
    %319 = vmatpush1.xpose.msra.mxu0 0.0
    %320 = vmatprep.subr.mxu0 0.0
    %321 = vmatpush1.xpose.msra.mxu0 0.0
    %322 = vmatprep.subr.mxu0 0.0
    %323 = vmatpush1.xpose.msra.mxu0 0.0
    %324 = vmatprep.subr.mxu0 0.0
    %325 = vmatpush1.xpose.msra.mxu0 0.0
    %326 = vmatprep.subr.mxu0 0.0
    %327 = vmatpush1.xpose.msra.mxu0 0.0
    %328 = vmatprep.subr.mxu0 0.0
    %329 = vmatpush1.xpose.msra.mxu0 0.0
    %330 = vmatprep.subr.mxu0 0.0
    %331 = vmatpush1.xpose.msra.mxu0 0.0
    %332 = vmatprep.subr.mxu0 0.0
    %333 = vmatpush1.xpose.msra.mxu0 0.0
    %334 = vmatprep.subr.mxu0 0.0
    %335 = vmatpush1.xpose.msra.mxu0 0.0
    %336 = vmatprep.subr.mxu0 0.0
    %337 = vmatpush1.xpose.msra.mxu0 %v304
    %338 = vmatprep.subr.mxu0 0.0
    %339 = vmatpush2.xpose.msra.mxu0 0.0
    %340 = vmatprep.subr.mxu0 0.0
    %341 = vmatpush2.xpose.msra.mxu0 0.0
    %342 = vmatprep.subr.mxu0 0.0
    %343 = vmatpush2.xpose.msra.mxu0 0.0
    %344 = vmatprep.subr.mxu0 0.0
    %345 = vmatpush2.xpose.msra.mxu0 0.0
    %346 = vmatprep.subr.mxu0 0.0
    %347 = vmatpush2.xpose.msra.mxu0 0.0
    %348 = vmatprep.subr.mxu0 0.0
    %349 = vmatpush2.xpose.msra.mxu0 0.0
    %350 = vmatprep.subr.mxu0 0.0
    %351 = vmatpush2.xpose.msra.mxu0 0.0
    %352 = vmatprep.subr.mxu0 0.0
    %353 = vmatpush2.xpose.msra.mxu0 0.0
    %354 = vmatprep.subr.mxu0 0.0
    %355 = vmatpush2.xpose.msra.mxu0 0.0
    %356 = vmatprep.subr.mxu0 0.0
    %357 = vmatpush2.xpose.msra.mxu0 0.0
    %358 = vmatprep.subr.mxu0 0.0
    %359 = vmatpush2.xpose.msra.mxu0 0.0
    %360 = vmatprep.subr.mxu0 0.0
    %361 = vmatpush2.xpose.msra.mxu0 0.0
    %362 = vmatprep.subr.mxu0 0.0
    %363 = vmatpush2.xpose.msra.mxu0 0.0
    %364 = vmatprep.subr.mxu0 0.0
    %365 = vmatpush2.xpose.msra.mxu0 0.0
    %366 = vmatprep.subr.mxu0 0.0
    %367 = vmatpush2.xpose.msra.mxu0 0.0
    %368 = vmatprep.subr.mxu0 0.0
    %369 = vmatpush2.xpose.msra.mxu0 0.0
    %370 = vmatprep.mubr.f32.mxu0 0.0
    %371 = vmatmul.mubr.f32.gmra.mxu0 %v301
    %v372 = vpop.f32.mrf.mxu0
    %v373 = vadd.f32 0.0, %v372
    %v374 = vpop.f32.mrf.mxu0
    %375 = vdwg.mxu0
    %v377 = vsel %vm160, %v277, 0
    %v380 = vsel %vm160, %v285, 0
    %382 = vmatprep.subr.mxu0 0.0
    %383 = vmatpush1.xpose.msra.mxu0 0.0
    %384 = vmatprep.subr.mxu0 0.0
    %385 = vmatpush1.xpose.msra.mxu0 0.0
    %386 = vmatprep.subr.mxu0 0.0
    %387 = vmatpush1.xpose.msra.mxu0 0.0
    %388 = vmatprep.subr.mxu0 0.0
    %389 = vmatpush1.xpose.msra.mxu0 0.0
    %390 = vmatprep.subr.mxu0 0.0
    %391 = vmatpush1.xpose.msra.mxu0 0.0
    %392 = vmatprep.subr.mxu0 0.0
    %393 = vmatpush1.xpose.msra.mxu0 0.0
    %394 = vmatprep.subr.mxu0 0.0
    %395 = vmatpush1.xpose.msra.mxu0 0.0
    %396 = vmatprep.subr.mxu0 0.0
    %397 = vmatpush1.xpose.msra.mxu0 0.0
    %398 = vmatprep.subr.mxu0 0.0
    %399 = vmatpush1.xpose.msra.mxu0 0.0
    %400 = vmatprep.subr.mxu0 0.0
    %401 = vmatpush1.xpose.msra.mxu0 0.0
    %402 = vmatprep.subr.mxu0 0.0
    %403 = vmatpush1.xpose.msra.mxu0 0.0
    %404 = vmatprep.subr.mxu0 0.0
    %405 = vmatpush1.xpose.msra.mxu0 0.0
    %406 = vmatprep.subr.mxu0 0.0
    %407 = vmatpush1.xpose.msra.mxu0 0.0
    %408 = vmatprep.subr.mxu0 0.0
    %409 = vmatpush1.xpose.msra.mxu0 0.0
    %410 = vmatprep.subr.mxu0 0.0
    %411 = vmatpush1.xpose.msra.mxu0 0.0
    %412 = vmatprep.subr.mxu0 0.0
    %413 = vmatpush1.xpose.msra.mxu0 %v380
    %414 = vmatprep.subr.mxu0 0.0
    %415 = vmatpush2.xpose.msra.mxu0 0.0
    %416 = vmatprep.subr.mxu0 0.0
    %417 = vmatpush2.xpose.msra.mxu0 0.0
    %418 = vmatprep.subr.mxu0 0.0
    %419 = vmatpush2.xpose.msra.mxu0 0.0
    %420 = vmatprep.subr.mxu0 0.0
    %421 = vmatpush2.xpose.msra.mxu0 0.0
    %422 = vmatprep.subr.mxu0 0.0
    %423 = vmatpush2.xpose.msra.mxu0 0.0
    %424 = vmatprep.subr.mxu0 0.0
    %425 = vmatpush2.xpose.msra.mxu0 0.0
    %426 = vmatprep.subr.mxu0 0.0
    %427 = vmatpush2.xpose.msra.mxu0 0.0
    %428 = vmatprep.subr.mxu0 0.0
    %429 = vmatpush2.xpose.msra.mxu0 0.0
    %430 = vmatprep.subr.mxu0 0.0
    %431 = vmatpush2.xpose.msra.mxu0 0.0
    %432 = vmatprep.subr.mxu0 0.0
    %433 = vmatpush2.xpose.msra.mxu0 0.0
    %434 = vmatprep.subr.mxu0 0.0
    %435 = vmatpush2.xpose.msra.mxu0 0.0
    %436 = vmatprep.subr.mxu0 0.0
    %437 = vmatpush2.xpose.msra.mxu0 0.0
    %438 = vmatprep.subr.mxu0 0.0
    %439 = vmatpush2.xpose.msra.mxu0 0.0
    %440 = vmatprep.subr.mxu0 0.0
    %441 = vmatpush2.xpose.msra.mxu0 0.0
    %442 = vmatprep.subr.mxu0 0.0
    %443 = vmatpush2.xpose.msra.mxu0 0.0
    %444 = vmatprep.subr.mxu0 0.0
    %445 = vmatpush2.xpose.msra.mxu0 0.0
    %446 = vmatprep.mubr.f32.mxu0 0.0
    %447 = vmatmul.mubr.f32.gmra.mxu0 %v377
    %v448 = vpop.f32.mrf.mxu0
    %v449 = vadd.f32 0.0, %v448
    %v450 = vpop.f32.mrf.mxu0
    %451 = vdwg.mxu0
    %v453 = vsel %vm160, %v278, 0
    %v456 = vsel %vm160, %v286, 0
    %458 = vmatprep.subr.mxu0 0.0
    %459 = vmatpush1.xpose.msra.mxu0 0.0
    %460 = vmatprep.subr.mxu0 0.0
    %461 = vmatpush1.xpose.msra.mxu0 0.0
    %462 = vmatprep.subr.mxu0 0.0
    %463 = vmatpush1.xpose.msra.mxu0 0.0
    %464 = vmatprep.subr.mxu0 0.0
    %465 = vmatpush1.xpose.msra.mxu0 0.0
    %466 = vmatprep.subr.mxu0 0.0
    %467 = vmatpush1.xpose.msra.mxu0 0.0
    %468 = vmatprep.subr.mxu0 0.0
    %469 = vmatpush1.xpose.msra.mxu0 0.0
    %470 = vmatprep.subr.mxu0 0.0
    %471 = vmatpush1.xpose.msra.mxu0 0.0
    %472 = vmatprep.subr.mxu0 0.0
    %473 = vmatpush1.xpose.msra.mxu0 0.0
    %474 = vmatprep.subr.mxu0 0.0
    %475 = vmatpush1.xpose.msra.mxu0 0.0
    %476 = vmatprep.subr.mxu0 0.0
    %477 = vmatpush1.xpose.msra.mxu0 0.0
    %478 = vmatprep.subr.mxu0 0.0
    %479 = vmatpush1.xpose.msra.mxu0 0.0
    %480 = vmatprep.subr.mxu0 0.0
    %481 = vmatpush1.xpose.msra.mxu0 0.0
    %482 = vmatprep.subr.mxu0 0.0
    %483 = vmatpush1.xpose.msra.mxu0 0.0
    %484 = vmatprep.subr.mxu0 0.0
    %485 = vmatpush1.xpose.msra.mxu0 0.0
    %486 = vmatprep.subr.mxu0 0.0
    %487 = vmatpush1.xpose.msra.mxu0 0.0
    %488 = vmatprep.subr.mxu0 0.0
    %489 = vmatpush1.xpose.msra.mxu0 %v456
    %490 = vmatprep.subr.mxu0 0.0
    %491 = vmatpush2.xpose.msra.mxu0 0.0
    %492 = vmatprep.subr.mxu0 0.0
    %493 = vmatpush2.xpose.msra.mxu0 0.0
    %494 = vmatprep.subr.mxu0 0.0
    %495 = vmatpush2.xpose.msra.mxu0 0.0
    %496 = vmatprep.subr.mxu0 0.0
    %497 = vmatpush2.xpose.msra.mxu0 0.0
    %498 = vmatprep.subr.mxu0 0.0
    %499 = vmatpush2.xpose.msra.mxu0 0.0
    %500 = vmatprep.subr.mxu0 0.0
    %501 = vmatpush2.xpose.msra.mxu0 0.0
    %502 = vmatprep.subr.mxu0 0.0
    %503 = vmatpush2.xpose.msra.mxu0 0.0
    %504 = vmatprep.subr.mxu0 0.0
    %505 = vmatpush2.xpose.msra.mxu0 0.0
    %506 = vmatprep.subr.mxu0 0.0
    %507 = vmatpush2.xpose.msra.mxu0 0.0
    %508 = vmatprep.subr.mxu0 0.0
    %509 = vmatpush2.xpose.msra.mxu0 0.0
    %510 = vmatprep.subr.mxu0 0.0
    %511 = vmatpush2.xpose.msra.mxu0 0.0
    %512 = vmatprep.subr.mxu0 0.0
    %513 = vmatpush2.xpose.msra.mxu0 0.0
    %514 = vmatprep.subr.mxu0 0.0
    %515 = vmatpush2.xpose.msra.mxu0 0.0
    %516 = vmatprep.subr.mxu0 0.0
    %517 = vmatpush2.xpose.msra.mxu0 0.0
    %518 = vmatprep.subr.mxu0 0.0
    %519 = vmatpush2.xpose.msra.mxu0 0.0
    %520 = vmatprep.subr.mxu0 0.0
    %521 = vmatpush2.xpose.msra.mxu0 0.0
    %522 = vmatprep.mubr.f32.mxu0 0.0
    %523 = vmatmul.mubr.f32.gmra.mxu0 %v453
    %v524 = vpop.f32.mrf.mxu0
    %v525 = vadd.f32 0.0, %v524
    %v526 = vpop.f32.mrf.mxu0
    %527 = vdwg.mxu0
    %v529 = vsel %vm160, %v279, 0
    %v532 = vsel %vm160, %v287, 0
    %534 = vmatprep.subr.mxu0 0.0
    %535 = vmatpush1.xpose.msra.mxu0 0.0
    %536 = vmatprep.subr.mxu0 0.0
    %537 = vmatpush1.xpose.msra.mxu0 0.0
    %538 = vmatprep.subr.mxu0 0.0
    %539 = vmatpush1.xpose.msra.mxu0 0.0
    %540 = vmatprep.subr.mxu0 0.0
    %541 = vmatpush1.xpose.msra.mxu0 0.0
    %542 = vmatprep.subr.mxu0 0.0
    %543 = vmatpush1.xpose.msra.mxu0 0.0
    %544 = vmatprep.subr.mxu0 0.0
    %545 = vmatpush1.xpose.msra.mxu0 0.0
    %546 = vmatprep.subr.mxu0 0.0
    %547 = vmatpush1.xpose.msra.mxu0 0.0
    %548 = vmatprep.subr.mxu0 0.0
    %549 = vmatpush1.xpose.msra.mxu0 0.0
    %550 = vmatprep.subr.mxu0 0.0
    %551 = vmatpush1.xpose.msra.mxu0 0.0
    %552 = vmatprep.subr.mxu0 0.0
    %553 = vmatpush1.xpose.msra.mxu0 0.0
    %554 = vmatprep.subr.mxu0 0.0
    %555 = vmatpush1.xpose.msra.mxu0 0.0
    %556 = vmatprep.subr.mxu0 0.0
    %557 = vmatpush1.xpose.msra.mxu0 0.0
    %558 = vmatprep.subr.mxu0 0.0
    %559 = vmatpush1.xpose.msra.mxu0 0.0
    %560 = vmatprep.subr.mxu0 0.0
    %561 = vmatpush1.xpose.msra.mxu0 0.0
    %562 = vmatprep.subr.mxu0 0.0
    %563 = vmatpush1.xpose.msra.mxu0 0.0
    %564 = vmatprep.subr.mxu0 0.0
    %565 = vmatpush1.xpose.msra.mxu0 %v532
    %566 = vmatprep.subr.mxu0 0.0
    %567 = vmatpush2.xpose.msra.mxu0 0.0
    %568 = vmatprep.subr.mxu0 0.0
    %569 = vmatpush2.xpose.msra.mxu0 0.0
    %570 = vmatprep.subr.mxu0 0.0
    %571 = vmatpush2.xpose.msra.mxu0 0.0
    %572 = vmatprep.subr.mxu0 0.0
    %573 = vmatpush2.xpose.msra.mxu0 0.0
    %574 = vmatprep.subr.mxu0 0.0
    %575 = vmatpush2.xpose.msra.mxu0 0.0
    %576 = vmatprep.subr.mxu0 0.0
    %577 = vmatpush2.xpose.msra.mxu0 0.0
    %578 = vmatprep.subr.mxu0 0.0
    %579 = vmatpush2.xpose.msra.mxu0 0.0
    %580 = vmatprep.subr.mxu0 0.0
    %581 = vmatpush2.xpose.msra.mxu0 0.0
    %582 = vmatprep.subr.mxu0 0.0
    %583 = vmatpush2.xpose.msra.mxu0 0.0
    %584 = vmatprep.subr.mxu0 0.0
    %585 = vmatpush2.xpose.msra.mxu0 0.0
    %586 = vmatprep.subr.mxu0 0.0
    %587 = vmatpush2.xpose.msra.mxu0 0.0
    %588 = vmatprep.subr.mxu0 0.0
    %589 = vmatpush2.xpose.msra.mxu0 0.0
    %590 = vmatprep.subr.mxu0 0.0
    %591 = vmatpush2.xpose.msra.mxu0 0.0
    %592 = vmatprep.subr.mxu0 0.0
    %593 = vmatpush2.xpose.msra.mxu0 0.0
    %594 = vmatprep.subr.mxu0 0.0
    %595 = vmatpush2.xpose.msra.mxu0 0.0
    %596 = vmatprep.subr.mxu0 0.0
    %597 = vmatpush2.xpose.msra.mxu0 0.0
    %598 = vmatprep.mubr.f32.mxu0 0.0
    %599 = vmatmul.mubr.f32.gmra.mxu0 %v529
    %v600 = vpop.f32.mrf.mxu0
    %v601 = vadd.f32 0.0, %v600
    %v602 = vpop.f32.mrf.mxu0
    %603 = vdwg.mxu0
    %v605 = vsel %vm160, %v280, 0
    %v608 = vsel %vm160, %v288, 0
    %610 = vmatprep.subr.mxu0 0.0
    %611 = vmatpush1.xpose.msra.mxu0 0.0
    %612 = vmatprep.subr.mxu0 0.0
    %613 = vmatpush1.xpose.msra.mxu0 0.0
    %614 = vmatprep.subr.mxu0 0.0
    %615 = vmatpush1.xpose.msra.mxu0 0.0
    %616 = vmatprep.subr.mxu0 0.0
    %617 = vmatpush1.xpose.msra.mxu0 0.0
    %618 = vmatprep.subr.mxu0 0.0
    %619 = vmatpush1.xpose.msra.mxu0 0.0
    %620 = vmatprep.subr.mxu0 0.0
    %621 = vmatpush1.xpose.msra.mxu0 0.0
    %622 = vmatprep.subr.mxu0 0.0
    %623 = vmatpush1.xpose.msra.mxu0 0.0
    %624 = vmatprep.subr.mxu0 0.0
    %625 = vmatpush1.xpose.msra.mxu0 0.0
    %626 = vmatprep.subr.mxu0 0.0
    %627 = vmatpush1.xpose.msra.mxu0 0.0
    %628 = vmatprep.subr.mxu0 0.0
    %629 = vmatpush1.xpose.msra.mxu0 0.0
    %630 = vmatprep.subr.mxu0 0.0
    %631 = vmatpush1.xpose.msra.mxu0 0.0
    %632 = vmatprep.subr.mxu0 0.0
    %633 = vmatpush1.xpose.msra.mxu0 0.0
    %634 = vmatprep.subr.mxu0 0.0
    %635 = vmatpush1.xpose.msra.mxu0 0.0
    %636 = vmatprep.subr.mxu0 0.0
    %637 = vmatpush1.xpose.msra.mxu0 0.0
    %638 = vmatprep.subr.mxu0 0.0
    %639 = vmatpush1.xpose.msra.mxu0 0.0
    %640 = vmatprep.subr.mxu0 0.0
    %641 = vmatpush1.xpose.msra.mxu0 %v608
    %642 = vmatprep.subr.mxu0 0.0
    %643 = vmatpush2.xpose.msra.mxu0 0.0
    %644 = vmatprep.subr.mxu0 0.0
    %645 = vmatpush2.xpose.msra.mxu0 0.0
    %646 = vmatprep.subr.mxu0 0.0
    %647 = vmatpush2.xpose.msra.mxu0 0.0
    %648 = vmatprep.subr.mxu0 0.0
    %649 = vmatpush2.xpose.msra.mxu0 0.0
    %650 = vmatprep.subr.mxu0 0.0
    %651 = vmatpush2.xpose.msra.mxu0 0.0
    %652 = vmatprep.subr.mxu0 0.0
    %653 = vmatpush2.xpose.msra.mxu0 0.0
    %654 = vmatprep.subr.mxu0 0.0
    %655 = vmatpush2.xpose.msra.mxu0 0.0
    %656 = vmatprep.subr.mxu0 0.0
    %657 = vmatpush2.xpose.msra.mxu0 0.0
    %658 = vmatprep.subr.mxu0 0.0
    %659 = vmatpush2.xpose.msra.mxu0 0.0
    %660 = vmatprep.subr.mxu0 0.0
    %661 = vmatpush2.xpose.msra.mxu0 0.0
    %662 = vmatprep.subr.mxu0 0.0
    %663 = vmatpush2.xpose.msra.mxu0 0.0
    %664 = vmatprep.subr.mxu0 0.0
    %665 = vmatpush2.xpose.msra.mxu0 0.0
    %666 = vmatprep.subr.mxu0 0.0
    %667 = vmatpush2.xpose.msra.mxu0 0.0
    %668 = vmatprep.subr.mxu0 0.0
    %669 = vmatpush2.xpose.msra.mxu0 0.0
    %670 = vmatprep.subr.mxu0 0.0
    %671 = vmatpush2.xpose.msra.mxu0 0.0
    %672 = vmatprep.subr.mxu0 0.0
    %673 = vmatpush2.xpose.msra.mxu0 0.0
    %674 = vmatprep.mubr.f32.mxu0 0.0
    %675 = vmatmul.mubr.f32.gmra.mxu0 %v605
    %v676 = vpop.f32.mrf.mxu0
    %v677 = vadd.f32 0.0, %v676
    %v678 = vpop.f32.mrf.mxu0
    %679 = vdwg.mxu0
    %v681 = vsel %vm160, %v281, 0
    %v684 = vsel %vm160, %v289, 0
    %686 = vmatprep.subr.mxu0 0.0
    %687 = vmatpush1.xpose.msra.mxu0 0.0
    %688 = vmatprep.subr.mxu0 0.0
    %689 = vmatpush1.xpose.msra.mxu0 0.0
    %690 = vmatprep.subr.mxu0 0.0
    %691 = vmatpush1.xpose.msra.mxu0 0.0
    %692 = vmatprep.subr.mxu0 0.0
    %693 = vmatpush1.xpose.msra.mxu0 0.0
    %694 = vmatprep.subr.mxu0 0.0
    %695 = vmatpush1.xpose.msra.mxu0 0.0
    %696 = vmatprep.subr.mxu0 0.0
    %697 = vmatpush1.xpose.msra.mxu0 0.0
    %698 = vmatprep.subr.mxu0 0.0
    %699 = vmatpush1.xpose.msra.mxu0 0.0
    %700 = vmatprep.subr.mxu0 0.0
    %701 = vmatpush1.xpose.msra.mxu0 0.0
    %702 = vmatprep.subr.mxu0 0.0
    %703 = vmatpush1.xpose.msra.mxu0 0.0
    %704 = vmatprep.subr.mxu0 0.0
    %705 = vmatpush1.xpose.msra.mxu0 0.0
    %706 = vmatprep.subr.mxu0 0.0
    %707 = vmatpush1.xpose.msra.mxu0 0.0
    %708 = vmatprep.subr.mxu0 0.0
    %709 = vmatpush1.xpose.msra.mxu0 0.0
    %710 = vmatprep.subr.mxu0 0.0
    %711 = vmatpush1.xpose.msra.mxu0 0.0
    %712 = vmatprep.subr.mxu0 0.0
    %713 = vmatpush1.xpose.msra.mxu0 0.0
    %714 = vmatprep.subr.mxu0 0.0
    %715 = vmatpush1.xpose.msra.mxu0 0.0
    %716 = vmatprep.subr.mxu0 0.0
    %717 = vmatpush1.xpose.msra.mxu0 %v684
    %718 = vmatprep.subr.mxu0 0.0
    %719 = vmatpush2.xpose.msra.mxu0 0.0
    %720 = vmatprep.subr.mxu0 0.0
    %721 = vmatpush2.xpose.msra.mxu0 0.0
    %722 = vmatprep.subr.mxu0 0.0
    %723 = vmatpush2.xpose.msra.mxu0 0.0
    %724 = vmatprep.subr.mxu0 0.0
    %725 = vmatpush2.xpose.msra.mxu0 0.0
    %726 = vmatprep.subr.mxu0 0.0
    %727 = vmatpush2.xpose.msra.mxu0 0.0
    %728 = vmatprep.subr.mxu0 0.0
    %729 = vmatpush2.xpose.msra.mxu0 0.0
    %730 = vmatprep.subr.mxu0 0.0
    %731 = vmatpush2.xpose.msra.mxu0 0.0
    %732 = vmatprep.subr.mxu0 0.0
    %733 = vmatpush2.xpose.msra.mxu0 0.0
    %734 = vmatprep.subr.mxu0 0.0
    %735 = vmatpush2.xpose.msra.mxu0 0.0
    %736 = vmatprep.subr.mxu0 0.0
    %737 = vmatpush2.xpose.msra.mxu0 0.0
    %738 = vmatprep.subr.mxu0 0.0
    %739 = vmatpush2.xpose.msra.mxu0 0.0
    %740 = vmatprep.subr.mxu0 0.0
    %741 = vmatpush2.xpose.msra.mxu0 0.0
    %742 = vmatprep.subr.mxu0 0.0
    %743 = vmatpush2.xpose.msra.mxu0 0.0
    %744 = vmatprep.subr.mxu0 0.0
    %745 = vmatpush2.xpose.msra.mxu0 0.0
    %746 = vmatprep.subr.mxu0 0.0
    %747 = vmatpush2.xpose.msra.mxu0 0.0
    %748 = vmatprep.subr.mxu0 0.0
    %749 = vmatpush2.xpose.msra.mxu0 0.0
    %750 = vmatprep.mubr.f32.mxu0 0.0
    %751 = vmatmul.mubr.f32.gmra.mxu0 %v681
    %v752 = vpop.f32.mrf.mxu0
    %v753 = vadd.f32 0.0, %v752
    %v754 = vpop.f32.mrf.mxu0
    %755 = vdwg.mxu0
    %v757 = vsel %vm160, %v282, 0
    %v760 = vsel %vm160, %v290, 0
    %762 = vmatprep.subr.mxu0 0.0
    %763 = vmatpush1.xpose.msra.mxu0 0.0
    %764 = vmatprep.subr.mxu0 0.0
    %765 = vmatpush1.xpose.msra.mxu0 0.0
    %766 = vmatprep.subr.mxu0 0.0
    %767 = vmatpush1.xpose.msra.mxu0 0.0
    %768 = vmatprep.subr.mxu0 0.0
    %769 = vmatpush1.xpose.msra.mxu0 0.0
    %770 = vmatprep.subr.mxu0 0.0
    %771 = vmatpush1.xpose.msra.mxu0 0.0
    %772 = vmatprep.subr.mxu0 0.0
    %773 = vmatpush1.xpose.msra.mxu0 0.0
    %774 = vmatprep.subr.mxu0 0.0
    %775 = vmatpush1.xpose.msra.mxu0 0.0
    %776 = vmatprep.subr.mxu0 0.0
    %777 = vmatpush1.xpose.msra.mxu0 0.0
    %778 = vmatprep.subr.mxu0 0.0
    %779 = vmatpush1.xpose.msra.mxu0 0.0
    %780 = vmatprep.subr.mxu0 0.0
    %781 = vmatpush1.xpose.msra.mxu0 0.0
    %782 = vmatprep.subr.mxu0 0.0
    %783 = vmatpush1.xpose.msra.mxu0 0.0
    %784 = vmatprep.subr.mxu0 0.0
    %785 = vmatpush1.xpose.msra.mxu0 0.0
    %786 = vmatprep.subr.mxu0 0.0
    %787 = vmatpush1.xpose.msra.mxu0 0.0
    %788 = vmatprep.subr.mxu0 0.0
    %789 = vmatpush1.xpose.msra.mxu0 0.0
    %790 = vmatprep.subr.mxu0 0.0
    %791 = vmatpush1.xpose.msra.mxu0 0.0
    %792 = vmatprep.subr.mxu0 0.0
    %793 = vmatpush1.xpose.msra.mxu0 %v760
    %794 = vmatprep.subr.mxu0 0.0
    %795 = vmatpush2.xpose.msra.mxu0 0.0
    %796 = vmatprep.subr.mxu0 0.0
    %797 = vmatpush2.xpose.msra.mxu0 0.0
    %798 = vmatprep.subr.mxu0 0.0
    %799 = vmatpush2.xpose.msra.mxu0 0.0
    %800 = vmatprep.subr.mxu0 0.0
    %801 = vmatpush2.xpose.msra.mxu0 0.0
    %802 = vmatprep.subr.mxu0 0.0
    %803 = vmatpush2.xpose.msra.mxu0 0.0
    %804 = vmatprep.subr.mxu0 0.0
    %805 = vmatpush2.xpose.msra.mxu0 0.0
    %806 = vmatprep.subr.mxu0 0.0
    %807 = vmatpush2.xpose.msra.mxu0 0.0
    %808 = vmatprep.subr.mxu0 0.0
    %809 = vmatpush2.xpose.msra.mxu0 0.0
    %810 = vmatprep.subr.mxu0 0.0
    %811 = vmatpush2.xpose.msra.mxu0 0.0
    %812 = vmatprep.subr.mxu0 0.0
    %813 = vmatpush2.xpose.msra.mxu0 0.0
    %814 = vmatprep.subr.mxu0 0.0
    %815 = vmatpush2.xpose.msra.mxu0 0.0
    %816 = vmatprep.subr.mxu0 0.0
    %817 = vmatpush2.xpose.msra.mxu0 0.0
    %818 = vmatprep.subr.mxu0 0.0
    %819 = vmatpush2.xpose.msra.mxu0 0.0
    %820 = vmatprep.subr.mxu0 0.0
    %821 = vmatpush2.xpose.msra.mxu0 0.0
    %822 = vmatprep.subr.mxu0 0.0
    %823 = vmatpush2.xpose.msra.mxu0 0.0
    %824 = vmatprep.subr.mxu0 0.0
    %825 = vmatpush2.xpose.msra.mxu0 0.0
    %826 = vmatprep.mubr.f32.mxu0 0.0
    %827 = vmatmul.mubr.f32.gmra.mxu0 %v757
    %v828 = vpop.f32.mrf.mxu0
    %v829 = vadd.f32 0.0, %v828
    %v830 = vpop.f32.mrf.mxu0
    %831 = vdwg.mxu0
    %v833 = vsel %vm160, %v283, 0
    %v836 = vsel %vm160, %v291, 0
    %838 = vmatprep.subr.mxu0 0.0
    %839 = vmatpush1.xpose.msra.mxu0 0.0
    %840 = vmatprep.subr.mxu0 0.0
    %841 = vmatpush1.xpose.msra.mxu0 0.0
    %842 = vmatprep.subr.mxu0 0.0
    %843 = vmatpush1.xpose.msra.mxu0 0.0
    %844 = vmatprep.subr.mxu0 0.0
    %845 = vmatpush1.xpose.msra.mxu0 0.0
    %846 = vmatprep.subr.mxu0 0.0
    %847 = vmatpush1.xpose.msra.mxu0 0.0
    %848 = vmatprep.subr.mxu0 0.0
    %849 = vmatpush1.xpose.msra.mxu0 0.0
    %850 = vmatprep.subr.mxu0 0.0
    %851 = vmatpush1.xpose.msra.mxu0 0.0
    %852 = vmatprep.subr.mxu0 0.0
    %853 = vmatpush1.xpose.msra.mxu0 0.0
    %854 = vmatprep.subr.mxu0 0.0
    %855 = vmatpush1.xpose.msra.mxu0 0.0
    %856 = vmatprep.subr.mxu0 0.0
    %857 = vmatpush1.xpose.msra.mxu0 0.0
    %858 = vmatprep.subr.mxu0 0.0
    %859 = vmatpush1.xpose.msra.mxu0 0.0
    %860 = vmatprep.subr.mxu0 0.0
    %861 = vmatpush1.xpose.msra.mxu0 0.0
    %862 = vmatprep.subr.mxu0 0.0
    %863 = vmatpush1.xpose.msra.mxu0 0.0
    %864 = vmatprep.subr.mxu0 0.0
    %865 = vmatpush1.xpose.msra.mxu0 0.0
    %866 = vmatprep.subr.mxu0 0.0
    %867 = vmatpush1.xpose.msra.mxu0 0.0
    %868 = vmatprep.subr.mxu0 0.0
    %869 = vmatpush1.xpose.msra.mxu0 %v836
    %870 = vmatprep.subr.mxu0 0.0
    %871 = vmatpush2.xpose.msra.mxu0 0.0
    %872 = vmatprep.subr.mxu0 0.0
    %873 = vmatpush2.xpose.msra.mxu0 0.0
    %874 = vmatprep.subr.mxu0 0.0
    %875 = vmatpush2.xpose.msra.mxu0 0.0
    %876 = vmatprep.subr.mxu0 0.0
    %877 = vmatpush2.xpose.msra.mxu0 0.0
    %878 = vmatprep.subr.mxu0 0.0
    %879 = vmatpush2.xpose.msra.mxu0 0.0
    %880 = vmatprep.subr.mxu0 0.0
    %881 = vmatpush2.xpose.msra.mxu0 0.0
    %882 = vmatprep.subr.mxu0 0.0
    %883 = vmatpush2.xpose.msra.mxu0 0.0
    %884 = vmatprep.subr.mxu0 0.0
    %885 = vmatpush2.xpose.msra.mxu0 0.0
    %886 = vmatprep.subr.mxu0 0.0
    %887 = vmatpush2.xpose.msra.mxu0 0.0
    %888 = vmatprep.subr.mxu0 0.0
    %889 = vmatpush2.xpose.msra.mxu0 0.0
    %890 = vmatprep.subr.mxu0 0.0
    %891 = vmatpush2.xpose.msra.mxu0 0.0
    %892 = vmatprep.subr.mxu0 0.0
    %893 = vmatpush2.xpose.msra.mxu0 0.0
    %894 = vmatprep.subr.mxu0 0.0
    %895 = vmatpush2.xpose.msra.mxu0 0.0
    %896 = vmatprep.subr.mxu0 0.0
    %897 = vmatpush2.xpose.msra.mxu0 0.0
    %898 = vmatprep.subr.mxu0 0.0
    %899 = vmatpush2.xpose.msra.mxu0 0.0
    %900 = vmatprep.subr.mxu0 0.0
    %901 = vmatpush2.xpose.msra.mxu0 0.0
    %902 = vmatprep.mubr.f32.mxu0 0.0
    %903 = vmatmul.mubr.f32.gmra.mxu0 %v833
    %v904 = vpop.f32.mrf.mxu0
    %v905 = vadd.f32 0.0, %v904
    %v906 = vpop.f32.mrf.mxu0
    %907 = vdwg.mxu0
    %v908 = vsel %vm160, %v373, -inf
    %909 = vmax.xlane.f32.xlu0 %v908
    %v910 = vpop.xlane.xlu0 %909
    %v911 = vsel %vm160, %v449, -inf
    %912 = vmax.xlane.f32.xlu0 %v911
    %v913 = vpop.xlane.xlu0 %912
    %v914 = vsel %vm160, %v525, -inf
    %915 = vmax.xlane.f32.xlu0 %v914
    %v916 = vpop.xlane.xlu0 %915
    %v917 = vsel %vm160, %v601, -inf
    %918 = vmax.xlane.f32.xlu0 %v917
    %v919 = vpop.xlane.xlu0 %918
    %v920 = vsel %vm160, %v677, -inf
    %921 = vmax.xlane.f32.xlu0 %v920
    %v922 = vpop.xlane.xlu0 %921
    %v923 = vsel %vm160, %v753, -inf
    %924 = vmax.xlane.f32.xlu0 %v923
    %v925 = vpop.xlane.xlu0 %924
    %v926 = vsel %vm160, %v829, -inf
    %927 = vmax.xlane.f32.xlu0 %v926
    %v928 = vpop.xlane.xlu0 %927
    %v929 = vsel %vm160, %v905, -inf
    %930 = vmax.xlane.f32.xlu0 %v929
    %v931 = vpop.xlane.xlu0 %930
    %v932 = vsub.f32 %v373, %v910
    %v933 = vsub.f32 %v449, %v913
    %v934 = vsub.f32 %v525, %v916
    %v935 = vsub.f32 %v601, %v919
    %v936 = vsub.f32 %v677, %v922
    %v937 = vsub.f32 %v753, %v925
    %v938 = vsub.f32 %v829, %v928
    %v939 = vsub.f32 %v905, %v931
    %v940 = vmul.f32 %v932, 1.442695
    %v941 = vpow.pop %v940
    %v942 = vmul.f32 %v933, 1.442695
    %v943 = vpow.pop %v942
    %v944 = vmul.f32 %v934, 1.442695
    %v945 = vpow.pop %v944
    %v946 = vmul.f32 %v935, 1.442695
    %v947 = vpow.pop %v946
    %v948 = vmul.f32 %v936, 1.442695
    %v949 = vpow.pop %v948
    %v950 = vmul.f32 %v937, 1.442695
    %v951 = vpow.pop %v950
    %v952 = vmul.f32 %v938, 1.442695
    %v953 = vpow.pop %v952
    %v954 = vmul.f32 %v939, 1.442695
    %v955 = vpow.pop %v954
    %v956 = vsel %vm160, %v941, 0.0
    %957 = vadd.xlane.f32.xlu0 %v956
    %v958 = vpop.xlane.xlu0 %957
    %v959 = vsel %vm160, %v943, 0.0
    %960 = vadd.xlane.f32.xlu0 %v959
    %v961 = vpop.xlane.xlu0 %960
    %v962 = vsel %vm160, %v945, 0.0
    %963 = vadd.xlane.f32.xlu0 %v962
    %v964 = vpop.xlane.xlu0 %963
    %v965 = vsel %vm160, %v947, 0.0
    %966 = vadd.xlane.f32.xlu0 %v965
    %v967 = vpop.xlane.xlu0 %966
    %v968 = vsel %vm160, %v949, 0.0
    %969 = vadd.xlane.f32.xlu0 %v968
    %v970 = vpop.xlane.xlu0 %969
    %v971 = vsel %vm160, %v951, 0.0
    %972 = vadd.xlane.f32.xlu0 %v971
    %v973 = vpop.xlane.xlu0 %972
    %v974 = vsel %vm160, %v953, 0.0
    %975 = vadd.xlane.f32.xlu0 %v974
    %v976 = vpop.xlane.xlu0 %975
    %v977 = vsel %vm160, %v955, 0.0
    %978 = vadd.xlane.f32.xlu0 %v977
    %v979 = vpop.xlane.xlu0 %978
    %v980 = vrcp.pop %v958
    %v981 = vrcp.pop %v961
    %v982 = vrcp.pop %v964
    %v983 = vrcp.pop %v967
    %v984 = vrcp.pop %v970
    %v985 = vrcp.pop %v973
    %v986 = vrcp.pop %v976
    %v987 = vrcp.pop %v979
    %v988 = vmul.f32 %v941, %v980
    %v989 = vmul.f32 %v943, %v981
    %v990 = vmul.f32 %v945, %v982
    %v991 = vmul.f32 %v947, %v983
    %v992 = vmul.f32 %v949, %v984
    %v993 = vmul.f32 %v951, %v985
    %v994 = vmul.f32 %v953, %v986
    %v995 = vmul.f32 %v955, %v987
    %996 = vst.msk [vmem:[#allocation11] sm:$0xff] %vm160, %v988
    %997 = vst.msk [vmem:[#allocation11 + $0x8] sm:$0xff] %vm160, %v989
    %998 = vst.msk [vmem:[#allocation11 + $0x10] sm:$0xff] %vm160, %v990
    %999 = vst.msk [vmem:[#allocation11 + $0x18] sm:$0xff] %vm160, %v991
    %1000 = vst.msk [vmem:[#allocation11 + $0x20] sm:$0xff] %vm160, %v992
    %1001 = vst.msk [vmem:[#allocation11 + $0x28] sm:$0xff] %vm160, %v993
    %1002 = vst.msk [vmem:[#allocation11 + $0x30] sm:$0xff] %vm160, %v994
    %1003 = vst.msk [vmem:[#allocation11 + $0x38] sm:$0xff] %vm160, %v995
    %v1005 = vsel %vm160, %v988, 0
    %1007 = vmatprep.subr.mxu0 0.0
    %1008 = vmatpush1.msra.mxu0 0.0
    %1009 = vmatprep.subr.mxu0 0.0
    %1010 = vmatpush1.msra.mxu0 0.0
    %1011 = vmatprep.subr.mxu0 0.0
    %1012 = vmatpush1.msra.mxu0 0.0
    %1013 = vmatprep.subr.mxu0 0.0
    %1014 = vmatpush1.msra.mxu0 0.0
    %1015 = vmatprep.subr.mxu0 0.0
    %1016 = vmatpush1.msra.mxu0 0.0
    %1017 = vmatprep.subr.mxu0 0.0
    %1018 = vmatpush1.msra.mxu0 0.0
    %1019 = vmatprep.subr.mxu0 0.0
    %1020 = vmatpush1.msra.mxu0 0.0
    %1021 = vmatprep.subr.mxu0 0.0
    %1022 = vmatpush1.msra.mxu0 0.0
    %1023 = vmatprep.subr.mxu0 0.0
    %1024 = vmatpush1.msra.mxu0 0.0
    %1025 = vmatprep.subr.mxu0 0.0
    %1026 = vmatpush1.msra.mxu0 0.0
    %1027 = vmatprep.subr.mxu0 0.0
    %1028 = vmatpush1.msra.mxu0 0.0
    %1029 = vmatprep.subr.mxu0 0.0
    %1030 = vmatpush1.msra.mxu0 0.0
    %1031 = vmatprep.subr.mxu0 0.0
    %1032 = vmatpush1.msra.mxu0 0.0
    %1033 = vmatprep.subr.mxu0 0.0
    %1034 = vmatpush1.msra.mxu0 0.0
    %1035 = vmatprep.subr.mxu0 0.0
    %1036 = vmatpush1.msra.mxu0 0.0
    %1037 = vmatprep.subr.mxu0 0.0
    %1038 = vmatpush1.msra.mxu0 %v292
    %1039 = vmatprep.subr.mxu0 0.0
    %1040 = vmatpush2.msra.mxu0 0.0
    %1041 = vmatprep.subr.mxu0 0.0
    %1042 = vmatpush2.msra.mxu0 0.0
    %1043 = vmatprep.subr.mxu0 0.0
    %1044 = vmatpush2.msra.mxu0 0.0
    %1045 = vmatprep.subr.mxu0 0.0
    %1046 = vmatpush2.msra.mxu0 0.0
    %1047 = vmatprep.subr.mxu0 0.0
    %1048 = vmatpush2.msra.mxu0 0.0
    %1049 = vmatprep.subr.mxu0 0.0
    %1050 = vmatpush2.msra.mxu0 0.0
    %1051 = vmatprep.subr.mxu0 0.0
    %1052 = vmatpush2.msra.mxu0 0.0
    %1053 = vmatprep.subr.mxu0 0.0
    %1054 = vmatpush2.msra.mxu0 0.0
    %1055 = vmatprep.subr.mxu0 0.0
    %1056 = vmatpush2.msra.mxu0 0.0
    %1057 = vmatprep.subr.mxu0 0.0
    %1058 = vmatpush2.msra.mxu0 0.0
    %1059 = vmatprep.subr.mxu0 0.0
    %1060 = vmatpush2.msra.mxu0 0.0
    %1061 = vmatprep.subr.mxu0 0.0
    %1062 = vmatpush2.msra.mxu0 0.0
    %1063 = vmatprep.subr.mxu0 0.0
    %1064 = vmatpush2.msra.mxu0 0.0
    %1065 = vmatprep.subr.mxu0 0.0
    %1066 = vmatpush2.msra.mxu0 0.0
    %1067 = vmatprep.subr.mxu0 0.0
    %1068 = vmatpush2.msra.mxu0 0.0
    %1069 = vmatprep.subr.mxu0 0.0
    %1070 = vmatpush2.msra.mxu0 0.0
    %1071 = vmatprep.mubr.f32.mxu0 0.0
    %1072 = vmatmul.mubr.f32.gmra.mxu0 %v1005
    %v1073 = vpop.f32.mrf.mxu0
    %v1074 = vadd.f32 0.0, %v1073
    %v1075 = vpop.f32.mrf.mxu0
    %1076 = vdwg.mxu0
    %v1078 = vsel %vm160, %v989, 0
    %1080 = vmatprep.subr.mxu0 0.0
    %1081 = vmatpush1.msra.mxu0 0.0
    %1082 = vmatprep.subr.mxu0 0.0
    %1083 = vmatpush1.msra.mxu0 0.0
    %1084 = vmatprep.subr.mxu0 0.0
    %1085 = vmatpush1.msra.mxu0 0.0
    %1086 = vmatprep.subr.mxu0 0.0
    %1087 = vmatpush1.msra.mxu0 0.0
    %1088 = vmatprep.subr.mxu0 0.0
    %1089 = vmatpush1.msra.mxu0 0.0
    %1090 = vmatprep.subr.mxu0 0.0
    %1091 = vmatpush1.msra.mxu0 0.0
    %1092 = vmatprep.subr.mxu0 0.0
    %1093 = vmatpush1.msra.mxu0 0.0
    %1094 = vmatprep.subr.mxu0 0.0
    %1095 = vmatpush1.msra.mxu0 0.0
    %1096 = vmatprep.subr.mxu0 0.0
    %1097 = vmatpush1.msra.mxu0 0.0
    %1098 = vmatprep.subr.mxu0 0.0
    %1099 = vmatpush1.msra.mxu0 0.0
    %1100 = vmatprep.subr.mxu0 0.0
    %1101 = vmatpush1.msra.mxu0 0.0
    %1102 = vmatprep.subr.mxu0 0.0
    %1103 = vmatpush1.msra.mxu0 0.0
    %1104 = vmatprep.subr.mxu0 0.0
    %1105 = vmatpush1.msra.mxu0 0.0
    %1106 = vmatprep.subr.mxu0 0.0
    %1107 = vmatpush1.msra.mxu0 0.0
    %1108 = vmatprep.subr.mxu0 0.0
    %1109 = vmatpush1.msra.mxu0 0.0
    %1110 = vmatprep.subr.mxu0 0.0
    %1111 = vmatpush1.msra.mxu0 %v293
    %1112 = vmatprep.subr.mxu0 0.0
    %1113 = vmatpush2.msra.mxu0 0.0
    %1114 = vmatprep.subr.mxu0 0.0
    %1115 = vmatpush2.msra.mxu0 0.0
    %1116 = vmatprep.subr.mxu0 0.0
    %1117 = vmatpush2.msra.mxu0 0.0
    %1118 = vmatprep.subr.mxu0 0.0
    %1119 = vmatpush2.msra.mxu0 0.0
    %1120 = vmatprep.subr.mxu0 0.0
    %1121 = vmatpush2.msra.mxu0 0.0
    %1122 = vmatprep.subr.mxu0 0.0
    %1123 = vmatpush2.msra.mxu0 0.0
    %1124 = vmatprep.subr.mxu0 0.0
    %1125 = vmatpush2.msra.mxu0 0.0
    %1126 = vmatprep.subr.mxu0 0.0
    %1127 = vmatpush2.msra.mxu0 0.0
    %1128 = vmatprep.subr.mxu0 0.0
    %1129 = vmatpush2.msra.mxu0 0.0
    %1130 = vmatprep.subr.mxu0 0.0
    %1131 = vmatpush2.msra.mxu0 0.0
    %1132 = vmatprep.subr.mxu0 0.0
    %1133 = vmatpush2.msra.mxu0 0.0
    %1134 = vmatprep.subr.mxu0 0.0
    %1135 = vmatpush2.msra.mxu0 0.0
    %1136 = vmatprep.subr.mxu0 0.0
    %1137 = vmatpush2.msra.mxu0 0.0
    %1138 = vmatprep.subr.mxu0 0.0
    %1139 = vmatpush2.msra.mxu0 0.0
    %1140 = vmatprep.subr.mxu0 0.0
    %1141 = vmatpush2.msra.mxu0 0.0
    %1142 = vmatprep.subr.mxu0 0.0
    %1143 = vmatpush2.msra.mxu0 0.0
    %1144 = vmatprep.mubr.f32.mxu0 0.0
    %1145 = vmatmul.mubr.f32.gmra.mxu0 %v1078
    %v1146 = vpop.f32.mrf.mxu0
    %v1147 = vadd.f32 0.0, %v1146
    %v1148 = vpop.f32.mrf.mxu0
    %1149 = vdwg.mxu0
    %v1151 = vsel %vm160, %v990, 0
    %1153 = vmatprep.subr.mxu0 0.0
    %1154 = vmatpush1.msra.mxu0 0.0
    %1155 = vmatprep.subr.mxu0 0.0
    %1156 = vmatpush1.msra.mxu0 0.0
    %1157 = vmatprep.subr.mxu0 0.0
    %1158 = vmatpush1.msra.mxu0 0.0
    %1159 = vmatprep.subr.mxu0 0.0
    %1160 = vmatpush1.msra.mxu0 0.0
    %1161 = vmatprep.subr.mxu0 0.0
    %1162 = vmatpush1.msra.mxu0 0.0
    %1163 = vmatprep.subr.mxu0 0.0
    %1164 = vmatpush1.msra.mxu0 0.0
    %1165 = vmatprep.subr.mxu0 0.0
    %1166 = vmatpush1.msra.mxu0 0.0
    %1167 = vmatprep.subr.mxu0 0.0
    %1168 = vmatpush1.msra.mxu0 0.0
    %1169 = vmatprep.subr.mxu0 0.0
    %1170 = vmatpush1.msra.mxu0 0.0
    %1171 = vmatprep.subr.mxu0 0.0
    %1172 = vmatpush1.msra.mxu0 0.0
    %1173 = vmatprep.subr.mxu0 0.0
    %1174 = vmatpush1.msra.mxu0 0.0
    %1175 = vmatprep.subr.mxu0 0.0
    %1176 = vmatpush1.msra.mxu0 0.0
    %1177 = vmatprep.subr.mxu0 0.0
    %1178 = vmatpush1.msra.mxu0 0.0
    %1179 = vmatprep.subr.mxu0 0.0
    %1180 = vmatpush1.msra.mxu0 0.0
    %1181 = vmatprep.subr.mxu0 0.0
    %1182 = vmatpush1.msra.mxu0 0.0
    %1183 = vmatprep.subr.mxu0 0.0
    %1184 = vmatpush1.msra.mxu0 %v294
    %1185 = vmatprep.subr.mxu0 0.0
    %1186 = vmatpush2.msra.mxu0 0.0
    %1187 = vmatprep.subr.mxu0 0.0
    %1188 = vmatpush2.msra.mxu0 0.0
    %1189 = vmatprep.subr.mxu0 0.0
    %1190 = vmatpush2.msra.mxu0 0.0
    %1191 = vmatprep.subr.mxu0 0.0
    %1192 = vmatpush2.msra.mxu0 0.0
    %1193 = vmatprep.subr.mxu0 0.0
    %1194 = vmatpush2.msra.mxu0 0.0
    %1195 = vmatprep.subr.mxu0 0.0
    %1196 = vmatpush2.msra.mxu0 0.0
    %1197 = vmatprep.subr.mxu0 0.0
    %1198 = vmatpush2.msra.mxu0 0.0
    %1199 = vmatprep.subr.mxu0 0.0
    %1200 = vmatpush2.msra.mxu0 0.0
    %1201 = vmatprep.subr.mxu0 0.0
    %1202 = vmatpush2.msra.mxu0 0.0
    %1203 = vmatprep.subr.mxu0 0.0
    %1204 = vmatpush2.msra.mxu0 0.0
    %1205 = vmatprep.subr.mxu0 0.0
    %1206 = vmatpush2.msra.mxu0 0.0
    %1207 = vmatprep.subr.mxu0 0.0
    %1208 = vmatpush2.msra.mxu0 0.0
    %1209 = vmatprep.subr.mxu0 0.0
    %1210 = vmatpush2.msra.mxu0 0.0
    %1211 = vmatprep.subr.mxu0 0.0
    %1212 = vmatpush2.msra.mxu0 0.0
    %1213 = vmatprep.subr.mxu0 0.0
    %1214 = vmatpush2.msra.mxu0 0.0
    %1215 = vmatprep.subr.mxu0 0.0
    %1216 = vmatpush2.msra.mxu0 0.0
    %1217 = vmatprep.mubr.f32.mxu0 0.0
    %1218 = vmatmul.mubr.f32.gmra.mxu0 %v1151
    %v1219 = vpop.f32.mrf.mxu0
    %v1220 = vadd.f32 0.0, %v1219
    %v1221 = vpop.f32.mrf.mxu0
    %1222 = vdwg.mxu0
    %v1224 = vsel %vm160, %v991, 0
    %1226 = vmatprep.subr.mxu0 0.0
    %1227 = vmatpush1.msra.mxu0 0.0
    %1228 = vmatprep.subr.mxu0 0.0
    %1229 = vmatpush1.msra.mxu0 0.0
    %1230 = vmatprep.subr.mxu0 0.0
    %1231 = vmatpush1.msra.mxu0 0.0
    %1232 = vmatprep.subr.mxu0 0.0
    %1233 = vmatpush1.msra.mxu0 0.0
    %1234 = vmatprep.subr.mxu0 0.0
    %1235 = vmatpush1.msra.mxu0 0.0
    %1236 = vmatprep.subr.mxu0 0.0
    %1237 = vmatpush1.msra.mxu0 0.0
    %1238 = vmatprep.subr.mxu0 0.0
    %1239 = vmatpush1.msra.mxu0 0.0
    %1240 = vmatprep.subr.mxu0 0.0
    %1241 = vmatpush1.msra.mxu0 0.0
    %1242 = vmatprep.subr.mxu0 0.0
    %1243 = vmatpush1.msra.mxu0 0.0
    %1244 = vmatprep.subr.mxu0 0.0
    %1245 = vmatpush1.msra.mxu0 0.0
    %1246 = vmatprep.subr.mxu0 0.0
    %1247 = vmatpush1.msra.mxu0 0.0
    %1248 = vmatprep.subr.mxu0 0.0
    %1249 = vmatpush1.msra.mxu0 0.0
    %1250 = vmatprep.subr.mxu0 0.0
    %1251 = vmatpush1.msra.mxu0 0.0
    %1252 = vmatprep.subr.mxu0 0.0
    %1253 = vmatpush1.msra.mxu0 0.0
    %1254 = vmatprep.subr.mxu0 0.0
    %1255 = vmatpush1.msra.mxu0 0.0
    %1256 = vmatprep.subr.mxu0 0.0
    %1257 = vmatpush1.msra.mxu0 %v295
    %1258 = vmatprep.subr.mxu0 0.0
    %1259 = vmatpush2.msra.mxu0 0.0
    %1260 = vmatprep.subr.mxu0 0.0
    %1261 = vmatpush2.msra.mxu0 0.0
    %1262 = vmatprep.subr.mxu0 0.0
    %1263 = vmatpush2.msra.mxu0 0.0
    %1264 = vmatprep.subr.mxu0 0.0
    %1265 = vmatpush2.msra.mxu0 0.0
    %1266 = vmatprep.subr.mxu0 0.0
    %1267 = vmatpush2.msra.mxu0 0.0
    %1268 = vmatprep.subr.mxu0 0.0
    %1269 = vmatpush2.msra.mxu0 0.0
    %1270 = vmatprep.subr.mxu0 0.0
    %1271 = vmatpush2.msra.mxu0 0.0
    %1272 = vmatprep.subr.mxu0 0.0
    %1273 = vmatpush2.msra.mxu0 0.0
    %1274 = vmatprep.subr.mxu0 0.0
    %1275 = vmatpush2.msra.mxu0 0.0
    %1276 = vmatprep.subr.mxu0 0.0
    %1277 = vmatpush2.msra.mxu0 0.0
    %1278 = vmatprep.subr.mxu0 0.0
    %1279 = vmatpush2.msra.mxu0 0.0
    %1280 = vmatprep.subr.mxu0 0.0
    %1281 = vmatpush2.msra.mxu0 0.0
    %1282 = vmatprep.subr.mxu0 0.0
    %1283 = vmatpush2.msra.mxu0 0.0
    %1284 = vmatprep.subr.mxu0 0.0
    %1285 = vmatpush2.msra.mxu0 0.0
    %1286 = vmatprep.subr.mxu0 0.0
    %1287 = vmatpush2.msra.mxu0 0.0
    %1288 = vmatprep.subr.mxu0 0.0
    %1289 = vmatpush2.msra.mxu0 0.0
    %1290 = vmatprep.mubr.f32.mxu0 0.0
    %1291 = vmatmul.mubr.f32.gmra.mxu0 %v1224
    %v1292 = vpop.f32.mrf.mxu0
    %v1293 = vadd.f32 0.0, %v1292
    %v1294 = vpop.f32.mrf.mxu0
    %1295 = vdwg.mxu0
    %v1297 = vsel %vm160, %v992, 0
    %1299 = vmatprep.subr.mxu0 0.0
    %1300 = vmatpush1.msra.mxu0 0.0
    %1301 = vmatprep.subr.mxu0 0.0
    %1302 = vmatpush1.msra.mxu0 0.0
    %1303 = vmatprep.subr.mxu0 0.0
    %1304 = vmatpush1.msra.mxu0 0.0
    %1305 = vmatprep.subr.mxu0 0.0
    %1306 = vmatpush1.msra.mxu0 0.0
    %1307 = vmatprep.subr.mxu0 0.0
    %1308 = vmatpush1.msra.mxu0 0.0
    %1309 = vmatprep.subr.mxu0 0.0
    %1310 = vmatpush1.msra.mxu0 0.0
    %1311 = vmatprep.subr.mxu0 0.0
    %1312 = vmatpush1.msra.mxu0 0.0
    %1313 = vmatprep.subr.mxu0 0.0
    %1314 = vmatpush1.msra.mxu0 0.0
    %1315 = vmatprep.subr.mxu0 0.0
    %1316 = vmatpush1.msra.mxu0 0.0
    %1317 = vmatprep.subr.mxu0 0.0
    %1318 = vmatpush1.msra.mxu0 0.0
    %1319 = vmatprep.subr.mxu0 0.0
    %1320 = vmatpush1.msra.mxu0 0.0
    %1321 = vmatprep.subr.mxu0 0.0
    %1322 = vmatpush1.msra.mxu0 0.0
    %1323 = vmatprep.subr.mxu0 0.0
    %1324 = vmatpush1.msra.mxu0 0.0
    %1325 = vmatprep.subr.mxu0 0.0
    %1326 = vmatpush1.msra.mxu0 0.0
    %1327 = vmatprep.subr.mxu0 0.0
    %1328 = vmatpush1.msra.mxu0 0.0
    %1329 = vmatprep.subr.mxu0 0.0
    %1330 = vmatpush1.msra.mxu0 %v296
    %1331 = vmatprep.subr.mxu0 0.0
    %1332 = vmatpush2.msra.mxu0 0.0
    %1333 = vmatprep.subr.mxu0 0.0
    %1334 = vmatpush2.msra.mxu0 0.0
    %1335 = vmatprep.subr.mxu0 0.0
    %1336 = vmatpush2.msra.mxu0 0.0
    %1337 = vmatprep.subr.mxu0 0.0
    %1338 = vmatpush2.msra.mxu0 0.0
    %1339 = vmatprep.subr.mxu0 0.0
    %1340 = vmatpush2.msra.mxu0 0.0
    %1341 = vmatprep.subr.mxu0 0.0
    %1342 = vmatpush2.msra.mxu0 0.0
    %1343 = vmatprep.subr.mxu0 0.0
    %1344 = vmatpush2.msra.mxu0 0.0
    %1345 = vmatprep.subr.mxu0 0.0
    %1346 = vmatpush2.msra.mxu0 0.0
    %1347 = vmatprep.subr.mxu0 0.0
    %1348 = vmatpush2.msra.mxu0 0.0
    %1349 = vmatprep.subr.mxu0 0.0
    %1350 = vmatpush2.msra.mxu0 0.0
    %1351 = vmatprep.subr.mxu0 0.0
    %1352 = vmatpush2.msra.mxu0 0.0
    %1353 = vmatprep.subr.mxu0 0.0
    %1354 = vmatpush2.msra.mxu0 0.0
    %1355 = vmatprep.subr.mxu0 0.0
    %1356 = vmatpush2.msra.mxu0 0.0
    %1357 = vmatprep.subr.mxu0 0.0
    %1358 = vmatpush2.msra.mxu0 0.0
    %1359 = vmatprep.subr.mxu0 0.0
    %1360 = vmatpush2.msra.mxu0 0.0
    %1361 = vmatprep.subr.mxu0 0.0
    %1362 = vmatpush2.msra.mxu0 0.0
    %1363 = vmatprep.mubr.f32.mxu0 0.0
    %1364 = vmatmul.mubr.f32.gmra.mxu0 %v1297
    %v1365 = vpop.f32.mrf.mxu0
    %v1366 = vadd.f32 0.0, %v1365
    %v1367 = vpop.f32.mrf.mxu0
    %1368 = vdwg.mxu0
    %v1370 = vsel %vm160, %v993, 0
    %1372 = vmatprep.subr.mxu0 0.0
    %1373 = vmatpush1.msra.mxu0 0.0
    %1374 = vmatprep.subr.mxu0 0.0
    %1375 = vmatpush1.msra.mxu0 0.0
    %1376 = vmatprep.subr.mxu0 0.0
    %1377 = vmatpush1.msra.mxu0 0.0
    %1378 = vmatprep.subr.mxu0 0.0
    %1379 = vmatpush1.msra.mxu0 0.0
    %1380 = vmatprep.subr.mxu0 0.0
    %1381 = vmatpush1.msra.mxu0 0.0
    %1382 = vmatprep.subr.mxu0 0.0
    %1383 = vmatpush1.msra.mxu0 0.0
    %1384 = vmatprep.subr.mxu0 0.0
    %1385 = vmatpush1.msra.mxu0 0.0
    %1386 = vmatprep.subr.mxu0 0.0
    %1387 = vmatpush1.msra.mxu0 0.0
    %1388 = vmatprep.subr.mxu0 0.0
    %1389 = vmatpush1.msra.mxu0 0.0
    %1390 = vmatprep.subr.mxu0 0.0
    %1391 = vmatpush1.msra.mxu0 0.0
    %1392 = vmatprep.subr.mxu0 0.0
    %1393 = vmatpush1.msra.mxu0 0.0
    %1394 = vmatprep.subr.mxu0 0.0
    %1395 = vmatpush1.msra.mxu0 0.0
    %1396 = vmatprep.subr.mxu0 0.0
    %1397 = vmatpush1.msra.mxu0 0.0
    %1398 = vmatprep.subr.mxu0 0.0
    %1399 = vmatpush1.msra.mxu0 0.0
    %1400 = vmatprep.subr.mxu0 0.0
    %1401 = vmatpush1.msra.mxu0 0.0
    %1402 = vmatprep.subr.mxu0 0.0
    %1403 = vmatpush1.msra.mxu0 %v297
    %1404 = vmatprep.subr.mxu0 0.0
    %1405 = vmatpush2.msra.mxu0 0.0
    %1406 = vmatprep.subr.mxu0 0.0
    %1407 = vmatpush2.msra.mxu0 0.0
    %1408 = vmatprep.subr.mxu0 0.0
    %1409 = vmatpush2.msra.mxu0 0.0
    %1410 = vmatprep.subr.mxu0 0.0
    %1411 = vmatpush2.msra.mxu0 0.0
    %1412 = vmatprep.subr.mxu0 0.0
    %1413 = vmatpush2.msra.mxu0 0.0
    %1414 = vmatprep.subr.mxu0 0.0
    %1415 = vmatpush2.msra.mxu0 0.0
    %1416 = vmatprep.subr.mxu0 0.0
    %1417 = vmatpush2.msra.mxu0 0.0
    %1418 = vmatprep.subr.mxu0 0.0
    %1419 = vmatpush2.msra.mxu0 0.0
    %1420 = vmatprep.subr.mxu0 0.0
    %1421 = vmatpush2.msra.mxu0 0.0
    %1422 = vmatprep.subr.mxu0 0.0
    %1423 = vmatpush2.msra.mxu0 0.0
    %1424 = vmatprep.subr.mxu0 0.0
    %1425 = vmatpush2.msra.mxu0 0.0
    %1426 = vmatprep.subr.mxu0 0.0
    %1427 = vmatpush2.msra.mxu0 0.0
    %1428 = vmatprep.subr.mxu0 0.0
    %1429 = vmatpush2.msra.mxu0 0.0
    %1430 = vmatprep.subr.mxu0 0.0
    %1431 = vmatpush2.msra.mxu0 0.0
    %1432 = vmatprep.subr.mxu0 0.0
    %1433 = vmatpush2.msra.mxu0 0.0
    %1434 = vmatprep.subr.mxu0 0.0
    %1435 = vmatpush2.msra.mxu0 0.0
    %1436 = vmatprep.mubr.f32.mxu0 0.0
    %1437 = vmatmul.mubr.f32.gmra.mxu0 %v1370
    %v1438 = vpop.f32.mrf.mxu0
    %v1439 = vadd.f32 0.0, %v1438
    %v1440 = vpop.f32.mrf.mxu0
    %1441 = vdwg.mxu0
    %v1443 = vsel %vm160, %v994, 0
    %1445 = vmatprep.subr.mxu0 0.0
    %1446 = vmatpush1.msra.mxu0 0.0
    %1447 = vmatprep.subr.mxu0 0.0
    %1448 = vmatpush1.msra.mxu0 0.0
    %1449 = vmatprep.subr.mxu0 0.0
    %1450 = vmatpush1.msra.mxu0 0.0
    %1451 = vmatprep.subr.mxu0 0.0
    %1452 = vmatpush1.msra.mxu0 0.0
    %1453 = vmatprep.subr.mxu0 0.0
    %1454 = vmatpush1.msra.mxu0 0.0
    %1455 = vmatprep.subr.mxu0 0.0
    %1456 = vmatpush1.msra.mxu0 0.0
    %1457 = vmatprep.subr.mxu0 0.0
    %1458 = vmatpush1.msra.mxu0 0.0
    %1459 = vmatprep.subr.mxu0 0.0
    %1460 = vmatpush1.msra.mxu0 0.0
    %1461 = vmatprep.subr.mxu0 0.0
    %1462 = vmatpush1.msra.mxu0 0.0
    %1463 = vmatprep.subr.mxu0 0.0
    %1464 = vmatpush1.msra.mxu0 0.0
    %1465 = vmatprep.subr.mxu0 0.0
    %1466 = vmatpush1.msra.mxu0 0.0
    %1467 = vmatprep.subr.mxu0 0.0
    %1468 = vmatpush1.msra.mxu0 0.0
    %1469 = vmatprep.subr.mxu0 0.0
    %1470 = vmatpush1.msra.mxu0 0.0
    %1471 = vmatprep.subr.mxu0 0.0
    %1472 = vmatpush1.msra.mxu0 0.0
    %1473 = vmatprep.subr.mxu0 0.0
    %1474 = vmatpush1.msra.mxu0 0.0
    %1475 = vmatprep.subr.mxu0 0.0
    %1476 = vmatpush1.msra.mxu0 %v298
    %1477 = vmatprep.subr.mxu0 0.0
    %1478 = vmatpush2.msra.mxu0 0.0
    %1479 = vmatprep.subr.mxu0 0.0
    %1480 = vmatpush2.msra.mxu0 0.0
    %1481 = vmatprep.subr.mxu0 0.0
    %1482 = vmatpush2.msra.mxu0 0.0
    %1483 = vmatprep.subr.mxu0 0.0
    %1484 = vmatpush2.msra.mxu0 0.0
    %1485 = vmatprep.subr.mxu0 0.0
    %1486 = vmatpush2.msra.mxu0 0.0
    %1487 = vmatprep.subr.mxu0 0.0
    %1488 = vmatpush2.msra.mxu0 0.0
    %1489 = vmatprep.subr.mxu0 0.0
    %1490 = vmatpush2.msra.mxu0 0.0
    %1491 = vmatprep.subr.mxu0 0.0
    %1492 = vmatpush2.msra.mxu0 0.0
    %1493 = vmatprep.subr.mxu0 0.0
    %1494 = vmatpush2.msra.mxu0 0.0
    %1495 = vmatprep.subr.mxu0 0.0
    %1496 = vmatpush2.msra.mxu0 0.0
    %1497 = vmatprep.subr.mxu0 0.0
    %1498 = vmatpush2.msra.mxu0 0.0
    %1499 = vmatprep.subr.mxu0 0.0
    %1500 = vmatpush2.msra.mxu0 0.0
    %1501 = vmatprep.subr.mxu0 0.0
    %1502 = vmatpush2.msra.mxu0 0.0
    %1503 = vmatprep.subr.mxu0 0.0
    %1504 = vmatpush2.msra.mxu0 0.0
    %1505 = vmatprep.subr.mxu0 0.0
    %1506 = vmatpush2.msra.mxu0 0.0
    %1507 = vmatprep.subr.mxu0 0.0
    %1508 = vmatpush2.msra.mxu0 0.0
    %1509 = vmatprep.mubr.f32.mxu0 0.0
    %1510 = vmatmul.mubr.f32.gmra.mxu0 %v1443
    %v1511 = vpop.f32.mrf.mxu0
    %v1512 = vadd.f32 0.0, %v1511
    %v1513 = vpop.f32.mrf.mxu0
    %1514 = vdwg.mxu0
    %v1516 = vsel %vm160, %v995, 0
    %1518 = vmatprep.subr.mxu0 0.0
    %1519 = vmatpush1.msra.mxu0 0.0
    %1520 = vmatprep.subr.mxu0 0.0
    %1521 = vmatpush1.msra.mxu0 0.0
    %1522 = vmatprep.subr.mxu0 0.0
    %1523 = vmatpush1.msra.mxu0 0.0
    %1524 = vmatprep.subr.mxu0 0.0
    %1525 = vmatpush1.msra.mxu0 0.0
    %1526 = vmatprep.subr.mxu0 0.0
    %1527 = vmatpush1.msra.mxu0 0.0
    %1528 = vmatprep.subr.mxu0 0.0
    %1529 = vmatpush1.msra.mxu0 0.0
    %1530 = vmatprep.subr.mxu0 0.0
    %1531 = vmatpush1.msra.mxu0 0.0
    %1532 = vmatprep.subr.mxu0 0.0
    %1533 = vmatpush1.msra.mxu0 0.0
    %1534 = vmatprep.subr.mxu0 0.0
    %1535 = vmatpush1.msra.mxu0 0.0
    %1536 = vmatprep.subr.mxu0 0.0
    %1537 = vmatpush1.msra.mxu0 0.0
    %1538 = vmatprep.subr.mxu0 0.0
    %1539 = vmatpush1.msra.mxu0 0.0
    %1540 = vmatprep.subr.mxu0 0.0
    %1541 = vmatpush1.msra.mxu0 0.0
    %1542 = vmatprep.subr.mxu0 0.0
    %1543 = vmatpush1.msra.mxu0 0.0
    %1544 = vmatprep.subr.mxu0 0.0
    %1545 = vmatpush1.msra.mxu0 0.0
    %1546 = vmatprep.subr.mxu0 0.0
    %1547 = vmatpush1.msra.mxu0 0.0
    %1548 = vmatprep.subr.mxu0 0.0
    %1549 = vmatpush1.msra.mxu0 %v299
    %1550 = vmatprep.subr.mxu0 0.0
    %1551 = vmatpush2.msra.mxu0 0.0
    %1552 = vmatprep.subr.mxu0 0.0
    %1553 = vmatpush2.msra.mxu0 0.0
    %1554 = vmatprep.subr.mxu0 0.0
    %1555 = vmatpush2.msra.mxu0 0.0
    %1556 = vmatprep.subr.mxu0 0.0
    %1557 = vmatpush2.msra.mxu0 0.0
    %1558 = vmatprep.subr.mxu0 0.0
    %1559 = vmatpush2.msra.mxu0 0.0
    %1560 = vmatprep.subr.mxu0 0.0
    %1561 = vmatpush2.msra.mxu0 0.0
    %1562 = vmatprep.subr.mxu0 0.0
    %1563 = vmatpush2.msra.mxu0 0.0
    %1564 = vmatprep.subr.mxu0 0.0
    %1565 = vmatpush2.msra.mxu0 0.0
    %1566 = vmatprep.subr.mxu0 0.0
    %1567 = vmatpush2.msra.mxu0 0.0
    %1568 = vmatprep.subr.mxu0 0.0
    %1569 = vmatpush2.msra.mxu0 0.0
    %1570 = vmatprep.subr.mxu0 0.0
    %1571 = vmatpush2.msra.mxu0 0.0
    %1572 = vmatprep.subr.mxu0 0.0
    %1573 = vmatpush2.msra.mxu0 0.0
    %1574 = vmatprep.subr.mxu0 0.0
    %1575 = vmatpush2.msra.mxu0 0.0
    %1576 = vmatprep.subr.mxu0 0.0
    %1577 = vmatpush2.msra.mxu0 0.0
    %1578 = vmatprep.subr.mxu0 0.0
    %1579 = vmatpush2.msra.mxu0 0.0
    %1580 = vmatprep.subr.mxu0 0.0
    %1581 = vmatpush2.msra.mxu0 0.0
    %1582 = vmatprep.mubr.f32.mxu0 0.0
    %1583 = vmatmul.mubr.f32.gmra.mxu0 %v1516
    %v1584 = vpop.f32.mrf.mxu0
    %v1585 = vadd.f32 0.0, %v1584
    %v1586 = vpop.f32.mrf.mxu0
    %1587 = vdwg.mxu0
    %1588 = vst.msk [vmem:[#allocation3] sm:$0xff] %vm160, %v1074
    %1590 = vrot.lane.b32.xlu0 %v1147, 8
    %v1591 = vpop.permute.xlu0 %1590
    %vm1593 = vcmask 130112
    %1594 = vst.msk [vmem:[#allocation3] sm:$0xff] %vm1593, %v1591
    %1596 = vrot.lane.b32.xlu0 %v1220, 16
    %v1597 = vpop.permute.xlu0 %1596
    %vm1599 = vcmask 195712
    %1600 = vst.msk [vmem:[#allocation3] sm:$0xff] %vm1599, %v1597
    %1602 = vrot.lane.b32.xlu0 %v1293, 24
    %v1603 = vpop.permute.xlu0 %1602
    %vm1605 = vcmask 261312
    %1606 = vst.msk [vmem:[#allocation3] sm:$0xff] %vm1605, %v1603
    %1607 = vst.msk [vmem:[#allocation3 + $0x8] sm:$0xff] %vm160, %v1366
    %1609 = vrot.lane.b32.xlu0 %v1439, 8
    %v1610 = vpop.permute.xlu0 %1609
    %1612 = vst.msk [vmem:[#allocation3 + $0x8] sm:$0xff] %vm1593, %v1610
    %1614 = vrot.lane.b32.xlu0 %v1512, 16
    %v1615 = vpop.permute.xlu0 %1614
    %1617 = vst.msk [vmem:[#allocation3 + $0x8] sm:$0xff] %vm1599, %v1615
    %1619 = vrot.lane.b32.xlu0 %v1585, 24
    %v1620 = vpop.permute.xlu0 %1619
    %1622 = vst.msk [vmem:[#allocation3 + $0x8] sm:$0xff] %vm1605, %v1620
    %v1623 = vld [vmem:[#allocation3] sm:$0xff]
    %v1624 = vld [vmem:[#allocation3 + $0x8] sm:$0xff]
    %v1625 = vld [vmem:[#allocation9] sm:$0xff]
    %v1626 = vld [vmem:[#allocation9 + $0x8] sm:$0xff]
    %v1627 = vld [vmem:[#allocation9 + $0x10] sm:$0xff]
    %v1628 = vld [vmem:[#allocation9 + $0x18] sm:$0xff]
    %v1629 = vld [vmem:[%s4] sm:$0x1]
    %v1631 = vlaneseq
    %v1632 = vshrl.u32 %v1631, 7
    %v1633 = vsub.s32 0, %v1632
    %v1634 = vrot.slane %v1629, %v1633
    %v1637 = vsel %vm78, %v1623, 0
    %v1640 = vsel %vm78, %v1624, 0
    %1642 = vmatprep.subr.mxu0 0.0
    %1643 = vmatpush1.msra.mxu0 0.0
    %1644 = vmatprep.subr.mxu0 0.0
    %1645 = vmatpush1.msra.mxu0 0.0
    %1646 = vmatprep.subr.mxu0 0.0
    %1647 = vmatpush1.msra.mxu0 0.0
    %1648 = vmatprep.subr.mxu0 0.0
    %1649 = vmatpush1.msra.mxu0 0.0
    %1650 = vmatprep.subr.mxu0 0.0
    %1651 = vmatpush1.msra.mxu0 0.0
    %1652 = vmatprep.subr.mxu0 0.0
    %1653 = vmatpush1.msra.mxu0 0.0
    %1654 = vmatprep.subr.mxu0 0.0
    %1655 = vmatpush1.msra.mxu0 0.0
    %1656 = vmatprep.subr.mxu0 0.0
    %1657 = vmatpush1.msra.mxu0 0.0
    %1658 = vmatprep.subr.mxu0 0.0
    %1659 = vmatpush1.msra.mxu0 0.0
    %1660 = vmatprep.subr.mxu0 0.0
    %1661 = vmatpush1.msra.mxu0 0.0
    %1662 = vmatprep.subr.mxu0 0.0
    %1663 = vmatpush1.msra.mxu0 0.0
    %1664 = vmatprep.subr.mxu0 0.0
    %1665 = vmatpush1.msra.mxu0 0.0
    %1666 = vmatprep.subr.mxu0 0.0
    %1667 = vmatpush1.msra.mxu0 %v1628
    %1668 = vmatprep.subr.mxu0 0.0
    %1669 = vmatpush1.msra.mxu0 %v1627
    %1670 = vmatprep.subr.mxu0 0.0
    %1671 = vmatpush1.msra.mxu0 %v1626
    %1672 = vmatprep.subr.mxu0 0.0
    %1673 = vmatpush1.msra.mxu0 %v1625
    %1674 = vmatprep.subr.mxu0 0.0
    %1675 = vmatpush2.msra.mxu0 0.0
    %1676 = vmatprep.subr.mxu0 0.0
    %1677 = vmatpush2.msra.mxu0 0.0
    %1678 = vmatprep.subr.mxu0 0.0
    %1679 = vmatpush2.msra.mxu0 0.0
    %1680 = vmatprep.subr.mxu0 0.0
    %1681 = vmatpush2.msra.mxu0 0.0
    %1682 = vmatprep.subr.mxu0 0.0
    %1683 = vmatpush2.msra.mxu0 0.0
    %1684 = vmatprep.subr.mxu0 0.0
    %1685 = vmatpush2.msra.mxu0 0.0
    %1686 = vmatprep.subr.mxu0 0.0
    %1687 = vmatpush2.msra.mxu0 0.0
    %1688 = vmatprep.subr.mxu0 0.0
    %1689 = vmatpush2.msra.mxu0 0.0
    %1690 = vmatprep.subr.mxu0 0.0
    %1691 = vmatpush2.msra.mxu0 0.0
    %1692 = vmatprep.subr.mxu0 0.0
    %1693 = vmatpush2.msra.mxu0 0.0
    %1694 = vmatprep.subr.mxu0 0.0
    %1695 = vmatpush2.msra.mxu0 0.0
    %1696 = vmatprep.subr.mxu0 0.0
    %1697 = vmatpush2.msra.mxu0 0.0
    %1698 = vmatprep.subr.mxu0 0.0
    %1699 = vmatpush2.msra.mxu0 0.0
    %1700 = vmatprep.subr.mxu0 0.0
    %1701 = vmatpush2.msra.mxu0 0.0
    %1702 = vmatprep.subr.mxu0 0.0
    %1703 = vmatpush2.msra.mxu0 0.0
    %1704 = vmatprep.subr.mxu0 0.0
    %1705 = vmatpush2.msra.mxu0 0.0
    %1706 = vmatprep.mubr.f32.mxu0 0.0
    %1707 = vmatmul.mubr.f32.gmra.mxu0 %v1637
    %v1708 = vpop.f32.mrf.mxu0
    %v1709 = vadd.f32 %v1634, %v1708
    %v1710 = vpop.f32.mrf.mxu0
    %1711 = vmatprep.mubr.f32.mxu0 0.0
    %1712 = vmatmul.mubr.f32.gmra.mxu0 %v1640
    %v1713 = vpop.f32.mrf.mxu0
    %v1714 = vadd.f32 %v1634, %v1713
    %v1715 = vpop.f32.mrf.mxu0
    %1716 = vdwg.mxu0
    %1717 = vst.msk [vmem:[#allocation10] sm:$0xff] %vm78, %v1709
    %1718 = vst.msk [vmem:[#allocation10 + $0x8] sm:$0xff] %vm78, %v1714
    // Predicated region
    $region34: #{tpu_custom_call.1} parent=1 // pred_check
      _
    $region35: #{tpu_custom_call.1} parent=1 // pred_check_branch
      %1720 = sbr.rel (0) target = $region37
    $region36: #{tpu_custom_call.1} parent=1 // pred_region
      %s1722 = ssub.s32 256, 256
      %1723 = vsyncadd [#allocation6], %s1722
      %s1724 = sshll.u32 [#allocation10], 4
      %s1725 = int_to_ptr.vmem [resolvable:$true] %s1724
      %1730 = dma.vmem_to_hbm [thread:$0]  %s1725, 256, %s5, [#allocation6], 128, 128, 8
    $region37: #{tpu_custom_call.1} parent=1 // pred_fallthru
      _
    // Predicated region
    $region38: #{tpu_custom_call.1} parent=1 // pred_check
      _
    $region39: #{tpu_custom_call.1} parent=1 // pred_check_branch
      %1732 = sbr.rel (0) target = $region41
    $region40: #{tpu_custom_call.1} parent=1 // pred_region
      %s1734 = ssub.s32 1024, 1024
      %1735 = vsyncadd [#allocation12], %s1734
      %s1736 = sshll.u32 [#allocation11], 4
      %s1737 = int_to_ptr.vmem [resolvable:$true] %s1736
      %1742 = dma.vmem_to_hbm [thread:$0]  %s1737, 1024, %s6, [#allocation12], 128, 128, 8
    $region41: #{tpu_custom_call.1} parent=1 // pred_fallthru
      _
    // Predicated region
    $region42: #{tpu_custom_call.1} parent=1 // pred_check
      _
    $region43: #{tpu_custom_call.1} parent=1 // pred_check_branch
      %1744 = sbr.rel (0) target = $region45
    $region44: #{tpu_custom_call.1} parent=1 // pred_region
      %1745 = dma.done [#allocation6], 256
    $region45: #{tpu_custom_call.1} parent=1 // pred_fallthru
      _
    // Predicated region
    $region46: #{tpu_custom_call.1} parent=1 // pred_check
      _
    $region47: #{tpu_custom_call.1} parent=1 // pred_check_branch
      %1747 = sbr.rel (0) target = $region49
    $region48: #{tpu_custom_call.1} parent=1 // pred_region
      %1748 = dma.done [#allocation12], 1024
    $region49: #{tpu_custom_call.1} parent=1 // pred_fallthru
      _
    %1749 = vsyncpa [#allocation5], 1
    %1750 = vsyncpa [#allocation8], 1
    %1751 = vsyncpa [#allocation6], 1
    %1752 = vsyncpa [#allocation12], 1

</llo_original>
